<compile_context>
chip_gen: v5e
topology: v5e:2x2
jax: 0.10.0
libtpu: 0.0.40
codegen_flags: <defaults>
</compile_context>

<pallas_src>
import jax
import jax.numpy as jnp
from jax.experimental import pallas as pl
from jax.experimental.pallas import tpu as pltpu


def _round_up(x, m):
    return ((x + m - 1) // m) * m


# ---------------------------------------------------------------------------
# Pallas kernel: fused multi-branch shared MLP (1x1 conv) + max-pool over K
# ---------------------------------------------------------------------------
def _make_msg_kernel(layer_counts, out_channels):
    """layer_counts[i]: #MLP layers of branch i; out_channels[i]: last width."""
    num_branches = len(layer_counts)

    def kernel(*refs):
        out_ref = refs[-1]
        grouped_refs = refs[:num_branches]
        wb_refs = refs[num_branches:-1]

        wb = 0
        ch_off = 0
        for bi in range(num_branches):
            h = grouped_refs[bi][...]                 # (TM, K, Cin) bf16
            n_layers = layer_counts[bi]
            for l in range(n_layers):
                w = wb_refs[wb][...]                  # (C_l, C_{l+1}) bf16
                b = wb_refs[wb + 1][...]              # (1, C_{l+1})   f32
                wb += 2
                # 1x1 conv == contraction over the channel (lane) axis; keep
                # the 3-D view (no reshape round-trip), accumulate in f32.
                h = jnp.einsum('gkc,cd->gkd', h, w,
                               preferred_element_type=jnp.float32)
                h = jnp.maximum(h + b[None, :, :], 0.0)   # bias + ReLU (f32)
                if l + 1 < n_layers:
                    h = h.astype(jnp.bfloat16)            # bf16 into next MXU
            cout = out_channels[bi]
            # max-pool over the K (sublane) axis, write this branch's channel
            # slice of the concatenated output (static slice).
            out_ref[:, ch_off:ch_off + cout] = jnp.max(h, axis=1)
            ch_off += cout

    return kernel


def fused_msg_mlp_maxpool(grouped_list, branch_params):
    """Fused MSG branches.

    grouped_list[i]: (G, K_i, Cin_i) f32 grouped points of branch i.
    branch_params[i]: (weights, biases) with weights[l]: (C_l, C_{l+1}) f32
                      (BN folded) and biases[l]: (1, C_{l+1}) f32.
    Returns (G, sum_i Cout_i) f32 — the channel-concatenated branch outputs.
    """
    g = grouped_list[0].shape[0]

    proc_groups, proc_w, proc_b = [], [], []
    layer_counts, out_channels = [], []
    for grouped, (ws, bs) in zip(grouped_list, branch_params):
        cin = grouped.shape[-1]
        cin_pad = _round_up(cin, 8)
        if cin_pad != cin:
            # Pad input channels (and matching zero weight rows) to a
            # layout-friendly multiple of 8; zeros contribute nothing.
            grouped = jnp.pad(grouped, ((0, 0), (0, 0), (0, cin_pad - cin)))
            ws = [jnp.pad(ws[0], ((0, cin_pad - cin), (0, 0)))] + list(ws[1:])
        proc_groups.append(grouped.astype(jnp.bfloat16))
        proc_w.append([w.astype(jnp.bfloat16) for w in ws])
        proc_b.append([b.astype(jnp.float32) for b in bs])
        layer_counts.append(len(ws))
        out_channels.append(ws[-1].shape[1])

    cout_total = sum(out_channels)

    # --- tile-size selection (budget against 32 MiB scoped VMEM, safe on
    # v5e/v6e/v7x; inputs and outputs are double-buffered by the pipeline) ---
    in_bpg = sum(gp.shape[1] * gp.shape[2] * 2 for gp in proc_groups)  # bf16
    out_bpg = cout_total * 4                                           # f32
    per_group = 2 * (in_bpg + out_bpg)
    budget = 24 << 20
    tm = max(8, min(2048, budget // max(per_group, 1)))
    tm = (tm // 8) * 8
    g_pad = _round_up(g, 8)
    if tm >= g_pad:
        # Whole problem fits one tile; split into two grid steps when cleanly
        # possible so both v7x TensorCores get work ("parallel" grid axis).
        if g_pad >= 16 and (g_pad // 2) % 8 == 0:
            tm = g_pad // 2
        else:
            tm = g_pad
    g_pad = _round_up(g_pad, tm)

    if g_pad != g:
        # Tail padding (padded rows are sliced off after the call).
        proc_groups = [jnp.pad(gp, ((0, g_pad - g), (0, 0), (0, 0)))
                       for gp in proc_groups]

    # --- specs / args -------------------------------------------------------
    in_specs, args = [], []
    for gp in proc_groups:
        k_b, c_b = gp.shape[1], gp.shape[2]
        in_specs.append(pl.BlockSpec((tm, k_b, c_b), lambda i: (i, 0, 0)))
        args.append(gp)

    flops = 0
    weight_bytes = 0
    for gp, ws, bs in zip(proc_groups, proc_w, proc_b):
        k_b = gp.shape[1]
        for w, b in zip(ws, bs):
            # Constant block index -> weights/biases stay resident in VMEM
            # across grid steps (no per-step re-DMA).
            in_specs.append(pl.BlockSpec(w.shape, lambda i: (0, 0)))
            in_specs.append(pl.BlockSpec(b.shape, lambda i: (0, 0)))
            args.append(w)
            args.append(b)
            flops += 2 * g * k_b * int(w.shape[0]) * int(w.shape[1])
            weight_bytes += int(w.size) * 2 + int(b.size) * 4

    bytes_accessed = (sum(int(gp.size) * 2 for gp in proc_groups)
                      + g_pad * cout_total * 4 + weight_bytes)

    out = pl.pallas_call(
        _make_msg_kernel(tuple(layer_counts), tuple(out_channels)),
        out_shape=jax.ShapeDtypeStruct((g_pad, cout_total), jnp.float32),
        grid=(g_pad // tm,),
        in_specs=in_specs,
        out_specs=pl.BlockSpec((tm, cout_total), lambda i: (i, 0)),
        compiler_params=pltpu.CompilerParams(
            dimension_semantics=("parallel",),
            vmem_limit_bytes=32 << 20),
        cost_estimate=pl.CostEstimate(
            flops=flops, transcendentals=0, bytes_accessed=bytes_accessed),
    )(*args)
    return out[:g]


# ---------------------------------------------------------------------------
# Plain-JAX glue: FPS, ball query, gather
# ---------------------------------------------------------------------------
def square_distance(a, b):
    # a: (B, S, 3), b: (B, N, 3) -> (B, S, N)
    return jnp.sum((a[:, :, None, :] - b[:, None, :, :]) ** 2, axis=-1)


def index_points(points, idx):
    # points: (B, N, C), idx: (B, ...) int32 -> (B, ..., C)
    b = points.shape[0]
    c = points.shape[-1]
    flat = idx.reshape(b, -1)
    gathered = jnp.take_along_axis(points, flat[..., None], axis=1)
    return gathered.reshape(*idx.shape, c)


def farthest_point_sample(xyz, npoint):
    # TODO(synk): iterative argmax FPS stays in plain JAX (no clean Pallas map).
    b, n, _ = xyz.shape

    def body(i, carry):
        dist, farthest, idxs = carry
        idxs = idxs.at[:, i].set(farthest)
        centroid = jnp.take_along_axis(xyz, farthest[:, None, None], axis=1)
        d = jnp.sum((xyz - centroid) ** 2, axis=-1)
        dist = jnp.minimum(dist, d)
        farthest = jnp.argmax(dist, axis=-1).astype(jnp.int32)
        return dist, farthest, idxs

    dist0 = jnp.full((b, n), 1e10, jnp.float32)
    far0 = jnp.zeros((b,), jnp.int32)
    idxs0 = jnp.zeros((b, npoint), jnp.int32)
    _, _, idxs = jax.lax.fori_loop(0, npoint, body, (dist0, far0, idxs0))
    return idxs


def query_ball_point(radius, nsample, xyz, new_xyz):
    # TODO(synk): sort + data-dependent gather stays in plain JAX.
    b, n, _ = xyz.shape
    _, s, _ = new_xyz.shape
    sqrdists = square_distance(new_xyz, xyz)                    # (B, S, N)
    group_idx = jnp.broadcast_to(jnp.arange(n, dtype=jnp.int32), (b, s, n))
    group_idx = jnp.where(sqrdists > radius ** 2, jnp.int32(n), group_idx)
    group_idx = jnp.sort(group_idx, axis=-1)[:, :, :nsample]
    group_first = jnp.broadcast_to(group_idx[:, :, :1], group_idx.shape)
    group_idx = jnp.where(group_idx == n, group_first, group_idx)
    return group_idx


# ---------------------------------------------------------------------------
# Set abstraction (MSG) + head forward
# ---------------------------------------------------------------------------
def sa_msg_forward(xyz, features, cfg, sa_params):
    b, n, _ = xyz.shape
    s = max(1, int(n * cfg['ratio']))
    fps_idx = farthest_point_sample(xyz, s)
    new_xyz = index_points(xyz, fps_idx)                        # (B, S, 3)

    grouped_list = []
    for radius, k in zip(cfg['radius_list'], cfg['max_sample_list']):
        group_idx = query_ball_point(radius, k, xyz, new_xyz)   # (B, S, K)
        grouped_xyz = index_points(xyz, group_idx)              # (B, S, K, 3)
        grouped_xyz = grouped_xyz - new_xyz[:, :, None, :]
        if features is not None:
            grouped_feat = index_points(features, group_idx)    # (B, S, K, D)
            grouped = jnp.concatenate([grouped_feat, grouped_xyz], axis=-1)
        else:
            grouped = grouped_xyz
        grouped_list.append(
            grouped.reshape(b * s, k, grouped.shape[-1]).astype(jnp.float32))

    # One fused Pallas call per SA module: all branches + channel concat.
    fused = fused_msg_mlp_maxpool(grouped_list, sa_params)      # (B*S, sum C)
    new_features = fused.reshape(b, s, -1)
    return new_xyz, new_features


def pointnetpp_chead_forward(xyz, config, params):
    features = None
    for i, sa_cfg in enumerate(config['SA_modules']):
        xyz, features = sa_msg_forward(xyz, features, sa_cfg, params[i])
    down_sample_xyz = xyz
    if config['group_all']:
        return jnp.concatenate([xyz, features], axis=-1), down_sample_xyz
    return features, down_sample_xyz


# ---------------------------------------------------------------------------
# Deterministic parameter construction (Conv2d 1x1 + folded eval-mode BN)
# ---------------------------------------------------------------------------
def make_params(config, key):
    params = []
    for sa_cfg in config['SA_modules']:
        sa_params = []
        for mlp in sa_cfg['mlp_list']:
            last = sa_cfg['in_channel'] + 3
            ws, bs = [], []
            for out_c in mlp:
                key, k1 = jax.random.split(key)
                w = jax.random.normal(k1, (last, out_c), jnp.float32) * 0.1
                conv_b = jnp.zeros((out_c,), jnp.float32)
                gamma = jnp.ones((out_c,), jnp.float32)
                beta = jnp.zeros((out_c,), jnp.float32)
                mean = jnp.zeros((out_c,), jnp.float32)
                var = jnp.ones((out_c,), jnp.float32)
                scale = gamma / jnp.sqrt(var + 1e-5)
                ws.append(w * scale[None, :])
                bs.append(((conv_b - mean) * scale + beta).reshape(1, out_c))
                last = out_c
            sa_params.append((ws, bs))
        params.append(sa_params)
    return params


# ---------------------------------------------------------------------------
if __name__ == "__main__":
    config = {
        'group_all': False,
        'SA_modules': [
            {'ratio': 0.5, 'radius_list': [0.2, 0.4],
             'max_sample_list': [8, 16], 'in_channel': 0,
             'mlp_list': [[16, 16, 32], [16, 16, 32]]},
            {'ratio': 0.5, 'radius_list': [0.4],
             'max_sample_list': [16], 'in_channel': 64,
             'mlp_list': [[64, 128]]},
        ],
    }

    key = jax.random.PRNGKey(0)
    key, kx, kp = jax.random.split(key, 3)
    xyz = jax.random.uniform(kx, (2, 64, 3), jnp.float32)   # (B, N, 3)
    params = make_params(config, kp)

    out, down_xyz = pointnetpp_chead_forward(xyz, config, params)
    out = jax.block_until_ready(out)
    down_xyz = jax.block_until_ready(down_xyz)

    assert out.shape == (2, 16, 128), out.shape
    assert down_xyz.shape == (2, 16, 3), down_xyz.shape
    assert bool(jnp.all(jnp.isfinite(out)))
    print("KERNEL_OK")
</pallas_src>

<mosaic_0001>
module attributes {stable_mosaic.version = 11 : i64} {
  func.func @kernel(%arg0: i32, %arg1: memref<32x8x8xbf16, #tpu.memory_space<vmem>>, %arg2: memref<32x16x8xbf16, #tpu.memory_space<vmem>>, %arg3: memref<8x16xbf16, #tpu.memory_space<vmem>>, %arg4: memref<1x16xf32, #tpu.memory_space<vmem>>, %arg5: memref<16x16xbf16, #tpu.memory_space<vmem>>, %arg6: memref<1x16xf32, #tpu.memory_space<vmem>>, %arg7: memref<16x32xbf16, #tpu.memory_space<vmem>>, %arg8: memref<1x32xf32, #tpu.memory_space<vmem>>, %arg9: memref<8x16xbf16, #tpu.memory_space<vmem>>, %arg10: memref<1x16xf32, #tpu.memory_space<vmem>>, %arg11: memref<16x16xbf16, #tpu.memory_space<vmem>>, %arg12: memref<1x16xf32, #tpu.memory_space<vmem>>, %arg13: memref<16x32xbf16, #tpu.memory_space<vmem>>, %arg14: memref<1x32xf32, #tpu.memory_space<vmem>>, %arg15: memref<32x64xf32, #tpu.memory_space<vmem>>) attributes {dimension_semantics = [#tpu.dimension_semantics<parallel>], iteration_bounds = array<i64: 2>, scalar_prefetch = 0 : i64, scratch_operands = 0 : i64, tpu.core_type = #tpu.core_type<tc>, window_params = [{transform_indices = @transform_0, window_bounds = array<i64: 32, 8, 8>}, {transform_indices = @transform_1, window_bounds = array<i64: 32, 16, 8>}, {pipeline_mode = #tpu.pipeline_mode<synchronous>, transform_indices = @transform_2, window_bounds = array<i64: 8, 16>}, {pipeline_mode = #tpu.pipeline_mode<synchronous>, transform_indices = @transform_3, window_bounds = array<i64: 1, 16>}, {pipeline_mode = #tpu.pipeline_mode<synchronous>, transform_indices = @transform_4, window_bounds = array<i64: 16, 16>}, {pipeline_mode = #tpu.pipeline_mode<synchronous>, transform_indices = @transform_5, window_bounds = array<i64: 1, 16>}, {pipeline_mode = #tpu.pipeline_mode<synchronous>, transform_indices = @transform_6, window_bounds = array<i64: 16, 32>}, {pipeline_mode = #tpu.pipeline_mode<synchronous>, transform_indices = @transform_7, window_bounds = array<i64: 1, 32>}, {pipeline_mode = #tpu.pipeline_mode<synchronous>, transform_indices = @transform_8, window_bounds = array<i64: 8, 16>}, {pipeline_mode = #tpu.pipeline_mode<synchronous>, transform_indices = @transform_9, window_bounds = array<i64: 1, 16>}, {pipeline_mode = #tpu.pipeline_mode<synchronous>, transform_indices = @transform_10, window_bounds = array<i64: 16, 16>}, {pipeline_mode = #tpu.pipeline_mode<synchronous>, transform_indices = @transform_11, window_bounds = array<i64: 1, 16>}, {pipeline_mode = #tpu.pipeline_mode<synchronous>, transform_indices = @transform_12, window_bounds = array<i64: 16, 32>}, {pipeline_mode = #tpu.pipeline_mode<synchronous>, transform_indices = @transform_13, window_bounds = array<i64: 1, 32>}, {transform_indices = @transform_14, window_bounds = array<i64: 32, 64>}]} {
    %c0 = arith.constant 0 : index
    %c0_0 = arith.constant 0 : index
    %c0_1 = arith.constant 0 : index
    %0 = vector.load %arg1[%c0, %c0_0, %c0_1] : memref<32x8x8xbf16, #tpu.memory_space<vmem>>, vector<32x8x8xbf16>
    %c0_2 = arith.constant 0 : index
    %c0_3 = arith.constant 0 : index
    %1 = vector.load %arg3[%c0_2, %c0_3] : memref<8x16xbf16, #tpu.memory_space<vmem>>, vector<8x16xbf16>
    %c0_4 = arith.constant 0 : index
    %c0_5 = arith.constant 0 : index
    %2 = vector.load %arg4[%c0_4, %c0_5] : memref<1x16xf32, #tpu.memory_space<vmem>>, vector<1x16xf32>
    "tpu.trace_start"() <{level = 10 : i32, message = "gkc,cd->gkd"}> : () -> ()
    %cst = arith.constant dense<0.000000e+00> : vector<32x8x16xf32>
    %3 = tpu.matmul %0, %1, %cst {dimension_numbers = #tpu.dot_dimension_numbers<[2], [0], [0, 1], [1], [0, 0, 0, 1, 1, 1], [], []>} : vector<32x8x8xbf16>, vector<8x16xbf16>, vector<32x8x16xf32> -> vector<32x8x16xf32>
    "tpu.trace_stop"() : () -> ()
    %4 = vector.shape_cast %2 : vector<1x16xf32> to vector<1x1x16xf32>
    %5 = vector.broadcast %4 : vector<1x1x16xf32> to vector<32x8x16xf32>
    %6 = arith.addf %3, %5 : vector<32x8x16xf32>
    %cst_6 = arith.constant 0.000000e+00 : f32
    %7 = vector.broadcast %cst_6 : f32 to vector<32x8x16xf32>
    %8 = arith.maximumf %6, %7 : vector<32x8x16xf32>
    %9 = arith.truncf %8 : vector<32x8x16xf32> to vector<32x8x16xbf16>
    %c0_7 = arith.constant 0 : index
    %c0_8 = arith.constant 0 : index
    %10 = vector.load %arg5[%c0_7, %c0_8] : memref<16x16xbf16, #tpu.memory_space<vmem>>, vector<16x16xbf16>
    %c0_9 = arith.constant 0 : index
    %c0_10 = arith.constant 0 : index
    %11 = vector.load %arg6[%c0_9, %c0_10] : memref<1x16xf32, #tpu.memory_space<vmem>>, vector<1x16xf32>
    "tpu.trace_start"() <{level = 10 : i32, message = "gkc,cd->gkd"}> : () -> ()
    %cst_11 = arith.constant dense<0.000000e+00> : vector<32x8x16xf32>
    %12 = tpu.matmul %9, %10, %cst_11 {dimension_numbers = #tpu.dot_dimension_numbers<[2], [0], [0, 1], [1], [0, 0, 0, 1, 1, 1], [], []>} : vector<32x8x16xbf16>, vector<16x16xbf16>, vector<32x8x16xf32> -> vector<32x8x16xf32>
    "tpu.trace_stop"() : () -> ()
    %13 = vector.shape_cast %11 : vector<1x16xf32> to vector<1x1x16xf32>
    %14 = vector.broadcast %13 : vector<1x1x16xf32> to vector<32x8x16xf32>
    %15 = arith.addf %12, %14 : vector<32x8x16xf32>
    %cst_12 = arith.constant 0.000000e+00 : f32
    %16 = vector.broadcast %cst_12 : f32 to vector<32x8x16xf32>
    %17 = arith.maximumf %15, %16 : vector<32x8x16xf32>
    %18 = arith.truncf %17 : vector<32x8x16xf32> to vector<32x8x16xbf16>
    %c0_13 = arith.constant 0 : index
    %c0_14 = arith.constant 0 : index
    %19 = vector.load %arg7[%c0_13, %c0_14] : memref<16x32xbf16, #tpu.memory_space<vmem>>, vector<16x32xbf16>
    %c0_15 = arith.constant 0 : index
    %c0_16 = arith.constant 0 : index
    %20 = vector.load %arg8[%c0_15, %c0_16] : memref<1x32xf32, #tpu.memory_space<vmem>>, vector<1x32xf32>
    "tpu.trace_start"() <{level = 10 : i32, message = "gkc,cd->gkd"}> : () -> ()
    %cst_17 = arith.constant dense<0.000000e+00> : vector<32x8x32xf32>
    %21 = tpu.matmul %18, %19, %cst_17 {dimension_numbers = #tpu.dot_dimension_numbers<[2], [0], [0, 1], [1], [0, 0, 0, 1, 1, 1], [], []>} : vector<32x8x16xbf16>, vector<16x32xbf16>, vector<32x8x32xf32> -> vector<32x8x32xf32>
    "tpu.trace_stop"() : () -> ()
    %22 = vector.shape_cast %20 : vector<1x32xf32> to vector<1x1x32xf32>
    %23 = vector.broadcast %22 : vector<1x1x32xf32> to vector<32x8x32xf32>
    %24 = arith.addf %21, %23 : vector<32x8x32xf32>
    %cst_18 = arith.constant 0.000000e+00 : f32
    %25 = vector.broadcast %cst_18 : f32 to vector<32x8x32xf32>
    %26 = arith.maximumf %24, %25 : vector<32x8x32xf32>
    %cst_19 = arith.constant dense<0xFF800000> : vector<32x32xf32>
    %27 = vector.multi_reduction <maximumf>, %26, %cst_19 [1] : vector<32x8x32xf32> to vector<32x32xf32>
    %c0_20 = arith.constant 0 : index
    %c0_21 = arith.constant 0 : index
    %28 = vector.load %arg15[%c0_20, %c0_21] : memref<32x64xf32, #tpu.memory_space<vmem>>, vector<32x32xf32>
    tpu.vector_store %arg15[%c0_20, %c0_21], %27 {strides = array<i32>} : memref<32x64xf32, #tpu.memory_space<vmem>>, vector<32x32xf32>,
    %c0_22 = arith.constant 0 : index
    %c0_23 = arith.constant 0 : index
    %c0_24 = arith.constant 0 : index
    %29 = vector.load %arg2[%c0_22, %c0_23, %c0_24] : memref<32x16x8xbf16, #tpu.memory_space<vmem>>, vector<32x16x8xbf16>
    %c0_25 = arith.constant 0 : index
    %c0_26 = arith.constant 0 : index
    %30 = vector.load %arg9[%c0_25, %c0_26] : memref<8x16xbf16, #tpu.memory_space<vmem>>, vector<8x16xbf16>
    %c0_27 = arith.constant 0 : index
    %c0_28 = arith.constant 0 : index
    %31 = vector.load %arg10[%c0_27, %c0_28] : memref<1x16xf32, #tpu.memory_space<vmem>>, vector<1x16xf32>
    "tpu.trace_start"() <{level = 10 : i32, message = "gkc,cd->gkd"}> : () -> ()
    %cst_29 = arith.constant dense<0.000000e+00> : vector<32x16x16xf32>
    %32 = tpu.matmul %29, %30, %cst_29 {dimension_numbers = #tpu.dot_dimension_numbers<[2], [0], [0, 1], [1], [0, 0, 0, 1, 1, 1], [], []>} : vector<32x16x8xbf16>, vector<8x16xbf16>, vector<32x16x16xf32> -> vector<32x16x16xf32>
    "tpu.trace_stop"() : () -> ()
    %33 = vector.shape_cast %31 : vector<1x16xf32> to vector<1x1x16xf32>
    %34 = vector.broadcast %33 : vector<1x1x16xf32> to vector<32x16x16xf32>
    %35 = arith.addf %32, %34 : vector<32x16x16xf32>
    %cst_30 = arith.constant 0.000000e+00 : f32
    %36 = vector.broadcast %cst_30 : f32 to vector<32x16x16xf32>
    %37 = arith.maximumf %35, %36 : vector<32x16x16xf32>
    %38 = arith.truncf %37 : vector<32x16x16xf32> to vector<32x16x16xbf16>
    %c0_31 = arith.constant 0 : index
    %c0_32 = arith.constant 0 : index
    %39 = vector.load %arg11[%c0_31, %c0_32] : memref<16x16xbf16, #tpu.memory_space<vmem>>, vector<16x16xbf16>
    %c0_33 = arith.constant 0 : index
    %c0_34 = arith.constant 0 : index
    %40 = vector.load %arg12[%c0_33, %c0_34] : memref<1x16xf32, #tpu.memory_space<vmem>>, vector<1x16xf32>
    "tpu.trace_start"() <{level = 10 : i32, message = "gkc,cd->gkd"}> : () -> ()
    %cst_35 = arith.constant dense<0.000000e+00> : vector<32x16x16xf32>
    %41 = tpu.matmul %38, %39, %cst_35 {dimension_numbers = #tpu.dot_dimension_numbers<[2], [0], [0, 1], [1], [0, 0, 0, 1, 1, 1], [], []>} : vector<32x16x16xbf16>, vector<16x16xbf16>, vector<32x16x16xf32> -> vector<32x16x16xf32>
    "tpu.trace_stop"() : () -> ()
    %42 = vector.shape_cast %40 : vector<1x16xf32> to vector<1x1x16xf32>
    %43 = vector.broadcast %42 : vector<1x1x16xf32> to vector<32x16x16xf32>
    %44 = arith.addf %41, %43 : vector<32x16x16xf32>
    %cst_36 = arith.constant 0.000000e+00 : f32
    %45 = vector.broadcast %cst_36 : f32 to vector<32x16x16xf32>
    %46 = arith.maximumf %44, %45 : vector<32x16x16xf32>
    %47 = arith.truncf %46 : vector<32x16x16xf32> to vector<32x16x16xbf16>
    %c0_37 = arith.constant 0 : index
    %c0_38 = arith.constant 0 : index
    %48 = vector.load %arg13[%c0_37, %c0_38] : memref<16x32xbf16, #tpu.memory_space<vmem>>, vector<16x32xbf16>
    %c0_39 = arith.constant 0 : index
    %c0_40 = arith.constant 0 : index
    %49 = vector.load %arg14[%c0_39, %c0_40] : memref<1x32xf32, #tpu.memory_space<vmem>>, vector<1x32xf32>
    "tpu.trace_start"() <{level = 10 : i32, message = "gkc,cd->gkd"}> : () -> ()
    %cst_41 = arith.constant dense<0.000000e+00> : vector<32x16x32xf32>
    %50 = tpu.matmul %47, %48, %cst_41 {dimension_numbers = #tpu.dot_dimension_numbers<[2], [0], [0, 1], [1], [0, 0, 0, 1, 1, 1], [], []>} : vector<32x16x16xbf16>, vector<16x32xbf16>, vector<32x16x32xf32> -> vector<32x16x32xf32>
    "tpu.trace_stop"() : () -> ()
    %51 = vector.shape_cast %49 : vector<1x32xf32> to vector<1x1x32xf32>
    %52 = vector.broadcast %51 : vector<1x1x32xf32> to vector<32x16x32xf32>
    %53 = arith.addf %50, %52 : vector<32x16x32xf32>
    %cst_42 = arith.constant 0.000000e+00 : f32
    %54 = vector.broadcast %cst_42 : f32 to vector<32x16x32xf32>
    %55 = arith.maximumf %53, %54 : vector<32x16x32xf32>
    %cst_43 = arith.constant dense<0xFF800000> : vector<32x32xf32>
    %56 = vector.multi_reduction <maximumf>, %55, %cst_43 [1] : vector<32x16x32xf32> to vector<32x32xf32>
    %c0_44 = arith.constant 0 : index
    %c32 = arith.constant 32 : index
    %57 = vector.load %arg15[%c0_44, %c32] : memref<32x64xf32, #tpu.memory_space<vmem>>, vector<32x32xf32>
    tpu.vector_store %arg15[%c0_44, %c32], %56 {strides = array<i32>} : memref<32x64xf32, #tpu.memory_space<vmem>>, vector<32x32xf32>,
    return
  }
  func.func @transform_0(%arg0: i32) -> (i32, i32, i32) {
    %c0_i32 = arith.constant 0 : i32
    %c0_i32_0 = arith.constant 0 : i32
    %c0_i32_1 = arith.constant 0 : i32
    return %arg0, %c0_i32, %c0_i32_0 : i32, i32, i32
  }
  func.func @transform_1(%arg0: i32) -> (i32, i32, i32) {
    %c0_i32 = arith.constant 0 : i32
    %c0_i32_0 = arith.constant 0 : i32
    %c0_i32_1 = arith.constant 0 : i32
    return %arg0, %c0_i32, %c0_i32_0 : i32, i32, i32
  }
  func.func @transform_2(%arg0: i32) -> (i32, i32) {
    %c0_i32 = arith.constant 0 : i32
    %c0_i32_0 = arith.constant 0 : i32
    %c0_i32_1 = arith.constant 0 : i32
    return %c0_i32, %c0_i32_0 : i32, i32
  }
  func.func @transform_3(%arg0: i32) -> (i32, i32) {
    %c0_i32 = arith.constant 0 : i32
    %c0_i32_0 = arith.constant 0 : i32
    %c0_i32_1 = arith.constant 0 : i32
    return %c0_i32, %c0_i32_0 : i32, i32
  }
  func.func @transform_4(%arg0: i32) -> (i32, i32) {
    %c0_i32 = arith.constant 0 : i32
    %c0_i32_0 = arith.constant 0 : i32
    %c0_i32_1 = arith.constant 0 : i32
    return %c0_i32, %c0_i32_0 : i32, i32
  }
  func.func @transform_5(%arg0: i32) -> (i32, i32) {
    %c0_i32 = arith.constant 0 : i32
    %c0_i32_0 = arith.constant 0 : i32
    %c0_i32_1 = arith.constant 0 : i32
    return %c0_i32, %c0_i32_0 : i32, i32
  }
  func.func @transform_6(%arg0: i32) -> (i32, i32) {
    %c0_i32 = arith.constant 0 : i32
    %c0_i32_0 = arith.constant 0 : i32
    %c0_i32_1 = arith.constant 0 : i32
    return %c0_i32, %c0_i32_0 : i32, i32
  }
  func.func @transform_7(%arg0: i32) -> (i32, i32) {
    %c0_i32 = arith.constant 0 : i32
    %c0_i32_0 = arith.constant 0 : i32
    %c0_i32_1 = arith.constant 0 : i32
    return %c0_i32, %c0_i32_0 : i32, i32
  }
  func.func @transform_8(%arg0: i32) -> (i32, i32) {
    %c0_i32 = arith.constant 0 : i32
    %c0_i32_0 = arith.constant 0 : i32
    %c0_i32_1 = arith.constant 0 : i32
    return %c0_i32, %c0_i32_0 : i32, i32
  }
  func.func @transform_9(%arg0: i32) -> (i32, i32) {
    %c0_i32 = arith.constant 0 : i32
    %c0_i32_0 = arith.constant 0 : i32
    %c0_i32_1 = arith.constant 0 : i32
    return %c0_i32, %c0_i32_0 : i32, i32
  }
  func.func @transform_10(%arg0: i32) -> (i32, i32) {
    %c0_i32 = arith.constant 0 : i32
    %c0_i32_0 = arith.constant 0 : i32
    %c0_i32_1 = arith.constant 0 : i32
    return %c0_i32, %c0_i32_0 : i32, i32
  }
  func.func @transform_11(%arg0: i32) -> (i32, i32) {
    %c0_i32 = arith.constant 0 : i32
    %c0_i32_0 = arith.constant 0 : i32
    %c0_i32_1 = arith.constant 0 : i32
    return %c0_i32, %c0_i32_0 : i32, i32
  }
  func.func @transform_12(%arg0: i32) -> (i32, i32) {
    %c0_i32 = arith.constant 0 : i32
    %c0_i32_0 = arith.constant 0 : i32
    %c0_i32_1 = arith.constant 0 : i32
    return %c0_i32, %c0_i32_0 : i32, i32
  }
  func.func @transform_13(%arg0: i32) -> (i32, i32) {
    %c0_i32 = arith.constant 0 : i32
    %c0_i32_0 = arith.constant 0 : i32
    %c0_i32_1 = arith.constant 0 : i32
    return %c0_i32, %c0_i32_0 : i32, i32
  }
  func.func @transform_14(%arg0: i32) -> (i32, i32) {
    %c0_i32 = arith.constant 0 : i32
    %c0_i32_0 = arith.constant 0 : i32
    return %arg0, %c0_i32 : i32, i32
  }
}

</mosaic_0001>

<llo_original>
// kernel: tpu_custom_call.1
$region0: #{tpu_custom_call.1}
  #allocation0 [shape = 'u32[]', space=smem, size = 0x4, offset = 0x4, fixed_abs, tag = 'smem constant byte address 0x4 - core index']
  #allocation1 [shape = 'u32[72,128]{1,0:T(1,128)}', space=vmem, size = 0x9000, scoped, tag = 'internal scratch']
  %s0 = inlined_call_operand.vmem [shape: bf16[64,8,8], index: 0, kind: input, shape index: {}]
  %s1 = inlined_call_operand.vmem [shape: bf16[64,16,8], index: 1, kind: input, shape index: {}]
  %s2 = inlined_call_operand.vmem [shape: bf16[8,16], index: 2, kind: input, shape index: {}]
  %s3 = inlined_call_operand.vmem [shape: f32[1,16], index: 3, kind: input, shape index: {}]
  %s4 = inlined_call_operand.vmem [shape: bf16[16,16], index: 4, kind: input, shape index: {}]
  %s5 = inlined_call_operand.vmem [shape: f32[1,16], index: 5, kind: input, shape index: {}]
  %s6 = inlined_call_operand.vmem [shape: bf16[16,32], index: 6, kind: input, shape index: {}]
  %s7 = inlined_call_operand.vmem [shape: f32[1,32], index: 7, kind: input, shape index: {}]
  %s8 = inlined_call_operand.vmem [shape: bf16[8,16], index: 8, kind: input, shape index: {}]
  %s9 = inlined_call_operand.vmem [shape: f32[1,16], index: 9, kind: input, shape index: {}]
  %s10 = inlined_call_operand.vmem [shape: bf16[16,16], index: 10, kind: input, shape index: {}]
  %s11 = inlined_call_operand.vmem [shape: f32[1,16], index: 11, kind: input, shape index: {}]
  %s12 = inlined_call_operand.vmem [shape: bf16[16,32], index: 12, kind: input, shape index: {}]
  %s13 = inlined_call_operand.vmem [shape: f32[1,32], index: 13, kind: input, shape index: {}]
  %s14 = inlined_call_operand.hbm [shape: f32[64,64], index: 14, kind: output, shape index: {}]
  %s15 = sld [smem:[#allocation0]]
  $region89: #{tpu_custom_call.1} parent=0
    _
  %s17 = ssub.s32 1, %s15
  %s18 = scalar_select 0, %s17, %s15
  $region1: #{tpu_custom_call.1} parent=0
    #allocation2 [shape = 'u8[32768]{0}', space=vmem, size = 0x8000, scoped, tag = 'output window, operand 0']
    #allocation3 [shape = 's32[2]{0}', space=sflag, size = 0x8, scoped, tag = 'scoped memory for tpu_custom_call.1']
    %19 = vsyncpa [#allocation3], 0
    %s20 = scalar_lea.sflag [#allocation3], 1
    %21 = vsyncpa %s20, 0
    loop: start=0, step=1, limit=4
    $region2: #{tpu_custom_call.1} parent=1 // loop_pre_header
      _
    $region3: #{tpu_custom_call.1} parent=1 // loop_header
      %s23 = sphi 0, %s27
      %p24 = scmp.ge.s32.totalorder %s23, 4
      %s33 = sphi 0, %s35
      %s36 = sphi 0, %s33
      %s37 = sphi 0, %s36
      %s53 = sphi 0, %s37
      %s59 = sphi 0, %s61
      %s62 = sphi 0, %s59
      %s63 = sphi 0, %s62
      %s79 = sphi 0, %s63
      %s83 = sphi 0, %s83
      %s85 = sphi 0, %s83
      %s86 = sphi 0, %s85
      %s100 = sphi 0, %s86
      %s104 = sphi 0, %s104
      %s106 = sphi 0, %s104
      %s107 = sphi 0, %s106
      %s121 = sphi 0, %s107
      %s125 = sphi 0, %s125
      %s127 = sphi 0, %s125
      %s128 = sphi 0, %s127
      %s142 = sphi 0, %s128
      %s146 = sphi 0, %s146
      %s148 = sphi 0, %s146
      %s149 = sphi 0, %s148
      %s163 = sphi 0, %s149
      %s167 = sphi 0, %s167
      %s169 = sphi 0, %s167
      %s170 = sphi 0, %s169
      %s184 = sphi 0, %s170
      %s188 = sphi 0, %s188
      %s190 = sphi 0, %s188
      %s191 = sphi 0, %s190
      %s205 = sphi 0, %s191
      %s209 = sphi 0, %s209
      %s211 = sphi 0, %s209
      %s212 = sphi 0, %s211
      %s226 = sphi 0, %s212
      %s230 = sphi 0, %s230
      %s232 = sphi 0, %s230
      %s233 = sphi 0, %s232
      %s247 = sphi 0, %s233
      %s251 = sphi 0, %s251
      %s253 = sphi 0, %s251
      %s254 = sphi 0, %s253
      %s268 = sphi 0, %s254
      %s272 = sphi 0, %s272
      %s274 = sphi 0, %s272
      %s275 = sphi 0, %s274
      %s289 = sphi 0, %s275
      %s293 = sphi 0, %s293
      %s295 = sphi 0, %s293
      %s296 = sphi 0, %s295
      %s310 = sphi 0, %s296
      %s314 = sphi 0, %s314
      %s316 = sphi 0, %s314
      %s317 = sphi 0, %s316
      %s331 = sphi 0, %s317
      %s337 = sphi 0, %s339
      %s340 = sphi 0, %s337
      %s341 = sphi 0, %s340
      %s357 = sphi 0, %s341
    $region4: #{tpu_custom_call.1} parent=1 // loop_header_branch
      %26 = sbr.rel (%p24) target = $region8
    $region5: #{tpu_custom_call.1} parent=1 // loop_body
      %s28 = ssub.s32 %s23, 1
      %s29 = ssub.s32 %s23, 2
      %s30 = sadd.s32 %s23, 1
      %s31 = ssub.s32 %s23, %s30
      %p32 = scmp.eq.s32.totalorder %s31, 0
      %s34 = sadd.s32 %s33, 1
      %s35 = scalar_select %p32, %s33, %s34
      %p38 = pneg %p32
      %p39 = scmp.eq.s32.totalorder %s23, 1
      %p40 = por %p38, %p39
      %p41 = scmp.ne.s32.totalorder %s33, %s36
      %p42 = scmp.eq.s32.totalorder %s23, 0
      %p43 = por %p41, %p42
      %p44 = scmp.ne.s32.totalorder %s33, %s36
      %p45 = scmp.eq.s32.totalorder %s28, 1
      %p46 = por %p44, %p45
      %p47 = scmp.ne.s32.totalorder %s36, %s37
      %p48 = scmp.eq.s32.totalorder %s28, 0
      %p49 = por %p47, %p48
      %p50 = scmp.ne.s32.totalorder %s36, %s37
      %p51 = scmp.eq.s32.totalorder %s29, 1
      %p52 = por %p50, %p51
      %p54 = scmp.ne.s32.totalorder %s37, %s53
      %p55 = scmp.eq.s32.totalorder %s29, 0
      %p56 = por %p54, %p55
      %s57 = ssub.s32 %s23, %s30
      %p58 = scmp.eq.s32.totalorder %s57, 0
      %s60 = sadd.s32 %s59, 1
      %s61 = scalar_select %p58, %s59, %s60
      %p64 = pneg %p58
      %p65 = scmp.eq.s32.totalorder %s23, 1
      %p66 = por %p64, %p65
      %p67 = scmp.ne.s32.totalorder %s59, %s62
      %p68 = scmp.eq.s32.totalorder %s23, 0
      %p69 = por %p67, %p68
      %p70 = scmp.ne.s32.totalorder %s59, %s62
      %p71 = scmp.eq.s32.totalorder %s28, 1
      %p72 = por %p70, %p71
      %p73 = scmp.ne.s32.totalorder %s62, %s63
      %p74 = scmp.eq.s32.totalorder %s28, 0
      %p75 = por %p73, %p74
      %p76 = scmp.ne.s32.totalorder %s62, %s63
      %p77 = scmp.eq.s32.totalorder %s29, 1
      %p78 = por %p76, %p77
      %p80 = scmp.ne.s32.totalorder %s63, %s79
      %p81 = scmp.eq.s32.totalorder %s29, 0
      %p82 = por %p80, %p81
      %s84 = sadd.s32 %s83, 1
      %p87 = scmp.eq.s32.totalorder %s23, 1
      %p88 = scmp.ne.s32.totalorder %s83, %s85
      %p89 = scmp.eq.s32.totalorder %s23, 0
      %p90 = por %p88, %p89
      %p91 = scmp.ne.s32.totalorder %s83, %s85
      %p92 = scmp.eq.s32.totalorder %s28, 1
      %p93 = por %p91, %p92
      %p94 = scmp.ne.s32.totalorder %s85, %s86
      %p95 = scmp.eq.s32.totalorder %s28, 0
      %p96 = por %p94, %p95
      %p97 = scmp.ne.s32.totalorder %s85, %s86
      %p98 = scmp.eq.s32.totalorder %s29, 1
      %p99 = por %p97, %p98
      %p101 = scmp.ne.s32.totalorder %s86, %s100
      %p102 = scmp.eq.s32.totalorder %s29, 0
      %p103 = por %p101, %p102
      %s105 = sadd.s32 %s104, 1
      %p108 = scmp.eq.s32.totalorder %s23, 1
      %p109 = scmp.ne.s32.totalorder %s104, %s106
      %p110 = scmp.eq.s32.totalorder %s23, 0
      %p111 = por %p109, %p110
      %p112 = scmp.ne.s32.totalorder %s104, %s106
      %p113 = scmp.eq.s32.totalorder %s28, 1
      %p114 = por %p112, %p113
      %p115 = scmp.ne.s32.totalorder %s106, %s107
      %p116 = scmp.eq.s32.totalorder %s28, 0
      %p117 = por %p115, %p116
      %p118 = scmp.ne.s32.totalorder %s106, %s107
      %p119 = scmp.eq.s32.totalorder %s29, 1
      %p120 = por %p118, %p119
      %p122 = scmp.ne.s32.totalorder %s107, %s121
      %p123 = scmp.eq.s32.totalorder %s29, 0
      %p124 = por %p122, %p123
      %s126 = sadd.s32 %s125, 1
      %p129 = scmp.eq.s32.totalorder %s23, 1
      %p130 = scmp.ne.s32.totalorder %s125, %s127
      %p131 = scmp.eq.s32.totalorder %s23, 0
      %p132 = por %p130, %p131
      %p133 = scmp.ne.s32.totalorder %s125, %s127
      %p134 = scmp.eq.s32.totalorder %s28, 1
      %p135 = por %p133, %p134
      %p136 = scmp.ne.s32.totalorder %s127, %s128
      %p137 = scmp.eq.s32.totalorder %s28, 0
      %p138 = por %p136, %p137
      %p139 = scmp.ne.s32.totalorder %s127, %s128
      %p140 = scmp.eq.s32.totalorder %s29, 1
      %p141 = por %p139, %p140
      %p143 = scmp.ne.s32.totalorder %s128, %s142
      %p144 = scmp.eq.s32.totalorder %s29, 0
      %p145 = por %p143, %p144
      %s147 = sadd.s32 %s146, 1
      %p150 = scmp.eq.s32.totalorder %s23, 1
      %p151 = scmp.ne.s32.totalorder %s146, %s148
      %p152 = scmp.eq.s32.totalorder %s23, 0
      %p153 = por %p151, %p152
      %p154 = scmp.ne.s32.totalorder %s146, %s148
      %p155 = scmp.eq.s32.totalorder %s28, 1
      %p156 = por %p154, %p155
      %p157 = scmp.ne.s32.totalorder %s148, %s149
      %p158 = scmp.eq.s32.totalorder %s28, 0
      %p159 = por %p157, %p158
      %p160 = scmp.ne.s32.totalorder %s148, %s149
      %p161 = scmp.eq.s32.totalorder %s29, 1
      %p162 = por %p160, %p161
      %p164 = scmp.ne.s32.totalorder %s149, %s163
      %p165 = scmp.eq.s32.totalorder %s29, 0
      %p166 = por %p164, %p165
      %s168 = sadd.s32 %s167, 1
      %p171 = scmp.eq.s32.totalorder %s23, 1
      %p172 = scmp.ne.s32.totalorder %s167, %s169
      %p173 = scmp.eq.s32.totalorder %s23, 0
      %p174 = por %p172, %p173
      %p175 = scmp.ne.s32.totalorder %s167, %s169
      %p176 = scmp.eq.s32.totalorder %s28, 1
      %p177 = por %p175, %p176
      %p178 = scmp.ne.s32.totalorder %s169, %s170
      %p179 = scmp.eq.s32.totalorder %s28, 0
      %p180 = por %p178, %p179
      %p181 = scmp.ne.s32.totalorder %s169, %s170
      %p182 = scmp.eq.s32.totalorder %s29, 1
      %p183 = por %p181, %p182
      %p185 = scmp.ne.s32.totalorder %s170, %s184
      %p186 = scmp.eq.s32.totalorder %s29, 0
      %p187 = por %p185, %p186
      %s189 = sadd.s32 %s188, 1
      %p192 = scmp.eq.s32.totalorder %s23, 1
      %p193 = scmp.ne.s32.totalorder %s188, %s190
      %p194 = scmp.eq.s32.totalorder %s23, 0
      %p195 = por %p193, %p194
      %p196 = scmp.ne.s32.totalorder %s188, %s190
      %p197 = scmp.eq.s32.totalorder %s28, 1
      %p198 = por %p196, %p197
      %p199 = scmp.ne.s32.totalorder %s190, %s191
      %p200 = scmp.eq.s32.totalorder %s28, 0
      %p201 = por %p199, %p200
      %p202 = scmp.ne.s32.totalorder %s190, %s191
      %p203 = scmp.eq.s32.totalorder %s29, 1
      %p204 = por %p202, %p203
      %p206 = scmp.ne.s32.totalorder %s191, %s205
      %p207 = scmp.eq.s32.totalorder %s29, 0
      %p208 = por %p206, %p207
      %s210 = sadd.s32 %s209, 1
      %p213 = scmp.eq.s32.totalorder %s23, 1
      %p214 = scmp.ne.s32.totalorder %s209, %s211
      %p215 = scmp.eq.s32.totalorder %s23, 0
      %p216 = por %p214, %p215
      %p217 = scmp.ne.s32.totalorder %s209, %s211
      %p218 = scmp.eq.s32.totalorder %s28, 1
      %p219 = por %p217, %p218
      %p220 = scmp.ne.s32.totalorder %s211, %s212
      %p221 = scmp.eq.s32.totalorder %s28, 0
      %p222 = por %p220, %p221
      %p223 = scmp.ne.s32.totalorder %s211, %s212
      %p224 = scmp.eq.s32.totalorder %s29, 1
      %p225 = por %p223, %p224
      %p227 = scmp.ne.s32.totalorder %s212, %s226
      %p228 = scmp.eq.s32.totalorder %s29, 0
      %p229 = por %p227, %p228
      %s231 = sadd.s32 %s230, 1
      %p234 = scmp.eq.s32.totalorder %s23, 1
      %p235 = scmp.ne.s32.totalorder %s230, %s232
      %p236 = scmp.eq.s32.totalorder %s23, 0
      %p237 = por %p235, %p236
      %p238 = scmp.ne.s32.totalorder %s230, %s232
      %p239 = scmp.eq.s32.totalorder %s28, 1
      %p240 = por %p238, %p239
      %p241 = scmp.ne.s32.totalorder %s232, %s233
      %p242 = scmp.eq.s32.totalorder %s28, 0
      %p243 = por %p241, %p242
      %p244 = scmp.ne.s32.totalorder %s232, %s233
      %p245 = scmp.eq.s32.totalorder %s29, 1
      %p246 = por %p244, %p245
      %p248 = scmp.ne.s32.totalorder %s233, %s247
      %p249 = scmp.eq.s32.totalorder %s29, 0
      %p250 = por %p248, %p249
      %s252 = sadd.s32 %s251, 1
      %p255 = scmp.eq.s32.totalorder %s23, 1
      %p256 = scmp.ne.s32.totalorder %s251, %s253
      %p257 = scmp.eq.s32.totalorder %s23, 0
      %p258 = por %p256, %p257
      %p259 = scmp.ne.s32.totalorder %s251, %s253
      %p260 = scmp.eq.s32.totalorder %s28, 1
      %p261 = por %p259, %p260
      %p262 = scmp.ne.s32.totalorder %s253, %s254
      %p263 = scmp.eq.s32.totalorder %s28, 0
      %p264 = por %p262, %p263
      %p265 = scmp.ne.s32.totalorder %s253, %s254
      %p266 = scmp.eq.s32.totalorder %s29, 1
      %p267 = por %p265, %p266
      %p269 = scmp.ne.s32.totalorder %s254, %s268
      %p270 = scmp.eq.s32.totalorder %s29, 0
      %p271 = por %p269, %p270
      %s273 = sadd.s32 %s272, 1
      %p276 = scmp.eq.s32.totalorder %s23, 1
      %p277 = scmp.ne.s32.totalorder %s272, %s274
      %p278 = scmp.eq.s32.totalorder %s23, 0
      %p279 = por %p277, %p278
      %p280 = scmp.ne.s32.totalorder %s272, %s274
      %p281 = scmp.eq.s32.totalorder %s28, 1
      %p282 = por %p280, %p281
      %p283 = scmp.ne.s32.totalorder %s274, %s275
      %p284 = scmp.eq.s32.totalorder %s28, 0
      %p285 = por %p283, %p284
      %p286 = scmp.ne.s32.totalorder %s274, %s275
      %p287 = scmp.eq.s32.totalorder %s29, 1
      %p288 = por %p286, %p287
      %p290 = scmp.ne.s32.totalorder %s275, %s289
      %p291 = scmp.eq.s32.totalorder %s29, 0
      %p292 = por %p290, %p291
      %s294 = sadd.s32 %s293, 1
      %p297 = scmp.eq.s32.totalorder %s23, 1
      %p298 = scmp.ne.s32.totalorder %s293, %s295
      %p299 = scmp.eq.s32.totalorder %s23, 0
      %p300 = por %p298, %p299
      %p301 = scmp.ne.s32.totalorder %s293, %s295
      %p302 = scmp.eq.s32.totalorder %s28, 1
      %p303 = por %p301, %p302
      %p304 = scmp.ne.s32.totalorder %s295, %s296
      %p305 = scmp.eq.s32.totalorder %s28, 0
      %p306 = por %p304, %p305
      %p307 = scmp.ne.s32.totalorder %s295, %s296
      %p308 = scmp.eq.s32.totalorder %s29, 1
      %p309 = por %p307, %p308
      %p311 = scmp.ne.s32.totalorder %s296, %s310
      %p312 = scmp.eq.s32.totalorder %s29, 0
      %p313 = por %p311, %p312
      %s315 = sadd.s32 %s314, 1
      %p318 = scmp.eq.s32.totalorder %s23, 1
      %p319 = scmp.ne.s32.totalorder %s314, %s316
      %p320 = scmp.eq.s32.totalorder %s23, 0
      %p321 = por %p319, %p320
      %p322 = scmp.ne.s32.totalorder %s314, %s316
      %p323 = scmp.eq.s32.totalorder %s28, 1
      %p324 = por %p322, %p323
      %p325 = scmp.ne.s32.totalorder %s316, %s317
      %p326 = scmp.eq.s32.totalorder %s28, 0
      %p327 = por %p325, %p326
      %p328 = scmp.ne.s32.totalorder %s316, %s317
      %p329 = scmp.eq.s32.totalorder %s29, 1
      %p330 = por %p328, %p329
      %p332 = scmp.ne.s32.totalorder %s317, %s331
      %p333 = scmp.eq.s32.totalorder %s29, 0
      %p334 = por %p332, %p333
      %s335 = ssub.s32 %s23, %s30
      %p336 = scmp.eq.s32.totalorder %s335, 0
      %s338 = sadd.s32 %s337, 1
      %s339 = scalar_select %p336, %s337, %s338
      %p342 = pneg %p336
      %p343 = scmp.eq.s32.totalorder %s23, 1
      %p344 = por %p342, %p343
      %p345 = scmp.ne.s32.totalorder %s337, %s340
      %p346 = scmp.eq.s32.totalorder %s23, 0
      %p347 = por %p345, %p346
      %p348 = scmp.ne.s32.totalorder %s337, %s340
      %p349 = scmp.eq.s32.totalorder %s28, 1
      %p350 = por %p348, %p349
      %p351 = scmp.ne.s32.totalorder %s340, %s341
      %p352 = scmp.eq.s32.totalorder %s28, 0
      %p353 = por %p351, %p352
      %p354 = scmp.ne.s32.totalorder %s340, %s341
      %p355 = scmp.eq.s32.totalorder %s29, 1
      %p356 = por %p354, %p355
      %p358 = scmp.ne.s32.totalorder %s341, %s357
      %p359 = scmp.eq.s32.totalorder %s29, 0
      %p360 = por %p358, %p359
      %p361 = scmp.le.s32.totalorder 1, %s23
      %p362 = scmp.lt.s32.totalorder %s23, 3
      %p363 = pnand %p361, %p362
      %p364 = pneg %p363
      // Predicated region
      $region9: #{tpu_custom_call.1} parent=5 // pred_check
        _
      $region10: #{tpu_custom_call.1} parent=5 // pred_check_branch
        %366 = sbr.rel (%p363) target = $region12
      $region11: #{tpu_custom_call.1} parent=5 // pred_region
        %s367 = ssub.s32 %s23, 1
        // Predicated region
        $region13: #{tpu_custom_call.1} parent=11 // pred_check
          %p368 = pneg %p96
        $region14: #{tpu_custom_call.1} parent=11 // pred_check_branch
          %370 = sbr.rel (%p368) target = $region16
        $region15: #{tpu_custom_call.1} parent=11 // pred_region
          _
        $region16: #{tpu_custom_call.1} parent=11 // pred_fallthru
          _
        // Predicated region
        $region17: #{tpu_custom_call.1} parent=11 // pred_check
          %p371 = pneg %p117
        $region18: #{tpu_custom_call.1} parent=11 // pred_check_branch
          %373 = sbr.rel (%p371) target = $region20
        $region19: #{tpu_custom_call.1} parent=11 // pred_region
          _
        $region20: #{tpu_custom_call.1} parent=11 // pred_fallthru
          _
        // Predicated region
        $region21: #{tpu_custom_call.1} parent=11 // pred_check
          %p374 = pneg %p138
        $region22: #{tpu_custom_call.1} parent=11 // pred_check_branch
          %376 = sbr.rel (%p374) target = $region24
        $region23: #{tpu_custom_call.1} parent=11 // pred_region
          _
        $region24: #{tpu_custom_call.1} parent=11 // pred_fallthru
          _
        // Predicated region
        $region25: #{tpu_custom_call.1} parent=11 // pred_check
          %p377 = pneg %p159
        $region26: #{tpu_custom_call.1} parent=11 // pred_check_branch
          %379 = sbr.rel (%p377) target = $region28
        $region27: #{tpu_custom_call.1} parent=11 // pred_region
          _
        $region28: #{tpu_custom_call.1} parent=11 // pred_fallthru
          _
        // Predicated region
        $region29: #{tpu_custom_call.1} parent=11 // pred_check
          %p380 = pneg %p180
        $region30: #{tpu_custom_call.1} parent=11 // pred_check_branch
          %382 = sbr.rel (%p380) target = $region32
        $region31: #{tpu_custom_call.1} parent=11 // pred_region
          _
        $region32: #{tpu_custom_call.1} parent=11 // pred_fallthru
          _
        // Predicated region
        $region33: #{tpu_custom_call.1} parent=11 // pred_check
          %p383 = pneg %p201
        $region34: #{tpu_custom_call.1} parent=11 // pred_check_branch
          %385 = sbr.rel (%p383) target = $region36
        $region35: #{tpu_custom_call.1} parent=11 // pred_region
          _
        $region36: #{tpu_custom_call.1} parent=11 // pred_fallthru
          _
        // Predicated region
        $region37: #{tpu_custom_call.1} parent=11 // pred_check
          %p386 = pneg %p222
        $region38: #{tpu_custom_call.1} parent=11 // pred_check_branch
          %388 = sbr.rel (%p386) target = $region40
        $region39: #{tpu_custom_call.1} parent=11 // pred_region
          _
        $region40: #{tpu_custom_call.1} parent=11 // pred_fallthru
          _
        // Predicated region
        $region41: #{tpu_custom_call.1} parent=11 // pred_check
          %p389 = pneg %p243
        $region42: #{tpu_custom_call.1} parent=11 // pred_check_branch
          %391 = sbr.rel (%p389) target = $region44
        $region43: #{tpu_custom_call.1} parent=11 // pred_region
          _
        $region44: #{tpu_custom_call.1} parent=11 // pred_fallthru
          _
        // Predicated region
        $region45: #{tpu_custom_call.1} parent=11 // pred_check
          %p392 = pneg %p264
        $region46: #{tpu_custom_call.1} parent=11 // pred_check_branch
          %394 = sbr.rel (%p392) target = $region48
        $region47: #{tpu_custom_call.1} parent=11 // pred_region
          _
        $region48: #{tpu_custom_call.1} parent=11 // pred_fallthru
          _
        // Predicated region
        $region49: #{tpu_custom_call.1} parent=11 // pred_check
          %p395 = pneg %p285
        $region50: #{tpu_custom_call.1} parent=11 // pred_check_branch
          %397 = sbr.rel (%p395) target = $region52
        $region51: #{tpu_custom_call.1} parent=11 // pred_region
          _
        $region52: #{tpu_custom_call.1} parent=11 // pred_fallthru
          _
        // Predicated region
        $region53: #{tpu_custom_call.1} parent=11 // pred_check
          %p398 = pneg %p306
        $region54: #{tpu_custom_call.1} parent=11 // pred_check_branch
          %400 = sbr.rel (%p398) target = $region56
        $region55: #{tpu_custom_call.1} parent=11 // pred_region
          _
        $region56: #{tpu_custom_call.1} parent=11 // pred_fallthru
          _
        // Predicated region
        $region57: #{tpu_custom_call.1} parent=11 // pred_check
          %p401 = pneg %p327
        $region58: #{tpu_custom_call.1} parent=11 // pred_check_branch
          %403 = sbr.rel (%p401) target = $region60
        $region59: #{tpu_custom_call.1} parent=11 // pred_region
          _
        $region60: #{tpu_custom_call.1} parent=11 // pred_fallthru
          _
      $region12: #{tpu_custom_call.1} parent=5 // pred_fallthru
        _
      %p404 = scmp.lt.s32.totalorder %s23, 2
      // Predicated region
      $region61: #{tpu_custom_call.1} parent=5 // pred_check
        %p405 = pneg %p404
      $region62: #{tpu_custom_call.1} parent=5 // pred_check_branch
        %407 = sbr.rel (%p405) target = $region64
      $region63: #{tpu_custom_call.1} parent=5 // pred_region
        // Predicated region
        $region65: #{tpu_custom_call.1} parent=63 // pred_check
          %p408 = pneg %p43
        $region66: #{tpu_custom_call.1} parent=63 // pred_check_branch
          %410 = sbr.rel (%p408) target = $region68
        $region67: #{tpu_custom_call.1} parent=63 // pred_region
          %s411 = smul.u32 32, %s23
          %p412 = scmp.lt.s32.totalorder %s411, 63
          %s413 = scalar_select %p412, %s411, 63
          %s414 = smul.addr %s413, 4
          %s415 = scalar_lea.vmem %s0, %s414
          %s416 = smul.u32 32, %s23
        $region68: #{tpu_custom_call.1} parent=63 // pred_fallthru
          _
        // Predicated region
        $region69: #{tpu_custom_call.1} parent=63 // pred_check
          %p417 = pneg %p69
        $region70: #{tpu_custom_call.1} parent=63 // pred_check_branch
          %419 = sbr.rel (%p417) target = $region72
        $region71: #{tpu_custom_call.1} parent=63 // pred_region
          %s420 = smul.u32 32, %s23
          %p421 = scmp.lt.s32.totalorder %s420, 63
          %s422 = scalar_select %p421, %s420, 63
          %s423 = smul.addr %s422, 2
          %s424 = smul.addr %s423, 4
          %s425 = scalar_lea.vmem %s1, %s424
          %s426 = smul.u32 32, %s23
        $region72: #{tpu_custom_call.1} parent=63 // pred_fallthru
          _
      $region64: #{tpu_custom_call.1} parent=5 // pred_fallthru
        _
      %p427 = scmp.le.s32.totalorder 1, %s23
      %p428 = scmp.lt.s32.totalorder %s23, 3
      %p429 = pnand %p427, %p428
      %p430 = pneg %p429
      // Predicated region
      $region73: #{tpu_custom_call.1} parent=5 // pred_check
        _
      $region74: #{tpu_custom_call.1} parent=5 // pred_check_branch
        %432 = sbr.rel (%p429) target = $region76
      $region75: #{tpu_custom_call.1} parent=5 // pred_region
        %s433 = ssub.s32 %s23, 1
        %s434 = smul.u32 32, %s28
        %p435 = scmp.lt.s32.totalorder %s434, 63
        %s436 = scalar_select %p435, %s434, 63
        %s437 = smul.addr %s436, 4
        %s438 = scalar_lea.vmem %s0, %s437
        %p439 = pneg %p49
        %p440 = pneg %p46
        %s441 = smul.u32 32, %s28
        %p442 = scmp.lt.s32.totalorder %s441, 63
        %s443 = scalar_select %p442, %s441, 63
        %s444 = smul.addr %s443, 2
        %s445 = smul.addr %s444, 4
        %s446 = scalar_lea.vmem %s1, %s445
        %p447 = pneg %p75
        %p448 = pneg %p72
        %p449 = pneg %p96
        %p450 = pneg %p93
        %p451 = pneg %p117
        %p452 = pneg %p114
        %p453 = pneg %p138
        %p454 = pneg %p135
        %p455 = pneg %p159
        %p456 = pneg %p156
        %p457 = pneg %p180
        %p458 = pneg %p177
        %p459 = pneg %p201
        %p460 = pneg %p198
        %p461 = pneg %p222
        %p462 = pneg %p219
        %p463 = pneg %p243
        %p464 = pneg %p240
        %p465 = pneg %p264
        %p466 = pneg %p261
        %p467 = pneg %p285
        %p468 = pneg %p282
        %p469 = pneg %p306
        %p470 = pneg %p303
        %p471 = pneg %p327
        %p472 = pneg %p324
        %p473 = pneg %p353
        %p474 = pneg %p350
        %s475 = sand.u32 %s340, 1
        %s476 = scalar_lea.sflag [#allocation3], %s475
        %s477 = sand.u32 %s340, 1
        %s478 = smul.addr %s477, 32
        %s479 = scalar_lea.vmem [#allocation2], %s478
        %s480 = smul.u32 32, %s28
        %p481 = scmp.lt.s32.totalorder %s480, 63
        %s482 = scalar_select %p481, %s480, 63
        %s483 = smul.addr %s482, 4
        %s484 = scalar_lea.vmem %s0, %s483
        %s485 = smul.u32 32, %s28
        %s486 = smul.u32 32, %s28
        %p487 = scmp.lt.s32.totalorder %s486, 63
        %s488 = scalar_select %p487, %s486, 63
        %s489 = smul.addr %s488, 2
        %s490 = smul.addr %s489, 4
        %s491 = scalar_lea.vmem %s1, %s490
        %s492 = smul.u32 32, %s28
        %s493 = smul.u32 4, %s28
        %v495 = vld [vmem:[%s484] sm:$0xf]
        %v496 = vld [vmem:[%s484 + $0x4] sm:$0xf]
        %v497 = vld [vmem:[%s484 + $0x8] sm:$0xf]
        %v498 = vld [vmem:[%s484 + $0xc] sm:$0xf]
        %v499 = vld [vmem:[%s484 + $0x10] sm:$0xf]
        %v500 = vld [vmem:[%s484 + $0x14] sm:$0xf]
        %v501 = vld [vmem:[%s484 + $0x18] sm:$0xf]
        %v502 = vld [vmem:[%s484 + $0x1c] sm:$0xf]
        %v503 = vld [vmem:[%s484 + $0x20] sm:$0xf]
        %v504 = vld [vmem:[%s484 + $0x24] sm:$0xf]
        %v505 = vld [vmem:[%s484 + $0x28] sm:$0xf]
        %v506 = vld [vmem:[%s484 + $0x2c] sm:$0xf]
        %v507 = vld [vmem:[%s484 + $0x30] sm:$0xf]
        %v508 = vld [vmem:[%s484 + $0x34] sm:$0xf]
        %v509 = vld [vmem:[%s484 + $0x38] sm:$0xf]
        %v510 = vld [vmem:[%s484 + $0x3c] sm:$0xf]
        %v511 = vld [vmem:[%s484 + $0x40] sm:$0xf]
        %v512 = vld [vmem:[%s484 + $0x44] sm:$0xf]
        %v513 = vld [vmem:[%s484 + $0x48] sm:$0xf]
        %v514 = vld [vmem:[%s484 + $0x4c] sm:$0xf]
        %v515 = vld [vmem:[%s484 + $0x50] sm:$0xf]
        %v516 = vld [vmem:[%s484 + $0x54] sm:$0xf]
        %v517 = vld [vmem:[%s484 + $0x58] sm:$0xf]
        %v518 = vld [vmem:[%s484 + $0x5c] sm:$0xf]
        %v519 = vld [vmem:[%s484 + $0x60] sm:$0xf]
        %v520 = vld [vmem:[%s484 + $0x64] sm:$0xf]
        %v521 = vld [vmem:[%s484 + $0x68] sm:$0xf]
        %v522 = vld [vmem:[%s484 + $0x6c] sm:$0xf]
        %v523 = vld [vmem:[%s484 + $0x70] sm:$0xf]
        %v524 = vld [vmem:[%s484 + $0x74] sm:$0xf]
        %v525 = vld [vmem:[%s484 + $0x78] sm:$0xf]
        %v526 = vld [vmem:[%s484 + $0x7c] sm:$0xf]
        %v527 = vld [vmem:[%s2] sm:$0xf]
        %v528 = vld [vmem:[%s3] sm:$0x1]
        %v530 = vperm.slane %v528, 0
        %v564 = vunpack.c.l.b16 %v495
        %v565 = vunpack.c.l.b16 %v496
        %v566 = vunpack.c.l.b16 %v497
        %v567 = vunpack.c.l.b16 %v498
        %v568 = vunpack.c.l.b16 %v499
        %v569 = vunpack.c.l.b16 %v500
        %v570 = vunpack.c.l.b16 %v501
        %v571 = vunpack.c.l.b16 %v502
        %v572 = vunpack.c.l.b16 %v503
        %v573 = vunpack.c.l.b16 %v504
        %v574 = vunpack.c.l.b16 %v505
        %v575 = vunpack.c.l.b16 %v506
        %v576 = vunpack.c.l.b16 %v507
        %v577 = vunpack.c.l.b16 %v508
        %v578 = vunpack.c.l.b16 %v509
        %v579 = vunpack.c.l.b16 %v510
        %v580 = vunpack.c.l.b16 %v511
        %v581 = vunpack.c.l.b16 %v512
        %v582 = vunpack.c.l.b16 %v513
        %v583 = vunpack.c.l.b16 %v514
        %v584 = vunpack.c.l.b16 %v515
        %v585 = vunpack.c.l.b16 %v516
        %v586 = vunpack.c.l.b16 %v517
        %v587 = vunpack.c.l.b16 %v518
        %v588 = vunpack.c.l.b16 %v519
        %v589 = vunpack.c.l.b16 %v520
        %v590 = vunpack.c.l.b16 %v521
        %v591 = vunpack.c.l.b16 %v522
        %v592 = vunpack.c.l.b16 %v523
        %v593 = vunpack.c.l.b16 %v524
        %v594 = vunpack.c.l.b16 %v525
        %v595 = vunpack.c.l.b16 %v526
        %v596 = vpack.c.b16 %v565, %v564
        %v597 = vpack.c.b16 %v567, %v566
        %v598 = vpack.c.b16 %v569, %v568
        %v599 = vpack.c.b16 %v571, %v570
        %v600 = vpack.c.b16 %v573, %v572
        %v601 = vpack.c.b16 %v575, %v574
        %v602 = vpack.c.b16 %v577, %v576
        %v603 = vpack.c.b16 %v579, %v578
        %v604 = vpack.c.b16 %v581, %v580
        %v605 = vpack.c.b16 %v583, %v582
        %v606 = vpack.c.b16 %v585, %v584
        %v607 = vpack.c.b16 %v587, %v586
        %v608 = vpack.c.b16 %v589, %v588
        %v609 = vpack.c.b16 %v591, %v590
        %v610 = vpack.c.b16 %v593, %v592
        %v611 = vpack.c.b16 %v595, %v594
        %vm612 = vcmask 64512
        %v614 = vsel %vm612, %v596, 0
        %v617 = vsel %vm612, %v597, 0
        %v620 = vsel %vm612, %v598, 0
        %v623 = vsel %vm612, %v599, 0
        %v626 = vsel %vm612, %v600, 0
        %v629 = vsel %vm612, %v601, 0
        %v632 = vsel %vm612, %v602, 0
        %v635 = vsel %vm612, %v603, 0
        %v638 = vsel %vm612, %v604, 0
        %v641 = vsel %vm612, %v605, 0
        %v644 = vsel %vm612, %v606, 0
        %v647 = vsel %vm612, %v607, 0
        %v650 = vsel %vm612, %v608, 0
        %v653 = vsel %vm612, %v609, 0
        %v656 = vsel %vm612, %v610, 0
        %v659 = vsel %vm612, %v611, 0
        %vm661 = vcmask 1043456
        %v663 = vsel %vm661, %v527, 0
        %665 = vmatpush.bf16.msra.mxu0 0
        %666 = vmatpush.bf16.msra.mxu0 0
        %667 = vmatpush.bf16.msra.mxu0 0
        %668 = vmatpush.bf16.msra.mxu0 0
        %669 = vmatpush.bf16.msra.mxu0 0
        %670 = vmatpush.bf16.msra.mxu0 0
        %671 = vmatpush.bf16.msra.mxu0 0
        %672 = vmatpush.bf16.msra.mxu0 %v663
        %673 = vmatmul.bf16.gmra.mxu0 %v614
        %v674 = vpop.f32.mrf.mxu0
        %v675 = vadd.f32 %v530, %v674
        %v676 = vpop.f32.mrf.mxu0
        %v677 = vadd.f32 %v530, %v676
        %678 = vmatmul.bf16.gmra.mxu0 %v617
        %v679 = vpop.f32.mrf.mxu0
        %v680 = vadd.f32 %v530, %v679
        %v681 = vpop.f32.mrf.mxu0
        %v682 = vadd.f32 %v530, %v681
        %683 = vmatmul.bf16.gmra.mxu0 %v620
        %v684 = vpop.f32.mrf.mxu0
        %v685 = vadd.f32 %v530, %v684
        %v686 = vpop.f32.mrf.mxu0
        %v687 = vadd.f32 %v530, %v686
        %688 = vmatmul.bf16.gmra.mxu0 %v623
        %v689 = vpop.f32.mrf.mxu0
        %v690 = vadd.f32 %v530, %v689
        %v691 = vpop.f32.mrf.mxu0
        %v692 = vadd.f32 %v530, %v691
        %693 = vmatmul.bf16.gmra.mxu0 %v626
        %v694 = vpop.f32.mrf.mxu0
        %v695 = vadd.f32 %v530, %v694
        %v696 = vpop.f32.mrf.mxu0
        %v697 = vadd.f32 %v530, %v696
        %698 = vmatmul.bf16.gmra.mxu0 %v629
        %v699 = vpop.f32.mrf.mxu0
        %v700 = vadd.f32 %v530, %v699
        %v701 = vpop.f32.mrf.mxu0
        %v702 = vadd.f32 %v530, %v701
        %703 = vmatmul.bf16.gmra.mxu0 %v632
        %v704 = vpop.f32.mrf.mxu0
        %v705 = vadd.f32 %v530, %v704
        %v706 = vpop.f32.mrf.mxu0
        %v707 = vadd.f32 %v530, %v706
        %708 = vmatmul.bf16.gmra.mxu0 %v635
        %v709 = vpop.f32.mrf.mxu0
        %v710 = vadd.f32 %v530, %v709
        %v711 = vpop.f32.mrf.mxu0
        %v712 = vadd.f32 %v530, %v711
        %713 = vmatmul.bf16.gmra.mxu0 %v638
        %v714 = vpop.f32.mrf.mxu0
        %v715 = vadd.f32 %v530, %v714
        %v716 = vpop.f32.mrf.mxu0
        %v717 = vadd.f32 %v530, %v716
        %718 = vmatmul.bf16.gmra.mxu0 %v641
        %v719 = vpop.f32.mrf.mxu0
        %v720 = vadd.f32 %v530, %v719
        %v721 = vpop.f32.mrf.mxu0
        %v722 = vadd.f32 %v530, %v721
        %723 = vmatmul.bf16.gmra.mxu0 %v644
        %v724 = vpop.f32.mrf.mxu0
        %v725 = vadd.f32 %v530, %v724
        %v726 = vpop.f32.mrf.mxu0
        %v727 = vadd.f32 %v530, %v726
        %728 = vmatmul.bf16.gmra.mxu0 %v647
        %v729 = vpop.f32.mrf.mxu0
        %v730 = vadd.f32 %v530, %v729
        %v731 = vpop.f32.mrf.mxu0
        %v732 = vadd.f32 %v530, %v731
        %733 = vmatmul.bf16.gmra.mxu0 %v650
        %v734 = vpop.f32.mrf.mxu0
        %v735 = vadd.f32 %v530, %v734
        %v736 = vpop.f32.mrf.mxu0
        %v737 = vadd.f32 %v530, %v736
        %738 = vmatmul.bf16.gmra.mxu0 %v653
        %v739 = vpop.f32.mrf.mxu0
        %v740 = vadd.f32 %v530, %v739
        %v741 = vpop.f32.mrf.mxu0
        %v742 = vadd.f32 %v530, %v741
        %743 = vmatmul.bf16.gmra.mxu0 %v656
        %v744 = vpop.f32.mrf.mxu0
        %v745 = vadd.f32 %v530, %v744
        %v746 = vpop.f32.mrf.mxu0
        %v747 = vadd.f32 %v530, %v746
        %748 = vmatmul.bf16.gmra.mxu0 %v659
        %v749 = vpop.f32.mrf.mxu0
        %v750 = vadd.f32 %v530, %v749
        %v751 = vpop.f32.mrf.mxu0
        %v752 = vadd.f32 %v530, %v751
        %753 = vdwg.mxu0
        %v754 = vmax.f32 %v675, 0.0
        %v755 = vmax.f32 %v677, 0.0
        %v756 = vmax.f32 %v680, 0.0
        %v757 = vmax.f32 %v682, 0.0
        %v758 = vmax.f32 %v685, 0.0
        %v759 = vmax.f32 %v687, 0.0
        %v760 = vmax.f32 %v690, 0.0
        %v761 = vmax.f32 %v692, 0.0
        %v762 = vmax.f32 %v695, 0.0
        %v763 = vmax.f32 %v697, 0.0
        %v764 = vmax.f32 %v700, 0.0
        %v765 = vmax.f32 %v702, 0.0
        %v766 = vmax.f32 %v705, 0.0
        %v767 = vmax.f32 %v707, 0.0
        %v768 = vmax.f32 %v710, 0.0
        %v769 = vmax.f32 %v712, 0.0
        %v770 = vmax.f32 %v715, 0.0
        %v771 = vmax.f32 %v717, 0.0
        %v772 = vmax.f32 %v720, 0.0
        %v773 = vmax.f32 %v722, 0.0
        %v774 = vmax.f32 %v725, 0.0
        %v775 = vmax.f32 %v727, 0.0
        %v776 = vmax.f32 %v730, 0.0
        %v777 = vmax.f32 %v732, 0.0
        %v778 = vmax.f32 %v735, 0.0
        %v779 = vmax.f32 %v737, 0.0
        %v780 = vmax.f32 %v740, 0.0
        %v781 = vmax.f32 %v742, 0.0
        %v782 = vmax.f32 %v745, 0.0
        %v783 = vmax.f32 %v747, 0.0
        %v784 = vmax.f32 %v750, 0.0
        %v785 = vmax.f32 %v752, 0.0
        %v786 = vpack.c.bf16 %v754, %v754
        %v787 = vpack.c.bf16 %v755, %v755
        %v788 = vpack.c.bf16 %v756, %v756
        %v789 = vpack.c.bf16 %v757, %v757
        %v790 = vpack.c.bf16 %v758, %v758
        %v791 = vpack.c.bf16 %v759, %v759
        %v792 = vpack.c.bf16 %v760, %v760
        %v793 = vpack.c.bf16 %v761, %v761
        %v794 = vpack.c.bf16 %v762, %v762
        %v795 = vpack.c.bf16 %v763, %v763
        %v796 = vpack.c.bf16 %v764, %v764
        %v797 = vpack.c.bf16 %v765, %v765
        %v798 = vpack.c.bf16 %v766, %v766
        %v799 = vpack.c.bf16 %v767, %v767
        %v800 = vpack.c.bf16 %v768, %v768
        %v801 = vpack.c.bf16 %v769, %v769
        %v802 = vpack.c.bf16 %v770, %v770
        %v803 = vpack.c.bf16 %v771, %v771
        %v804 = vpack.c.bf16 %v772, %v772
        %v805 = vpack.c.bf16 %v773, %v773
        %v806 = vpack.c.bf16 %v774, %v774
        %v807 = vpack.c.bf16 %v775, %v775
        %v808 = vpack.c.bf16 %v776, %v776
        %v809 = vpack.c.bf16 %v777, %v777
        %v810 = vpack.c.bf16 %v778, %v778
        %v811 = vpack.c.bf16 %v779, %v779
        %v812 = vpack.c.bf16 %v780, %v780
        %v813 = vpack.c.bf16 %v781, %v781
        %v814 = vpack.c.bf16 %v782, %v782
        %v815 = vpack.c.bf16 %v783, %v783
        %v816 = vpack.c.bf16 %v784, %v784
        %v817 = vpack.c.bf16 %v785, %v785
        %v818 = vld [vmem:[%s4] sm:$0xf]
        %v819 = vld [vmem:[%s4 + $0x4] sm:$0xf]
        %v820 = vld [vmem:[%s5] sm:$0x1]
        %v822 = vperm.slane %v820, 0
        %v856 = vunpack.c.l.b16 %v786
        %v857 = vunpack.c.l.b16 %v787
        %v858 = vunpack.c.l.b16 %v788
        %v859 = vunpack.c.l.b16 %v789
        %v860 = vunpack.c.l.b16 %v790
        %v861 = vunpack.c.l.b16 %v791
        %v862 = vunpack.c.l.b16 %v792
        %v863 = vunpack.c.l.b16 %v793
        %v864 = vunpack.c.l.b16 %v794
        %v865 = vunpack.c.l.b16 %v795
        %v866 = vunpack.c.l.b16 %v796
        %v867 = vunpack.c.l.b16 %v797
        %v868 = vunpack.c.l.b16 %v798
        %v869 = vunpack.c.l.b16 %v799
        %v870 = vunpack.c.l.b16 %v800
        %v871 = vunpack.c.l.b16 %v801
        %v872 = vunpack.c.l.b16 %v802
        %v873 = vunpack.c.l.b16 %v803
        %v874 = vunpack.c.l.b16 %v804
        %v875 = vunpack.c.l.b16 %v805
        %v876 = vunpack.c.l.b16 %v806
        %v877 = vunpack.c.l.b16 %v807
        %v878 = vunpack.c.l.b16 %v808
        %v879 = vunpack.c.l.b16 %v809
        %v880 = vunpack.c.l.b16 %v810
        %v881 = vunpack.c.l.b16 %v811
        %v882 = vunpack.c.l.b16 %v812
        %v883 = vunpack.c.l.b16 %v813
        %v884 = vunpack.c.l.b16 %v814
        %v885 = vunpack.c.l.b16 %v815
        %v886 = vunpack.c.l.b16 %v816
        %v887 = vunpack.c.l.b16 %v817
        %v888 = vpack.c.b16 %v857, %v856
        %v889 = vpack.c.b16 %v859, %v858
        %v890 = vpack.c.b16 %v861, %v860
        %v891 = vpack.c.b16 %v863, %v862
        %v892 = vpack.c.b16 %v865, %v864
        %v893 = vpack.c.b16 %v867, %v866
        %v894 = vpack.c.b16 %v869, %v868
        %v895 = vpack.c.b16 %v871, %v870
        %v896 = vpack.c.b16 %v873, %v872
        %v897 = vpack.c.b16 %v875, %v874
        %v898 = vpack.c.b16 %v877, %v876
        %v899 = vpack.c.b16 %v879, %v878
        %v900 = vpack.c.b16 %v881, %v880
        %v901 = vpack.c.b16 %v883, %v882
        %v902 = vpack.c.b16 %v885, %v884
        %v903 = vpack.c.b16 %v887, %v886
        %v906 = vunpack.c.l.b16 %v818
        %v907 = vunpack.c.l.b16 %v819
        %v908 = vpack.c.b16 %v907, %v906
        %vm910 = vcmask 130048
        %v912 = vsel %vm910, %v888, 0
        %v915 = vsel %vm910, %v889, 0
        %v918 = vsel %vm910, %v890, 0
        %v921 = vsel %vm910, %v891, 0
        %v924 = vsel %vm910, %v892, 0
        %v927 = vsel %vm910, %v893, 0
        %v930 = vsel %vm910, %v894, 0
        %v933 = vsel %vm910, %v895, 0
        %v936 = vsel %vm910, %v896, 0
        %v939 = vsel %vm910, %v897, 0
        %v942 = vsel %vm910, %v898, 0
        %v945 = vsel %vm910, %v899, 0
        %v948 = vsel %vm910, %v900, 0
        %v951 = vsel %vm910, %v901, 0
        %v954 = vsel %vm910, %v902, 0
        %v957 = vsel %vm910, %v903, 0
        %959 = vmatpush.bf16.msra.mxu0 0
        %960 = vmatpush.bf16.msra.mxu0 0
        %961 = vmatpush.bf16.msra.mxu0 0
        %962 = vmatpush.bf16.msra.mxu0 0
        %963 = vmatpush.bf16.msra.mxu0 0
        %964 = vmatpush.bf16.msra.mxu0 0
        %965 = vmatpush.bf16.msra.mxu0 0
        %966 = vmatpush.bf16.msra.mxu0 %v908
        %967 = vmatmul.bf16.gmra.mxu0 %v912
        %v968 = vpop.f32.mrf.mxu0
        %v969 = vadd.f32 %v822, %v968
        %v970 = vpop.f32.mrf.mxu0
        %v971 = vadd.f32 %v822, %v970
        %972 = vmatmul.bf16.gmra.mxu0 %v915
        %v973 = vpop.f32.mrf.mxu0
        %v974 = vadd.f32 %v822, %v973
        %v975 = vpop.f32.mrf.mxu0
        %v976 = vadd.f32 %v822, %v975
        %977 = vmatmul.bf16.gmra.mxu0 %v918
        %v978 = vpop.f32.mrf.mxu0
        %v979 = vadd.f32 %v822, %v978
        %v980 = vpop.f32.mrf.mxu0
        %v981 = vadd.f32 %v822, %v980
        %982 = vmatmul.bf16.gmra.mxu0 %v921
        %v983 = vpop.f32.mrf.mxu0
        %v984 = vadd.f32 %v822, %v983
        %v985 = vpop.f32.mrf.mxu0
        %v986 = vadd.f32 %v822, %v985
        %987 = vmatmul.bf16.gmra.mxu0 %v924
        %v988 = vpop.f32.mrf.mxu0
        %v989 = vadd.f32 %v822, %v988
        %v990 = vpop.f32.mrf.mxu0
        %v991 = vadd.f32 %v822, %v990
        %992 = vmatmul.bf16.gmra.mxu0 %v927
        %v993 = vpop.f32.mrf.mxu0
        %v994 = vadd.f32 %v822, %v993
        %v995 = vpop.f32.mrf.mxu0
        %v996 = vadd.f32 %v822, %v995
        %997 = vmatmul.bf16.gmra.mxu0 %v930
        %v998 = vpop.f32.mrf.mxu0
        %v999 = vadd.f32 %v822, %v998
        %v1000 = vpop.f32.mrf.mxu0
        %v1001 = vadd.f32 %v822, %v1000
        %1002 = vmatmul.bf16.gmra.mxu0 %v933
        %v1003 = vpop.f32.mrf.mxu0
        %v1004 = vadd.f32 %v822, %v1003
        %v1005 = vpop.f32.mrf.mxu0
        %v1006 = vadd.f32 %v822, %v1005
        %1007 = vmatmul.bf16.gmra.mxu0 %v936
        %v1008 = vpop.f32.mrf.mxu0
        %v1009 = vadd.f32 %v822, %v1008
        %v1010 = vpop.f32.mrf.mxu0
        %v1011 = vadd.f32 %v822, %v1010
        %1012 = vmatmul.bf16.gmra.mxu0 %v939
        %v1013 = vpop.f32.mrf.mxu0
        %v1014 = vadd.f32 %v822, %v1013
        %v1015 = vpop.f32.mrf.mxu0
        %v1016 = vadd.f32 %v822, %v1015
        %1017 = vmatmul.bf16.gmra.mxu0 %v942
        %v1018 = vpop.f32.mrf.mxu0
        %v1019 = vadd.f32 %v822, %v1018
        %v1020 = vpop.f32.mrf.mxu0
        %v1021 = vadd.f32 %v822, %v1020
        %1022 = vmatmul.bf16.gmra.mxu0 %v945
        %v1023 = vpop.f32.mrf.mxu0
        %v1024 = vadd.f32 %v822, %v1023
        %v1025 = vpop.f32.mrf.mxu0
        %v1026 = vadd.f32 %v822, %v1025
        %1027 = vmatmul.bf16.gmra.mxu0 %v948
        %v1028 = vpop.f32.mrf.mxu0
        %v1029 = vadd.f32 %v822, %v1028
        %v1030 = vpop.f32.mrf.mxu0
        %v1031 = vadd.f32 %v822, %v1030
        %1032 = vmatmul.bf16.gmra.mxu0 %v951
        %v1033 = vpop.f32.mrf.mxu0
        %v1034 = vadd.f32 %v822, %v1033
        %v1035 = vpop.f32.mrf.mxu0
        %v1036 = vadd.f32 %v822, %v1035
        %1037 = vmatmul.bf16.gmra.mxu0 %v954
        %v1038 = vpop.f32.mrf.mxu0
        %v1039 = vadd.f32 %v822, %v1038
        %v1040 = vpop.f32.mrf.mxu0
        %v1041 = vadd.f32 %v822, %v1040
        %1042 = vmatmul.bf16.gmra.mxu0 %v957
        %v1043 = vpop.f32.mrf.mxu0
        %v1044 = vadd.f32 %v822, %v1043
        %v1045 = vpop.f32.mrf.mxu0
        %v1046 = vadd.f32 %v822, %v1045
        %1047 = vdwg.mxu0
        %v1048 = vmax.f32 %v969, 0.0
        %v1049 = vmax.f32 %v971, 0.0
        %v1050 = vmax.f32 %v974, 0.0
        %v1051 = vmax.f32 %v976, 0.0
        %v1052 = vmax.f32 %v979, 0.0
        %v1053 = vmax.f32 %v981, 0.0
        %v1054 = vmax.f32 %v984, 0.0
        %v1055 = vmax.f32 %v986, 0.0
        %v1056 = vmax.f32 %v989, 0.0
        %v1057 = vmax.f32 %v991, 0.0
        %v1058 = vmax.f32 %v994, 0.0
        %v1059 = vmax.f32 %v996, 0.0
        %v1060 = vmax.f32 %v999, 0.0
        %v1061 = vmax.f32 %v1001, 0.0
        %v1062 = vmax.f32 %v1004, 0.0
        %v1063 = vmax.f32 %v1006, 0.0
        %v1064 = vmax.f32 %v1009, 0.0
        %v1065 = vmax.f32 %v1011, 0.0
        %v1066 = vmax.f32 %v1014, 0.0
        %v1067 = vmax.f32 %v1016, 0.0
        %v1068 = vmax.f32 %v1019, 0.0
        %v1069 = vmax.f32 %v1021, 0.0
        %v1070 = vmax.f32 %v1024, 0.0
        %v1071 = vmax.f32 %v1026, 0.0
        %v1072 = vmax.f32 %v1029, 0.0
        %v1073 = vmax.f32 %v1031, 0.0
        %v1074 = vmax.f32 %v1034, 0.0
        %v1075 = vmax.f32 %v1036, 0.0
        %v1076 = vmax.f32 %v1039, 0.0
        %v1077 = vmax.f32 %v1041, 0.0
        %v1078 = vmax.f32 %v1044, 0.0
        %v1079 = vmax.f32 %v1046, 0.0
        %v1080 = vpack.c.bf16 %v1048, %v1048
        %v1081 = vpack.c.bf16 %v1049, %v1049
        %v1082 = vpack.c.bf16 %v1050, %v1050
        %v1083 = vpack.c.bf16 %v1051, %v1051
        %v1084 = vpack.c.bf16 %v1052, %v1052
        %v1085 = vpack.c.bf16 %v1053, %v1053
        %v1086 = vpack.c.bf16 %v1054, %v1054
        %v1087 = vpack.c.bf16 %v1055, %v1055
        %v1088 = vpack.c.bf16 %v1056, %v1056
        %v1089 = vpack.c.bf16 %v1057, %v1057
        %v1090 = vpack.c.bf16 %v1058, %v1058
        %v1091 = vpack.c.bf16 %v1059, %v1059
        %v1092 = vpack.c.bf16 %v1060, %v1060
        %v1093 = vpack.c.bf16 %v1061, %v1061
        %v1094 = vpack.c.bf16 %v1062, %v1062
        %v1095 = vpack.c.bf16 %v1063, %v1063
        %v1096 = vpack.c.bf16 %v1064, %v1064
        %v1097 = vpack.c.bf16 %v1065, %v1065
        %v1098 = vpack.c.bf16 %v1066, %v1066
        %v1099 = vpack.c.bf16 %v1067, %v1067
        %v1100 = vpack.c.bf16 %v1068, %v1068
        %v1101 = vpack.c.bf16 %v1069, %v1069
        %v1102 = vpack.c.bf16 %v1070, %v1070
        %v1103 = vpack.c.bf16 %v1071, %v1071
        %v1104 = vpack.c.bf16 %v1072, %v1072
        %v1105 = vpack.c.bf16 %v1073, %v1073
        %v1106 = vpack.c.bf16 %v1074, %v1074
        %v1107 = vpack.c.bf16 %v1075, %v1075
        %v1108 = vpack.c.bf16 %v1076, %v1076
        %v1109 = vpack.c.bf16 %v1077, %v1077
        %v1110 = vpack.c.bf16 %v1078, %v1078
        %v1111 = vpack.c.bf16 %v1079, %v1079
        %v1112 = vld [vmem:[%s6] sm:$0xf]
        %v1113 = vld [vmem:[%s6 + $0x4] sm:$0xf]
        %v1114 = vld [vmem:[%s7] sm:$0x1]
        %v1116 = vperm.slane %v1114, 0
        %v1150 = vunpack.c.l.b16 %v1080
        %v1151 = vunpack.c.l.b16 %v1081
        %v1152 = vunpack.c.l.b16 %v1082
        %v1153 = vunpack.c.l.b16 %v1083
        %v1154 = vunpack.c.l.b16 %v1084
        %v1155 = vunpack.c.l.b16 %v1085
        %v1156 = vunpack.c.l.b16 %v1086
        %v1157 = vunpack.c.l.b16 %v1087
        %v1158 = vunpack.c.l.b16 %v1088
        %v1159 = vunpack.c.l.b16 %v1089
        %v1160 = vunpack.c.l.b16 %v1090
        %v1161 = vunpack.c.l.b16 %v1091
        %v1162 = vunpack.c.l.b16 %v1092
        %v1163 = vunpack.c.l.b16 %v1093
        %v1164 = vunpack.c.l.b16 %v1094
        %v1165 = vunpack.c.l.b16 %v1095
        %v1166 = vunpack.c.l.b16 %v1096
        %v1167 = vunpack.c.l.b16 %v1097
        %v1168 = vunpack.c.l.b16 %v1098
        %v1169 = vunpack.c.l.b16 %v1099
        %v1170 = vunpack.c.l.b16 %v1100
        %v1171 = vunpack.c.l.b16 %v1101
        %v1172 = vunpack.c.l.b16 %v1102
        %v1173 = vunpack.c.l.b16 %v1103
        %v1174 = vunpack.c.l.b16 %v1104
        %v1175 = vunpack.c.l.b16 %v1105
        %v1176 = vunpack.c.l.b16 %v1106
        %v1177 = vunpack.c.l.b16 %v1107
        %v1178 = vunpack.c.l.b16 %v1108
        %v1179 = vunpack.c.l.b16 %v1109
        %v1180 = vunpack.c.l.b16 %v1110
        %v1181 = vunpack.c.l.b16 %v1111
        %v1182 = vpack.c.b16 %v1151, %v1150
        %v1183 = vpack.c.b16 %v1153, %v1152
        %v1184 = vpack.c.b16 %v1155, %v1154
        %v1185 = vpack.c.b16 %v1157, %v1156
        %v1186 = vpack.c.b16 %v1159, %v1158
        %v1187 = vpack.c.b16 %v1161, %v1160
        %v1188 = vpack.c.b16 %v1163, %v1162
        %v1189 = vpack.c.b16 %v1165, %v1164
        %v1190 = vpack.c.b16 %v1167, %v1166
        %v1191 = vpack.c.b16 %v1169, %v1168
        %v1192 = vpack.c.b16 %v1171, %v1170
        %v1193 = vpack.c.b16 %v1173, %v1172
        %v1194 = vpack.c.b16 %v1175, %v1174
        %v1195 = vpack.c.b16 %v1177, %v1176
        %v1196 = vpack.c.b16 %v1179, %v1178
        %v1197 = vpack.c.b16 %v1181, %v1180
        %v1200 = vunpack.c.l.b16 %v1112
        %v1201 = vunpack.c.l.b16 %v1113
        %v1202 = vpack.c.b16 %v1201, %v1200
        %v1205 = vsel %vm910, %v1182, 0
        %v1208 = vsel %vm910, %v1183, 0
        %v1211 = vsel %vm910, %v1184, 0
        %v1214 = vsel %vm910, %v1185, 0
        %v1217 = vsel %vm910, %v1186, 0
        %v1220 = vsel %vm910, %v1187, 0
        %v1223 = vsel %vm910, %v1188, 0
        %v1226 = vsel %vm910, %v1189, 0
        %v1229 = vsel %vm910, %v1190, 0
        %v1232 = vsel %vm910, %v1191, 0
        %v1235 = vsel %vm910, %v1192, 0
        %v1238 = vsel %vm910, %v1193, 0
        %v1241 = vsel %vm910, %v1194, 0
        %v1244 = vsel %vm910, %v1195, 0
        %v1247 = vsel %vm910, %v1196, 0
        %v1250 = vsel %vm910, %v1197, 0
        %1252 = vmatpush.bf16.msra.mxu0 0
        %1253 = vmatpush.bf16.msra.mxu0 0
        %1254 = vmatpush.bf16.msra.mxu0 0
        %1255 = vmatpush.bf16.msra.mxu0 0
        %1256 = vmatpush.bf16.msra.mxu0 0
        %1257 = vmatpush.bf16.msra.mxu0 0
        %1258 = vmatpush.bf16.msra.mxu0 0
        %1259 = vmatpush.bf16.msra.mxu0 %v1202
        %1260 = vmatmul.bf16.gmra.mxu0 %v1205
        %v1261 = vpop.f32.mrf.mxu0
        %v1262 = vadd.f32 %v1116, %v1261
        %v1263 = vpop.f32.mrf.mxu0
        %v1264 = vadd.f32 %v1116, %v1263
        %1265 = vmatmul.bf16.gmra.mxu0 %v1208
        %v1266 = vpop.f32.mrf.mxu0
        %v1267 = vadd.f32 %v1116, %v1266
        %v1268 = vpop.f32.mrf.mxu0
        %v1269 = vadd.f32 %v1116, %v1268
        %1270 = vmatmul.bf16.gmra.mxu0 %v1211
        %v1271 = vpop.f32.mrf.mxu0
        %v1272 = vadd.f32 %v1116, %v1271
        %v1273 = vpop.f32.mrf.mxu0
        %v1274 = vadd.f32 %v1116, %v1273
        %1275 = vmatmul.bf16.gmra.mxu0 %v1214
        %v1276 = vpop.f32.mrf.mxu0
        %v1277 = vadd.f32 %v1116, %v1276
        %v1278 = vpop.f32.mrf.mxu0
        %v1279 = vadd.f32 %v1116, %v1278
        %1280 = vmatmul.bf16.gmra.mxu0 %v1217
        %v1281 = vpop.f32.mrf.mxu0
        %v1282 = vadd.f32 %v1116, %v1281
        %v1283 = vpop.f32.mrf.mxu0
        %v1284 = vadd.f32 %v1116, %v1283
        %1285 = vmatmul.bf16.gmra.mxu0 %v1220
        %v1286 = vpop.f32.mrf.mxu0
        %v1287 = vadd.f32 %v1116, %v1286
        %v1288 = vpop.f32.mrf.mxu0
        %v1289 = vadd.f32 %v1116, %v1288
        %1290 = vmatmul.bf16.gmra.mxu0 %v1223
        %v1291 = vpop.f32.mrf.mxu0
        %v1292 = vadd.f32 %v1116, %v1291
        %v1293 = vpop.f32.mrf.mxu0
        %v1294 = vadd.f32 %v1116, %v1293
        %1295 = vmatmul.bf16.gmra.mxu0 %v1226
        %v1296 = vpop.f32.mrf.mxu0
        %v1297 = vadd.f32 %v1116, %v1296
        %v1298 = vpop.f32.mrf.mxu0
        %v1299 = vadd.f32 %v1116, %v1298
        %1300 = vmatmul.bf16.gmra.mxu0 %v1229
        %v1301 = vpop.f32.mrf.mxu0
        %v1302 = vadd.f32 %v1116, %v1301
        %v1303 = vpop.f32.mrf.mxu0
        %v1304 = vadd.f32 %v1116, %v1303
        %1305 = vmatmul.bf16.gmra.mxu0 %v1232
        %v1306 = vpop.f32.mrf.mxu0
        %v1307 = vadd.f32 %v1116, %v1306
        %v1308 = vpop.f32.mrf.mxu0
        %v1309 = vadd.f32 %v1116, %v1308
        %1310 = vmatmul.bf16.gmra.mxu0 %v1235
        %v1311 = vpop.f32.mrf.mxu0
        %v1312 = vadd.f32 %v1116, %v1311
        %v1313 = vpop.f32.mrf.mxu0
        %v1314 = vadd.f32 %v1116, %v1313
        %1315 = vmatmul.bf16.gmra.mxu0 %v1238
        %v1316 = vpop.f32.mrf.mxu0
        %v1317 = vadd.f32 %v1116, %v1316
        %v1318 = vpop.f32.mrf.mxu0
        %v1319 = vadd.f32 %v1116, %v1318
        %1320 = vmatmul.bf16.gmra.mxu0 %v1241
        %v1321 = vpop.f32.mrf.mxu0
        %v1322 = vadd.f32 %v1116, %v1321
        %v1323 = vpop.f32.mrf.mxu0
        %v1324 = vadd.f32 %v1116, %v1323
        %1325 = vmatmul.bf16.gmra.mxu0 %v1244
        %v1326 = vpop.f32.mrf.mxu0
        %v1327 = vadd.f32 %v1116, %v1326
        %v1328 = vpop.f32.mrf.mxu0
        %v1329 = vadd.f32 %v1116, %v1328
        %1330 = vmatmul.bf16.gmra.mxu0 %v1247
        %v1331 = vpop.f32.mrf.mxu0
        %v1332 = vadd.f32 %v1116, %v1331
        %v1333 = vpop.f32.mrf.mxu0
        %v1334 = vadd.f32 %v1116, %v1333
        %1335 = vmatmul.bf16.gmra.mxu0 %v1250
        %v1336 = vpop.f32.mrf.mxu0
        %v1337 = vadd.f32 %v1116, %v1336
        %v1338 = vpop.f32.mrf.mxu0
        %v1339 = vadd.f32 %v1116, %v1338
        %1340 = vdwg.mxu0
        %v1341 = vmax.f32 %v1262, 0.0
        %v1342 = vmax.f32 %v1264, 0.0
        %v1343 = vmax.f32 %v1267, 0.0
        %v1344 = vmax.f32 %v1269, 0.0
        %v1345 = vmax.f32 %v1272, 0.0
        %v1346 = vmax.f32 %v1274, 0.0
        %v1347 = vmax.f32 %v1277, 0.0
        %v1348 = vmax.f32 %v1279, 0.0
        %v1349 = vmax.f32 %v1282, 0.0
        %v1350 = vmax.f32 %v1284, 0.0
        %v1351 = vmax.f32 %v1287, 0.0
        %v1352 = vmax.f32 %v1289, 0.0
        %v1353 = vmax.f32 %v1292, 0.0
        %v1354 = vmax.f32 %v1294, 0.0
        %v1355 = vmax.f32 %v1297, 0.0
        %v1356 = vmax.f32 %v1299, 0.0
        %v1357 = vmax.f32 %v1302, 0.0
        %v1358 = vmax.f32 %v1304, 0.0
        %v1359 = vmax.f32 %v1307, 0.0
        %v1360 = vmax.f32 %v1309, 0.0
        %v1361 = vmax.f32 %v1312, 0.0
        %v1362 = vmax.f32 %v1314, 0.0
        %v1363 = vmax.f32 %v1317, 0.0
        %v1364 = vmax.f32 %v1319, 0.0
        %v1365 = vmax.f32 %v1322, 0.0
        %v1366 = vmax.f32 %v1324, 0.0
        %v1367 = vmax.f32 %v1327, 0.0
        %v1368 = vmax.f32 %v1329, 0.0
        %v1369 = vmax.f32 %v1332, 0.0
        %v1370 = vmax.f32 %v1334, 0.0
        %v1371 = vmax.f32 %v1337, 0.0
        %v1372 = vmax.f32 %v1339, 0.0
        %vm1373 = vcmask 261120
        %v1374 = vsel %vm1373, %v1341, -inf
        %v1375 = vrot.slane %v1374, 4
        %v1376 = vmax.f32 %v1374, %v1375
        %v1377 = vrot.slane %v1376, 2
        %v1378 = vmax.f32 %v1376, %v1377
        %v1379 = vrot.slane %v1378, 1
        %v1380 = vmax.f32 %v1378, %v1379
        %v1381 = vsel %vm1373, %v1342, -inf
        %v1382 = vrot.slane %v1381, 4
        %v1383 = vmax.f32 %v1381, %v1382
        %v1384 = vrot.slane %v1383, 2
        %v1385 = vmax.f32 %v1383, %v1384
        %v1386 = vrot.slane %v1385, 1
        %v1387 = vmax.f32 %v1385, %v1386
        %v1388 = vsel %vm1373, %v1343, -inf
        %v1389 = vrot.slane %v1388, 4
        %v1390 = vmax.f32 %v1388, %v1389
        %v1391 = vrot.slane %v1390, 2
        %v1392 = vmax.f32 %v1390, %v1391
        %v1393 = vrot.slane %v1392, 1
        %v1394 = vmax.f32 %v1392, %v1393
        %v1395 = vsel %vm1373, %v1344, -inf
        %v1396 = vrot.slane %v1395, 4
        %v1397 = vmax.f32 %v1395, %v1396
        %v1398 = vrot.slane %v1397, 2
        %v1399 = vmax.f32 %v1397, %v1398
        %v1400 = vrot.slane %v1399, 1
        %v1401 = vmax.f32 %v1399, %v1400
        %v1402 = vsel %vm1373, %v1345, -inf
        %v1403 = vrot.slane %v1402, 4
        %v1404 = vmax.f32 %v1402, %v1403
        %v1405 = vrot.slane %v1404, 2
        %v1406 = vmax.f32 %v1404, %v1405
        %v1407 = vrot.slane %v1406, 1
        %v1408 = vmax.f32 %v1406, %v1407
        %v1409 = vsel %vm1373, %v1346, -inf
        %v1410 = vrot.slane %v1409, 4
        %v1411 = vmax.f32 %v1409, %v1410
        %v1412 = vrot.slane %v1411, 2
        %v1413 = vmax.f32 %v1411, %v1412
        %v1414 = vrot.slane %v1413, 1
        %v1415 = vmax.f32 %v1413, %v1414
        %v1416 = vsel %vm1373, %v1347, -inf
        %v1417 = vrot.slane %v1416, 4
        %v1418 = vmax.f32 %v1416, %v1417
        %v1419 = vrot.slane %v1418, 2
        %v1420 = vmax.f32 %v1418, %v1419
        %v1421 = vrot.slane %v1420, 1
        %v1422 = vmax.f32 %v1420, %v1421
        %v1423 = vsel %vm1373, %v1348, -inf
        %v1424 = vrot.slane %v1423, 4
        %v1425 = vmax.f32 %v1423, %v1424
        %v1426 = vrot.slane %v1425, 2
        %v1427 = vmax.f32 %v1425, %v1426
        %v1428 = vrot.slane %v1427, 1
        %v1429 = vmax.f32 %v1427, %v1428
        %v1430 = vsel %vm1373, %v1349, -inf
        %v1431 = vrot.slane %v1430, 4
        %v1432 = vmax.f32 %v1430, %v1431
        %v1433 = vrot.slane %v1432, 2
        %v1434 = vmax.f32 %v1432, %v1433
        %v1435 = vrot.slane %v1434, 1
        %v1436 = vmax.f32 %v1434, %v1435
        %v1437 = vsel %vm1373, %v1350, -inf
        %v1438 = vrot.slane %v1437, 4
        %v1439 = vmax.f32 %v1437, %v1438
        %v1440 = vrot.slane %v1439, 2
        %v1441 = vmax.f32 %v1439, %v1440
        %v1442 = vrot.slane %v1441, 1
        %v1443 = vmax.f32 %v1441, %v1442
        %v1444 = vsel %vm1373, %v1351, -inf
        %v1445 = vrot.slane %v1444, 4
        %v1446 = vmax.f32 %v1444, %v1445
        %v1447 = vrot.slane %v1446, 2
        %v1448 = vmax.f32 %v1446, %v1447
        %v1449 = vrot.slane %v1448, 1
        %v1450 = vmax.f32 %v1448, %v1449
        %v1451 = vsel %vm1373, %v1352, -inf
        %v1452 = vrot.slane %v1451, 4
        %v1453 = vmax.f32 %v1451, %v1452
        %v1454 = vrot.slane %v1453, 2
        %v1455 = vmax.f32 %v1453, %v1454
        %v1456 = vrot.slane %v1455, 1
        %v1457 = vmax.f32 %v1455, %v1456
        %v1458 = vsel %vm1373, %v1353, -inf
        %v1459 = vrot.slane %v1458, 4
        %v1460 = vmax.f32 %v1458, %v1459
        %v1461 = vrot.slane %v1460, 2
        %v1462 = vmax.f32 %v1460, %v1461
        %v1463 = vrot.slane %v1462, 1
        %v1464 = vmax.f32 %v1462, %v1463
        %v1465 = vsel %vm1373, %v1354, -inf
        %v1466 = vrot.slane %v1465, 4
        %v1467 = vmax.f32 %v1465, %v1466
        %v1468 = vrot.slane %v1467, 2
        %v1469 = vmax.f32 %v1467, %v1468
        %v1470 = vrot.slane %v1469, 1
        %v1471 = vmax.f32 %v1469, %v1470
        %v1472 = vsel %vm1373, %v1355, -inf
        %v1473 = vrot.slane %v1472, 4
        %v1474 = vmax.f32 %v1472, %v1473
        %v1475 = vrot.slane %v1474, 2
        %v1476 = vmax.f32 %v1474, %v1475
        %v1477 = vrot.slane %v1476, 1
        %v1478 = vmax.f32 %v1476, %v1477
        %v1479 = vsel %vm1373, %v1356, -inf
        %v1480 = vrot.slane %v1479, 4
        %v1481 = vmax.f32 %v1479, %v1480
        %v1482 = vrot.slane %v1481, 2
        %v1483 = vmax.f32 %v1481, %v1482
        %v1484 = vrot.slane %v1483, 1
        %v1485 = vmax.f32 %v1483, %v1484
        %v1486 = vsel %vm1373, %v1357, -inf
        %v1487 = vrot.slane %v1486, 4
        %v1488 = vmax.f32 %v1486, %v1487
        %v1489 = vrot.slane %v1488, 2
        %v1490 = vmax.f32 %v1488, %v1489
        %v1491 = vrot.slane %v1490, 1
        %v1492 = vmax.f32 %v1490, %v1491
        %v1493 = vsel %vm1373, %v1358, -inf
        %v1494 = vrot.slane %v1493, 4
        %v1495 = vmax.f32 %v1493, %v1494
        %v1496 = vrot.slane %v1495, 2
        %v1497 = vmax.f32 %v1495, %v1496
        %v1498 = vrot.slane %v1497, 1
        %v1499 = vmax.f32 %v1497, %v1498
        %v1500 = vsel %vm1373, %v1359, -inf
        %v1501 = vrot.slane %v1500, 4
        %v1502 = vmax.f32 %v1500, %v1501
        %v1503 = vrot.slane %v1502, 2
        %v1504 = vmax.f32 %v1502, %v1503
        %v1505 = vrot.slane %v1504, 1
        %v1506 = vmax.f32 %v1504, %v1505
        %v1507 = vsel %vm1373, %v1360, -inf
        %v1508 = vrot.slane %v1507, 4
        %v1509 = vmax.f32 %v1507, %v1508
        %v1510 = vrot.slane %v1509, 2
        %v1511 = vmax.f32 %v1509, %v1510
        %v1512 = vrot.slane %v1511, 1
        %v1513 = vmax.f32 %v1511, %v1512
        %v1514 = vsel %vm1373, %v1361, -inf
        %v1515 = vrot.slane %v1514, 4
        %v1516 = vmax.f32 %v1514, %v1515
        %v1517 = vrot.slane %v1516, 2
        %v1518 = vmax.f32 %v1516, %v1517
        %v1519 = vrot.slane %v1518, 1
        %v1520 = vmax.f32 %v1518, %v1519
        %v1521 = vsel %vm1373, %v1362, -inf
        %v1522 = vrot.slane %v1521, 4
        %v1523 = vmax.f32 %v1521, %v1522
        %v1524 = vrot.slane %v1523, 2
        %v1525 = vmax.f32 %v1523, %v1524
        %v1526 = vrot.slane %v1525, 1
        %v1527 = vmax.f32 %v1525, %v1526
        %v1528 = vsel %vm1373, %v1363, -inf
        %v1529 = vrot.slane %v1528, 4
        %v1530 = vmax.f32 %v1528, %v1529
        %v1531 = vrot.slane %v1530, 2
        %v1532 = vmax.f32 %v1530, %v1531
        %v1533 = vrot.slane %v1532, 1
        %v1534 = vmax.f32 %v1532, %v1533
        %v1535 = vsel %vm1373, %v1364, -inf
        %v1536 = vrot.slane %v1535, 4
        %v1537 = vmax.f32 %v1535, %v1536
        %v1538 = vrot.slane %v1537, 2
        %v1539 = vmax.f32 %v1537, %v1538
        %v1540 = vrot.slane %v1539, 1
        %v1541 = vmax.f32 %v1539, %v1540
        %v1542 = vsel %vm1373, %v1365, -inf
        %v1543 = vrot.slane %v1542, 4
        %v1544 = vmax.f32 %v1542, %v1543
        %v1545 = vrot.slane %v1544, 2
        %v1546 = vmax.f32 %v1544, %v1545
        %v1547 = vrot.slane %v1546, 1
        %v1548 = vmax.f32 %v1546, %v1547
        %v1549 = vsel %vm1373, %v1366, -inf
        %v1550 = vrot.slane %v1549, 4
        %v1551 = vmax.f32 %v1549, %v1550
        %v1552 = vrot.slane %v1551, 2
        %v1553 = vmax.f32 %v1551, %v1552
        %v1554 = vrot.slane %v1553, 1
        %v1555 = vmax.f32 %v1553, %v1554
        %v1556 = vsel %vm1373, %v1367, -inf
        %v1557 = vrot.slane %v1556, 4
        %v1558 = vmax.f32 %v1556, %v1557
        %v1559 = vrot.slane %v1558, 2
        %v1560 = vmax.f32 %v1558, %v1559
        %v1561 = vrot.slane %v1560, 1
        %v1562 = vmax.f32 %v1560, %v1561
        %v1563 = vsel %vm1373, %v1368, -inf
        %v1564 = vrot.slane %v1563, 4
        %v1565 = vmax.f32 %v1563, %v1564
        %v1566 = vrot.slane %v1565, 2
        %v1567 = vmax.f32 %v1565, %v1566
        %v1568 = vrot.slane %v1567, 1
        %v1569 = vmax.f32 %v1567, %v1568
        %v1570 = vsel %vm1373, %v1369, -inf
        %v1571 = vrot.slane %v1570, 4
        %v1572 = vmax.f32 %v1570, %v1571
        %v1573 = vrot.slane %v1572, 2
        %v1574 = vmax.f32 %v1572, %v1573
        %v1575 = vrot.slane %v1574, 1
        %v1576 = vmax.f32 %v1574, %v1575
        %v1577 = vsel %vm1373, %v1370, -inf
        %v1578 = vrot.slane %v1577, 4
        %v1579 = vmax.f32 %v1577, %v1578
        %v1580 = vrot.slane %v1579, 2
        %v1581 = vmax.f32 %v1579, %v1580
        %v1582 = vrot.slane %v1581, 1
        %v1583 = vmax.f32 %v1581, %v1582
        %v1584 = vsel %vm1373, %v1371, -inf
        %v1585 = vrot.slane %v1584, 4
        %v1586 = vmax.f32 %v1584, %v1585
        %v1587 = vrot.slane %v1586, 2
        %v1588 = vmax.f32 %v1586, %v1587
        %v1589 = vrot.slane %v1588, 1
        %v1590 = vmax.f32 %v1588, %v1589
        %v1591 = vsel %vm1373, %v1372, -inf
        %v1592 = vrot.slane %v1591, 4
        %v1593 = vmax.f32 %v1591, %v1592
        %v1594 = vrot.slane %v1593, 2
        %v1595 = vmax.f32 %v1593, %v1594
        %v1596 = vrot.slane %v1595, 1
        %v1597 = vmax.f32 %v1595, %v1596
        %vm1630 = vcmask 1041409
        %v1631 = vsel %vm1630, %v1387, %v1380
        %vm1632 = vcmask 1042434
        %v1633 = vsel %vm1632, %v1394, %v1631
        %vm1634 = vcmask 1043459
        %v1635 = vsel %vm1634, %v1401, %v1633
        %vm1636 = vcmask 1044484
        %v1637 = vsel %vm1636, %v1408, %v1635
        %vm1638 = vcmask 1045509
        %v1639 = vsel %vm1638, %v1415, %v1637
        %vm1640 = vcmask 1046534
        %v1641 = vsel %vm1640, %v1422, %v1639
        %vm1642 = vcmask 1047559
        %v1643 = vsel %vm1642, %v1429, %v1641
        %v1644 = vsel %vm1630, %v1443, %v1436
        %v1645 = vsel %vm1632, %v1450, %v1644
        %v1646 = vsel %vm1634, %v1457, %v1645
        %v1647 = vsel %vm1636, %v1464, %v1646
        %v1648 = vsel %vm1638, %v1471, %v1647
        %v1649 = vsel %vm1640, %v1478, %v1648
        %v1650 = vsel %vm1642, %v1485, %v1649
        %v1651 = vsel %vm1630, %v1499, %v1492
        %v1652 = vsel %vm1632, %v1506, %v1651
        %v1653 = vsel %vm1634, %v1513, %v1652
        %v1654 = vsel %vm1636, %v1520, %v1653
        %v1655 = vsel %vm1638, %v1527, %v1654
        %v1656 = vsel %vm1640, %v1534, %v1655
        %v1657 = vsel %vm1642, %v1541, %v1656
        %v1658 = vsel %vm1630, %v1555, %v1548
        %v1659 = vsel %vm1632, %v1562, %v1658
        %v1660 = vsel %vm1634, %v1569, %v1659
        %v1661 = vsel %vm1636, %v1576, %v1660
        %v1662 = vsel %vm1638, %v1583, %v1661
        %v1663 = vsel %vm1640, %v1590, %v1662
        %v1664 = vsel %vm1642, %v1597, %v1663
        %1669 = vst.msk [vmem:[%s479] sm:$0xff] %vm1373, %v1643
        %1670 = vst.msk [vmem:[%s479 + $0x8] sm:$0xff] %vm1373, %v1650
        %1671 = vst.msk [vmem:[%s479 + $0x10] sm:$0xff] %vm1373, %v1657
        %1672 = vst.msk [vmem:[%s479 + $0x18] sm:$0xff] %vm1373, %v1664
        %v1673 = vld [vmem:[%s491] sm:$0xf]
        %v1674 = vld [vmem:[%s491 + $0x4] sm:$0xf]
        %v1675 = vld [vmem:[%s491 + $0x8] sm:$0xf]
        %v1676 = vld [vmem:[%s491 + $0xc] sm:$0xf]
        %v1677 = vld [vmem:[%s491 + $0x10] sm:$0xf]
        %v1678 = vld [vmem:[%s491 + $0x14] sm:$0xf]
        %v1679 = vld [vmem:[%s491 + $0x18] sm:$0xf]
        %v1680 = vld [vmem:[%s491 + $0x1c] sm:$0xf]
        %v1681 = vld [vmem:[%s491 + $0x20] sm:$0xf]
        %v1682 = vld [vmem:[%s491 + $0x24] sm:$0xf]
        %v1683 = vld [vmem:[%s491 + $0x28] sm:$0xf]
        %v1684 = vld [vmem:[%s491 + $0x2c] sm:$0xf]
        %v1685 = vld [vmem:[%s491 + $0x30] sm:$0xf]
        %v1686 = vld [vmem:[%s491 + $0x34] sm:$0xf]
        %v1687 = vld [vmem:[%s491 + $0x38] sm:$0xf]
        %v1688 = vld [vmem:[%s491 + $0x3c] sm:$0xf]
        %v1689 = vld [vmem:[%s491 + $0x40] sm:$0xf]
        %v1690 = vld [vmem:[%s491 + $0x44] sm:$0xf]
        %v1691 = vld [vmem:[%s491 + $0x48] sm:$0xf]
        %v1692 = vld [vmem:[%s491 + $0x4c] sm:$0xf]
        %v1693 = vld [vmem:[%s491 + $0x50] sm:$0xf]
        %v1694 = vld [vmem:[%s491 + $0x54] sm:$0xf]
        %v1695 = vld [vmem:[%s491 + $0x58] sm:$0xf]
        %v1696 = vld [vmem:[%s491 + $0x5c] sm:$0xf]
        %v1697 = vld [vmem:[%s491 + $0x60] sm:$0xf]
        %v1698 = vld [vmem:[%s491 + $0x64] sm:$0xf]
        %v1699 = vld [vmem:[%s491 + $0x68] sm:$0xf]
        %v1700 = vld [vmem:[%s491 + $0x6c] sm:$0xf]
        %v1701 = vld [vmem:[%s491 + $0x70] sm:$0xf]
        %v1702 = vld [vmem:[%s491 + $0x74] sm:$0xf]
        %v1703 = vld [vmem:[%s491 + $0x78] sm:$0xf]
        %v1704 = vld [vmem:[%s491 + $0x7c] sm:$0xf]
        %v1705 = vld [vmem:[%s491 + $0x80] sm:$0xf]
        %v1706 = vld [vmem:[%s491 + $0x84] sm:$0xf]
        %v1707 = vld [vmem:[%s491 + $0x88] sm:$0xf]
        %v1708 = vld [vmem:[%s491 + $0x8c] sm:$0xf]
        %v1709 = vld [vmem:[%s491 + $0x90] sm:$0xf]
        %v1710 = vld [vmem:[%s491 + $0x94] sm:$0xf]
        %v1711 = vld [vmem:[%s491 + $0x98] sm:$0xf]
        %v1712 = vld [vmem:[%s491 + $0x9c] sm:$0xf]
        %v1713 = vld [vmem:[%s491 + $0xa0] sm:$0xf]
        %v1714 = vld [vmem:[%s491 + $0xa4] sm:$0xf]
        %v1715 = vld [vmem:[%s491 + $0xa8] sm:$0xf]
        %v1716 = vld [vmem:[%s491 + $0xac] sm:$0xf]
        %v1717 = vld [vmem:[%s491 + $0xb0] sm:$0xf]
        %v1718 = vld [vmem:[%s491 + $0xb4] sm:$0xf]
        %v1719 = vld [vmem:[%s491 + $0xb8] sm:$0xf]
        %v1720 = vld [vmem:[%s491 + $0xbc] sm:$0xf]
        %v1721 = vld [vmem:[%s491 + $0xc0] sm:$0xf]
        %v1722 = vld [vmem:[%s491 + $0xc4] sm:$0xf]
        %v1723 = vld [vmem:[%s491 + $0xc8] sm:$0xf]
        %v1724 = vld [vmem:[%s491 + $0xcc] sm:$0xf]
        %v1725 = vld [vmem:[%s491 + $0xd0] sm:$0xf]
        %v1726 = vld [vmem:[%s491 + $0xd4] sm:$0xf]
        %v1727 = vld [vmem:[%s491 + $0xd8] sm:$0xf]
        %v1728 = vld [vmem:[%s491 + $0xdc] sm:$0xf]
        %v1729 = vld [vmem:[%s491 + $0xe0] sm:$0xf]
        %v1730 = vld [vmem:[%s491 + $0xe4] sm:$0xf]
        %v1731 = vld [vmem:[%s491 + $0xe8] sm:$0xf]
        %v1732 = vld [vmem:[%s491 + $0xec] sm:$0xf]
        %v1733 = vld [vmem:[%s491 + $0xf0] sm:$0xf]
        %v1734 = vld [vmem:[%s491 + $0xf4] sm:$0xf]
        %v1735 = vld [vmem:[%s491 + $0xf8] sm:$0xf]
        %v1736 = vld [vmem:[%s491 + $0xfc] sm:$0xf]
        %v1737 = vld [vmem:[%s8] sm:$0xf]
        %v1738 = vld [vmem:[%s9] sm:$0x1]
        %v1740 = vperm.slane %v1738, 0
        %v1806 = vunpack.c.l.b16 %v1673
        %v1807 = vunpack.c.l.b16 %v1674
        %v1808 = vunpack.c.l.b16 %v1675
        %v1809 = vunpack.c.l.b16 %v1676
        %v1810 = vunpack.c.l.b16 %v1677
        %v1811 = vunpack.c.l.b16 %v1678
        %v1812 = vunpack.c.l.b16 %v1679
        %v1813 = vunpack.c.l.b16 %v1680
        %v1814 = vunpack.c.l.b16 %v1681
        %v1815 = vunpack.c.l.b16 %v1682
        %v1816 = vunpack.c.l.b16 %v1683
        %v1817 = vunpack.c.l.b16 %v1684
        %v1818 = vunpack.c.l.b16 %v1685
        %v1819 = vunpack.c.l.b16 %v1686
        %v1820 = vunpack.c.l.b16 %v1687
        %v1821 = vunpack.c.l.b16 %v1688
        %v1822 = vunpack.c.l.b16 %v1689
        %v1823 = vunpack.c.l.b16 %v1690
        %v1824 = vunpack.c.l.b16 %v1691
        %v1825 = vunpack.c.l.b16 %v1692
        %v1826 = vunpack.c.l.b16 %v1693
        %v1827 = vunpack.c.l.b16 %v1694
        %v1828 = vunpack.c.l.b16 %v1695
        %v1829 = vunpack.c.l.b16 %v1696
        %v1830 = vunpack.c.l.b16 %v1697
        %v1831 = vunpack.c.l.b16 %v1698
        %v1832 = vunpack.c.l.b16 %v1699
        %v1833 = vunpack.c.l.b16 %v1700
        %v1834 = vunpack.c.l.b16 %v1701
        %v1835 = vunpack.c.l.b16 %v1702
        %v1836 = vunpack.c.l.b16 %v1703
        %v1837 = vunpack.c.l.b16 %v1704
        %v1838 = vunpack.c.l.b16 %v1705
        %v1839 = vunpack.c.l.b16 %v1706
        %v1840 = vunpack.c.l.b16 %v1707
        %v1841 = vunpack.c.l.b16 %v1708
        %v1842 = vunpack.c.l.b16 %v1709
        %v1843 = vunpack.c.l.b16 %v1710
        %v1844 = vunpack.c.l.b16 %v1711
        %v1845 = vunpack.c.l.b16 %v1712
        %v1846 = vunpack.c.l.b16 %v1713
        %v1847 = vunpack.c.l.b16 %v1714
        %v1848 = vunpack.c.l.b16 %v1715
        %v1849 = vunpack.c.l.b16 %v1716
        %v1850 = vunpack.c.l.b16 %v1717
        %v1851 = vunpack.c.l.b16 %v1718
        %v1852 = vunpack.c.l.b16 %v1719
        %v1853 = vunpack.c.l.b16 %v1720
        %v1854 = vunpack.c.l.b16 %v1721
        %v1855 = vunpack.c.l.b16 %v1722
        %v1856 = vunpack.c.l.b16 %v1723
        %v1857 = vunpack.c.l.b16 %v1724
        %v1858 = vunpack.c.l.b16 %v1725
        %v1859 = vunpack.c.l.b16 %v1726
        %v1860 = vunpack.c.l.b16 %v1727
        %v1861 = vunpack.c.l.b16 %v1728
        %v1862 = vunpack.c.l.b16 %v1729
        %v1863 = vunpack.c.l.b16 %v1730
        %v1864 = vunpack.c.l.b16 %v1731
        %v1865 = vunpack.c.l.b16 %v1732
        %v1866 = vunpack.c.l.b16 %v1733
        %v1867 = vunpack.c.l.b16 %v1734
        %v1868 = vunpack.c.l.b16 %v1735
        %v1869 = vunpack.c.l.b16 %v1736
        %v1870 = vpack.c.b16 %v1807, %v1806
        %v1871 = vpack.c.b16 %v1809, %v1808
        %v1872 = vpack.c.b16 %v1811, %v1810
        %v1873 = vpack.c.b16 %v1813, %v1812
        %v1874 = vpack.c.b16 %v1815, %v1814
        %v1875 = vpack.c.b16 %v1817, %v1816
        %v1876 = vpack.c.b16 %v1819, %v1818
        %v1877 = vpack.c.b16 %v1821, %v1820
        %v1878 = vpack.c.b16 %v1823, %v1822
        %v1879 = vpack.c.b16 %v1825, %v1824
        %v1880 = vpack.c.b16 %v1827, %v1826
        %v1881 = vpack.c.b16 %v1829, %v1828
        %v1882 = vpack.c.b16 %v1831, %v1830
        %v1883 = vpack.c.b16 %v1833, %v1832
        %v1884 = vpack.c.b16 %v1835, %v1834
        %v1885 = vpack.c.b16 %v1837, %v1836
        %v1886 = vpack.c.b16 %v1839, %v1838
        %v1887 = vpack.c.b16 %v1841, %v1840
        %v1888 = vpack.c.b16 %v1843, %v1842
        %v1889 = vpack.c.b16 %v1845, %v1844
        %v1890 = vpack.c.b16 %v1847, %v1846
        %v1891 = vpack.c.b16 %v1849, %v1848
        %v1892 = vpack.c.b16 %v1851, %v1850
        %v1893 = vpack.c.b16 %v1853, %v1852
        %v1894 = vpack.c.b16 %v1855, %v1854
        %v1895 = vpack.c.b16 %v1857, %v1856
        %v1896 = vpack.c.b16 %v1859, %v1858
        %v1897 = vpack.c.b16 %v1861, %v1860
        %v1898 = vpack.c.b16 %v1863, %v1862
        %v1899 = vpack.c.b16 %v1865, %v1864
        %v1900 = vpack.c.b16 %v1867, %v1866
        %v1901 = vpack.c.b16 %v1869, %v1868
        %v1903 = vsel %vm612, %v1870, 0
        %v1906 = vsel %vm612, %v1871, 0
        %v1909 = vsel %vm612, %v1872, 0
        %v1912 = vsel %vm612, %v1873, 0
        %v1915 = vsel %vm612, %v1874, 0
        %v1918 = vsel %vm612, %v1875, 0
        %v1921 = vsel %vm612, %v1876, 0
        %v1924 = vsel %vm612, %v1877, 0
        %v1927 = vsel %vm612, %v1878, 0
        %v1930 = vsel %vm612, %v1879, 0
        %v1933 = vsel %vm612, %v1880, 0
        %v1936 = vsel %vm612, %v1881, 0
        %v1939 = vsel %vm612, %v1882, 0
        %v1942 = vsel %vm612, %v1883, 0
        %v1945 = vsel %vm612, %v1884, 0
        %v1948 = vsel %vm612, %v1885, 0
        %v1951 = vsel %vm612, %v1886, 0
        %v1954 = vsel %vm612, %v1887, 0
        %v1957 = vsel %vm612, %v1888, 0
        %v1960 = vsel %vm612, %v1889, 0
        %v1963 = vsel %vm612, %v1890, 0
        %v1966 = vsel %vm612, %v1891, 0
        %v1969 = vsel %vm612, %v1892, 0
        %v1972 = vsel %vm612, %v1893, 0
        %v1975 = vsel %vm612, %v1894, 0
        %v1978 = vsel %vm612, %v1895, 0
        %v1981 = vsel %vm612, %v1896, 0
        %v1984 = vsel %vm612, %v1897, 0
        %v1987 = vsel %vm612, %v1898, 0
        %v1990 = vsel %vm612, %v1899, 0
        %v1993 = vsel %vm612, %v1900, 0
        %v1996 = vsel %vm612, %v1901, 0
        %v1999 = vsel %vm661, %v1737, 0
        %2001 = vmatpush.bf16.msra.mxu0 0
        %2002 = vmatpush.bf16.msra.mxu0 0
        %2003 = vmatpush.bf16.msra.mxu0 0
        %2004 = vmatpush.bf16.msra.mxu0 0
        %2005 = vmatpush.bf16.msra.mxu0 0
        %2006 = vmatpush.bf16.msra.mxu0 0
        %2007 = vmatpush.bf16.msra.mxu0 0
        %2008 = vmatpush.bf16.msra.mxu0 %v1999
        %2009 = vmatmul.bf16.gmra.mxu0 %v1903
        %v2010 = vpop.f32.mrf.mxu0
        %v2011 = vadd.f32 %v1740, %v2010
        %v2012 = vpop.f32.mrf.mxu0
        %v2013 = vadd.f32 %v1740, %v2012
        %2014 = vmatmul.bf16.gmra.mxu0 %v1906
        %v2015 = vpop.f32.mrf.mxu0
        %v2016 = vadd.f32 %v1740, %v2015
        %v2017 = vpop.f32.mrf.mxu0
        %v2018 = vadd.f32 %v1740, %v2017
        %2019 = vmatmul.bf16.gmra.mxu0 %v1909
        %v2020 = vpop.f32.mrf.mxu0
        %v2021 = vadd.f32 %v1740, %v2020
        %v2022 = vpop.f32.mrf.mxu0
        %v2023 = vadd.f32 %v1740, %v2022
        %2024 = vmatmul.bf16.gmra.mxu0 %v1912
        %v2025 = vpop.f32.mrf.mxu0
        %v2026 = vadd.f32 %v1740, %v2025
        %v2027 = vpop.f32.mrf.mxu0
        %v2028 = vadd.f32 %v1740, %v2027
        %2029 = vmatmul.bf16.gmra.mxu0 %v1915
        %v2030 = vpop.f32.mrf.mxu0
        %v2031 = vadd.f32 %v1740, %v2030
        %v2032 = vpop.f32.mrf.mxu0
        %v2033 = vadd.f32 %v1740, %v2032
        %2034 = vmatmul.bf16.gmra.mxu0 %v1918
        %v2035 = vpop.f32.mrf.mxu0
        %v2036 = vadd.f32 %v1740, %v2035
        %v2037 = vpop.f32.mrf.mxu0
        %v2038 = vadd.f32 %v1740, %v2037
        %2039 = vmatmul.bf16.gmra.mxu0 %v1921
        %v2040 = vpop.f32.mrf.mxu0
        %v2041 = vadd.f32 %v1740, %v2040
        %v2042 = vpop.f32.mrf.mxu0
        %v2043 = vadd.f32 %v1740, %v2042
        %2044 = vmatmul.bf16.gmra.mxu0 %v1924
        %v2045 = vpop.f32.mrf.mxu0
        %v2046 = vadd.f32 %v1740, %v2045
        %v2047 = vpop.f32.mrf.mxu0
        %v2048 = vadd.f32 %v1740, %v2047
        %2049 = vmatmul.bf16.gmra.mxu0 %v1927
        %v2050 = vpop.f32.mrf.mxu0
        %v2051 = vadd.f32 %v1740, %v2050
        %v2052 = vpop.f32.mrf.mxu0
        %v2053 = vadd.f32 %v1740, %v2052
        %2054 = vmatmul.bf16.gmra.mxu0 %v1930
        %v2055 = vpop.f32.mrf.mxu0
        %v2056 = vadd.f32 %v1740, %v2055
        %v2057 = vpop.f32.mrf.mxu0
        %v2058 = vadd.f32 %v1740, %v2057
        %2059 = vmatmul.bf16.gmra.mxu0 %v1933
        %v2060 = vpop.f32.mrf.mxu0
        %v2061 = vadd.f32 %v1740, %v2060
        %v2062 = vpop.f32.mrf.mxu0
        %v2063 = vadd.f32 %v1740, %v2062
        %2064 = vmatmul.bf16.gmra.mxu0 %v1936
        %v2065 = vpop.f32.mrf.mxu0
        %v2066 = vadd.f32 %v1740, %v2065
        %v2067 = vpop.f32.mrf.mxu0
        %v2068 = vadd.f32 %v1740, %v2067
        %2069 = vmatmul.bf16.gmra.mxu0 %v1939
        %v2070 = vpop.f32.mrf.mxu0
        %v2071 = vadd.f32 %v1740, %v2070
        %v2072 = vpop.f32.mrf.mxu0
        %v2073 = vadd.f32 %v1740, %v2072
        %2074 = vmatmul.bf16.gmra.mxu0 %v1942
        %v2075 = vpop.f32.mrf.mxu0
        %v2076 = vadd.f32 %v1740, %v2075
        %v2077 = vpop.f32.mrf.mxu0
        %v2078 = vadd.f32 %v1740, %v2077
        %2079 = vmatmul.bf16.gmra.mxu0 %v1945
        %v2080 = vpop.f32.mrf.mxu0
        %v2081 = vadd.f32 %v1740, %v2080
        %v2082 = vpop.f32.mrf.mxu0
        %v2083 = vadd.f32 %v1740, %v2082
        %2084 = vmatmul.bf16.gmra.mxu0 %v1948
        %v2085 = vpop.f32.mrf.mxu0
        %v2086 = vadd.f32 %v1740, %v2085
        %v2087 = vpop.f32.mrf.mxu0
        %v2088 = vadd.f32 %v1740, %v2087
        %2089 = vmatmul.bf16.gmra.mxu0 %v1951
        %v2090 = vpop.f32.mrf.mxu0
        %v2091 = vadd.f32 %v1740, %v2090
        %v2092 = vpop.f32.mrf.mxu0
        %v2093 = vadd.f32 %v1740, %v2092
        %2094 = vmatmul.bf16.gmra.mxu0 %v1954
        %v2095 = vpop.f32.mrf.mxu0
        %v2096 = vadd.f32 %v1740, %v2095
        %v2097 = vpop.f32.mrf.mxu0
        %v2098 = vadd.f32 %v1740, %v2097
        %2099 = vmatmul.bf16.gmra.mxu0 %v1957
        %v2100 = vpop.f32.mrf.mxu0
        %v2101 = vadd.f32 %v1740, %v2100
        %v2102 = vpop.f32.mrf.mxu0
        %v2103 = vadd.f32 %v1740, %v2102
        %2104 = vmatmul.bf16.gmra.mxu0 %v1960
        %v2105 = vpop.f32.mrf.mxu0
        %v2106 = vadd.f32 %v1740, %v2105
        %v2107 = vpop.f32.mrf.mxu0
        %v2108 = vadd.f32 %v1740, %v2107
        %2109 = vmatmul.bf16.gmra.mxu0 %v1963
        %v2110 = vpop.f32.mrf.mxu0
        %v2111 = vadd.f32 %v1740, %v2110
        %v2112 = vpop.f32.mrf.mxu0
        %v2113 = vadd.f32 %v1740, %v2112
        %2114 = vmatmul.bf16.gmra.mxu0 %v1966
        %v2115 = vpop.f32.mrf.mxu0
        %v2116 = vadd.f32 %v1740, %v2115
        %v2117 = vpop.f32.mrf.mxu0
        %v2118 = vadd.f32 %v1740, %v2117
        %2119 = vmatmul.bf16.gmra.mxu0 %v1969
        %v2120 = vpop.f32.mrf.mxu0
        %v2121 = vadd.f32 %v1740, %v2120
        %v2122 = vpop.f32.mrf.mxu0
        %v2123 = vadd.f32 %v1740, %v2122
        %2124 = vmatmul.bf16.gmra.mxu0 %v1972
        %v2125 = vpop.f32.mrf.mxu0
        %v2126 = vadd.f32 %v1740, %v2125
        %v2127 = vpop.f32.mrf.mxu0
        %v2128 = vadd.f32 %v1740, %v2127
        %2129 = vmatmul.bf16.gmra.mxu0 %v1975
        %v2130 = vpop.f32.mrf.mxu0
        %v2131 = vadd.f32 %v1740, %v2130
        %v2132 = vpop.f32.mrf.mxu0
        %v2133 = vadd.f32 %v1740, %v2132
        %2134 = vmatmul.bf16.gmra.mxu0 %v1978
        %v2135 = vpop.f32.mrf.mxu0
        %v2136 = vadd.f32 %v1740, %v2135
        %v2137 = vpop.f32.mrf.mxu0
        %v2138 = vadd.f32 %v1740, %v2137
        %2139 = vmatmul.bf16.gmra.mxu0 %v1981
        %v2140 = vpop.f32.mrf.mxu0
        %v2141 = vadd.f32 %v1740, %v2140
        %v2142 = vpop.f32.mrf.mxu0
        %v2143 = vadd.f32 %v1740, %v2142
        %2144 = vmatmul.bf16.gmra.mxu0 %v1984
        %v2145 = vpop.f32.mrf.mxu0
        %v2146 = vadd.f32 %v1740, %v2145
        %v2147 = vpop.f32.mrf.mxu0
        %v2148 = vadd.f32 %v1740, %v2147
        %2149 = vmatmul.bf16.gmra.mxu0 %v1987
        %v2150 = vpop.f32.mrf.mxu0
        %v2151 = vadd.f32 %v1740, %v2150
        %v2152 = vpop.f32.mrf.mxu0
        %v2153 = vadd.f32 %v1740, %v2152
        %2154 = vmatmul.bf16.gmra.mxu0 %v1990
        %v2155 = vpop.f32.mrf.mxu0
        %v2156 = vadd.f32 %v1740, %v2155
        %v2157 = vpop.f32.mrf.mxu0
        %v2158 = vadd.f32 %v1740, %v2157
        %2159 = vmatmul.bf16.gmra.mxu0 %v1993
        %v2160 = vpop.f32.mrf.mxu0
        %v2161 = vadd.f32 %v1740, %v2160
        %v2162 = vpop.f32.mrf.mxu0
        %v2163 = vadd.f32 %v1740, %v2162
        %2164 = vmatmul.bf16.gmra.mxu0 %v1996
        %v2165 = vpop.f32.mrf.mxu0
        %v2166 = vadd.f32 %v1740, %v2165
        %v2167 = vpop.f32.mrf.mxu0
        %v2168 = vadd.f32 %v1740, %v2167
        %2169 = vdwg.mxu0
        %v2170 = vmax.f32 %v2011, 0.0
        %v2171 = vmax.f32 %v2013, 0.0
        %v2172 = vmax.f32 %v2016, 0.0
        %v2173 = vmax.f32 %v2018, 0.0
        %v2174 = vmax.f32 %v2021, 0.0
        %v2175 = vmax.f32 %v2023, 0.0
        %v2176 = vmax.f32 %v2026, 0.0
        %v2177 = vmax.f32 %v2028, 0.0
        %v2178 = vmax.f32 %v2031, 0.0
        %v2179 = vmax.f32 %v2033, 0.0
        %v2180 = vmax.f32 %v2036, 0.0
        %v2181 = vmax.f32 %v2038, 0.0
        %v2182 = vmax.f32 %v2041, 0.0
        %v2183 = vmax.f32 %v2043, 0.0
        %v2184 = vmax.f32 %v2046, 0.0
        %v2185 = vmax.f32 %v2048, 0.0
        %v2186 = vmax.f32 %v2051, 0.0
        %v2187 = vmax.f32 %v2053, 0.0
        %v2188 = vmax.f32 %v2056, 0.0
        %v2189 = vmax.f32 %v2058, 0.0
        %v2190 = vmax.f32 %v2061, 0.0
        %v2191 = vmax.f32 %v2063, 0.0
        %v2192 = vmax.f32 %v2066, 0.0
        %v2193 = vmax.f32 %v2068, 0.0
        %v2194 = vmax.f32 %v2071, 0.0
        %v2195 = vmax.f32 %v2073, 0.0
        %v2196 = vmax.f32 %v2076, 0.0
        %v2197 = vmax.f32 %v2078, 0.0
        %v2198 = vmax.f32 %v2081, 0.0
        %v2199 = vmax.f32 %v2083, 0.0
        %v2200 = vmax.f32 %v2086, 0.0
        %v2201 = vmax.f32 %v2088, 0.0
        %v2202 = vmax.f32 %v2091, 0.0
        %v2203 = vmax.f32 %v2093, 0.0
        %v2204 = vmax.f32 %v2096, 0.0
        %v2205 = vmax.f32 %v2098, 0.0
        %v2206 = vmax.f32 %v2101, 0.0
        %v2207 = vmax.f32 %v2103, 0.0
        %v2208 = vmax.f32 %v2106, 0.0
        %v2209 = vmax.f32 %v2108, 0.0
        %v2210 = vmax.f32 %v2111, 0.0
        %v2211 = vmax.f32 %v2113, 0.0
        %v2212 = vmax.f32 %v2116, 0.0
        %v2213 = vmax.f32 %v2118, 0.0
        %v2214 = vmax.f32 %v2121, 0.0
        %v2215 = vmax.f32 %v2123, 0.0
        %v2216 = vmax.f32 %v2126, 0.0
        %v2217 = vmax.f32 %v2128, 0.0
        %v2218 = vmax.f32 %v2131, 0.0
        %v2219 = vmax.f32 %v2133, 0.0
        %v2220 = vmax.f32 %v2136, 0.0
        %v2221 = vmax.f32 %v2138, 0.0
        %v2222 = vmax.f32 %v2141, 0.0
        %v2223 = vmax.f32 %v2143, 0.0
        %v2224 = vmax.f32 %v2146, 0.0
        %v2225 = vmax.f32 %v2148, 0.0
        %v2226 = vmax.f32 %v2151, 0.0
        %v2227 = vmax.f32 %v2153, 0.0
        %v2228 = vmax.f32 %v2156, 0.0
        %v2229 = vmax.f32 %v2158, 0.0
        %v2230 = vmax.f32 %v2161, 0.0
        %v2231 = vmax.f32 %v2163, 0.0
        %v2232 = vmax.f32 %v2166, 0.0
        %v2233 = vmax.f32 %v2168, 0.0
        %v2234 = vpack.c.bf16 %v2170, %v2170
        %v2235 = vpack.c.bf16 %v2171, %v2171
        %v2236 = vpack.c.bf16 %v2172, %v2172
        %v2237 = vpack.c.bf16 %v2173, %v2173
        %v2238 = vpack.c.bf16 %v2174, %v2174
        %v2239 = vpack.c.bf16 %v2175, %v2175
        %v2240 = vpack.c.bf16 %v2176, %v2176
        %v2241 = vpack.c.bf16 %v2177, %v2177
        %v2242 = vpack.c.bf16 %v2178, %v2178
        %v2243 = vpack.c.bf16 %v2179, %v2179
        %v2244 = vpack.c.bf16 %v2180, %v2180
        %v2245 = vpack.c.bf16 %v2181, %v2181
        %v2246 = vpack.c.bf16 %v2182, %v2182
        %v2247 = vpack.c.bf16 %v2183, %v2183
        %v2248 = vpack.c.bf16 %v2184, %v2184
        %v2249 = vpack.c.bf16 %v2185, %v2185
        %v2250 = vpack.c.bf16 %v2186, %v2186
        %v2251 = vpack.c.bf16 %v2187, %v2187
        %v2252 = vpack.c.bf16 %v2188, %v2188
        %v2253 = vpack.c.bf16 %v2189, %v2189
        %v2254 = vpack.c.bf16 %v2190, %v2190
        %v2255 = vpack.c.bf16 %v2191, %v2191
        %v2256 = vpack.c.bf16 %v2192, %v2192
        %v2257 = vpack.c.bf16 %v2193, %v2193
        %v2258 = vpack.c.bf16 %v2194, %v2194
        %v2259 = vpack.c.bf16 %v2195, %v2195
        %v2260 = vpack.c.bf16 %v2196, %v2196
        %v2261 = vpack.c.bf16 %v2197, %v2197
        %v2262 = vpack.c.bf16 %v2198, %v2198
        %v2263 = vpack.c.bf16 %v2199, %v2199
        %v2264 = vpack.c.bf16 %v2200, %v2200
        %v2265 = vpack.c.bf16 %v2201, %v2201
        %v2266 = vpack.c.bf16 %v2202, %v2202
        %v2267 = vpack.c.bf16 %v2203, %v2203
        %v2268 = vpack.c.bf16 %v2204, %v2204
        %v2269 = vpack.c.bf16 %v2205, %v2205
        %v2270 = vpack.c.bf16 %v2206, %v2206
        %v2271 = vpack.c.bf16 %v2207, %v2207
        %v2272 = vpack.c.bf16 %v2208, %v2208
        %v2273 = vpack.c.bf16 %v2209, %v2209
        %v2274 = vpack.c.bf16 %v2210, %v2210
        %v2275 = vpack.c.bf16 %v2211, %v2211
        %v2276 = vpack.c.bf16 %v2212, %v2212
        %v2277 = vpack.c.bf16 %v2213, %v2213
        %v2278 = vpack.c.bf16 %v2214, %v2214
        %v2279 = vpack.c.bf16 %v2215, %v2215
        %v2280 = vpack.c.bf16 %v2216, %v2216
        %v2281 = vpack.c.bf16 %v2217, %v2217
        %v2282 = vpack.c.bf16 %v2218, %v2218
        %v2283 = vpack.c.bf16 %v2219, %v2219
        %v2284 = vpack.c.bf16 %v2220, %v2220
        %v2285 = vpack.c.bf16 %v2221, %v2221
        %v2286 = vpack.c.bf16 %v2222, %v2222
        %v2287 = vpack.c.bf16 %v2223, %v2223
        %v2288 = vpack.c.bf16 %v2224, %v2224
        %v2289 = vpack.c.bf16 %v2225, %v2225
        %v2290 = vpack.c.bf16 %v2226, %v2226
        %v2291 = vpack.c.bf16 %v2227, %v2227
        %v2292 = vpack.c.bf16 %v2228, %v2228
        %v2293 = vpack.c.bf16 %v2229, %v2229
        %v2294 = vpack.c.bf16 %v2230, %v2230
        %v2295 = vpack.c.bf16 %v2231, %v2231
        %v2296 = vpack.c.bf16 %v2232, %v2232
        %v2297 = vpack.c.bf16 %v2233, %v2233
        %v2298 = vld [vmem:[%s10] sm:$0xf]
        %v2299 = vld [vmem:[%s10 + $0x4] sm:$0xf]
        %v2300 = vld [vmem:[%s11] sm:$0x1]
        %v2302 = vperm.slane %v2300, 0
        %v2368 = vunpack.c.l.b16 %v2234
        %v2369 = vunpack.c.l.b16 %v2235
        %v2370 = vunpack.c.l.b16 %v2236
        %v2371 = vunpack.c.l.b16 %v2237
        %v2372 = vunpack.c.l.b16 %v2238
        %v2373 = vunpack.c.l.b16 %v2239
        %v2374 = vunpack.c.l.b16 %v2240
        %v2375 = vunpack.c.l.b16 %v2241
        %v2376 = vunpack.c.l.b16 %v2242
        %v2377 = vunpack.c.l.b16 %v2243
        %v2378 = vunpack.c.l.b16 %v2244
        %v2379 = vunpack.c.l.b16 %v2245
        %v2380 = vunpack.c.l.b16 %v2246
        %v2381 = vunpack.c.l.b16 %v2247
        %v2382 = vunpack.c.l.b16 %v2248
        %v2383 = vunpack.c.l.b16 %v2249
        %v2384 = vunpack.c.l.b16 %v2250
        %v2385 = vunpack.c.l.b16 %v2251
        %v2386 = vunpack.c.l.b16 %v2252
        %v2387 = vunpack.c.l.b16 %v2253
        %v2388 = vunpack.c.l.b16 %v2254
        %v2389 = vunpack.c.l.b16 %v2255
        %v2390 = vunpack.c.l.b16 %v2256
        %v2391 = vunpack.c.l.b16 %v2257
        %v2392 = vunpack.c.l.b16 %v2258
        %v2393 = vunpack.c.l.b16 %v2259
        %v2394 = vunpack.c.l.b16 %v2260
        %v2395 = vunpack.c.l.b16 %v2261
        %v2396 = vunpack.c.l.b16 %v2262
        %v2397 = vunpack.c.l.b16 %v2263
        %v2398 = vunpack.c.l.b16 %v2264
        %v2399 = vunpack.c.l.b16 %v2265
        %v2400 = vunpack.c.l.b16 %v2266
        %v2401 = vunpack.c.l.b16 %v2267
        %v2402 = vunpack.c.l.b16 %v2268
        %v2403 = vunpack.c.l.b16 %v2269
        %v2404 = vunpack.c.l.b16 %v2270
        %v2405 = vunpack.c.l.b16 %v2271
        %v2406 = vunpack.c.l.b16 %v2272
        %v2407 = vunpack.c.l.b16 %v2273
        %v2408 = vunpack.c.l.b16 %v2274
        %v2409 = vunpack.c.l.b16 %v2275
        %v2410 = vunpack.c.l.b16 %v2276
        %v2411 = vunpack.c.l.b16 %v2277
        %v2412 = vunpack.c.l.b16 %v2278
        %v2413 = vunpack.c.l.b16 %v2279
        %v2414 = vunpack.c.l.b16 %v2280
        %v2415 = vunpack.c.l.b16 %v2281
        %v2416 = vunpack.c.l.b16 %v2282
        %v2417 = vunpack.c.l.b16 %v2283
        %v2418 = vunpack.c.l.b16 %v2284
        %v2419 = vunpack.c.l.b16 %v2285
        %v2420 = vunpack.c.l.b16 %v2286
        %v2421 = vunpack.c.l.b16 %v2287
        %v2422 = vunpack.c.l.b16 %v2288
        %v2423 = vunpack.c.l.b16 %v2289
        %v2424 = vunpack.c.l.b16 %v2290
        %v2425 = vunpack.c.l.b16 %v2291
        %v2426 = vunpack.c.l.b16 %v2292
        %v2427 = vunpack.c.l.b16 %v2293
        %v2428 = vunpack.c.l.b16 %v2294
        %v2429 = vunpack.c.l.b16 %v2295
        %v2430 = vunpack.c.l.b16 %v2296
        %v2431 = vunpack.c.l.b16 %v2297
        %v2432 = vpack.c.b16 %v2369, %v2368
        %v2433 = vpack.c.b16 %v2371, %v2370
        %v2434 = vpack.c.b16 %v2373, %v2372
        %v2435 = vpack.c.b16 %v2375, %v2374
        %v2436 = vpack.c.b16 %v2377, %v2376
        %v2437 = vpack.c.b16 %v2379, %v2378
        %v2438 = vpack.c.b16 %v2381, %v2380
        %v2439 = vpack.c.b16 %v2383, %v2382
        %v2440 = vpack.c.b16 %v2385, %v2384
        %v2441 = vpack.c.b16 %v2387, %v2386
        %v2442 = vpack.c.b16 %v2389, %v2388
        %v2443 = vpack.c.b16 %v2391, %v2390
        %v2444 = vpack.c.b16 %v2393, %v2392
        %v2445 = vpack.c.b16 %v2395, %v2394
        %v2446 = vpack.c.b16 %v2397, %v2396
        %v2447 = vpack.c.b16 %v2399, %v2398
        %v2448 = vpack.c.b16 %v2401, %v2400
        %v2449 = vpack.c.b16 %v2403, %v2402
        %v2450 = vpack.c.b16 %v2405, %v2404
        %v2451 = vpack.c.b16 %v2407, %v2406
        %v2452 = vpack.c.b16 %v2409, %v2408
        %v2453 = vpack.c.b16 %v2411, %v2410
        %v2454 = vpack.c.b16 %v2413, %v2412
        %v2455 = vpack.c.b16 %v2415, %v2414
        %v2456 = vpack.c.b16 %v2417, %v2416
        %v2457 = vpack.c.b16 %v2419, %v2418
        %v2458 = vpack.c.b16 %v2421, %v2420
        %v2459 = vpack.c.b16 %v2423, %v2422
        %v2460 = vpack.c.b16 %v2425, %v2424
        %v2461 = vpack.c.b16 %v2427, %v2426
        %v2462 = vpack.c.b16 %v2429, %v2428
        %v2463 = vpack.c.b16 %v2431, %v2430
        %v2466 = vunpack.c.l.b16 %v2298
        %v2467 = vunpack.c.l.b16 %v2299
        %v2468 = vpack.c.b16 %v2467, %v2466
        %v2471 = vsel %vm910, %v2432, 0
        %v2474 = vsel %vm910, %v2433, 0
        %v2477 = vsel %vm910, %v2434, 0
        %v2480 = vsel %vm910, %v2435, 0
        %v2483 = vsel %vm910, %v2436, 0
        %v2486 = vsel %vm910, %v2437, 0
        %v2489 = vsel %vm910, %v2438, 0
        %v2492 = vsel %vm910, %v2439, 0
        %v2495 = vsel %vm910, %v2440, 0
        %v2498 = vsel %vm910, %v2441, 0
        %v2501 = vsel %vm910, %v2442, 0
        %v2504 = vsel %vm910, %v2443, 0
        %v2507 = vsel %vm910, %v2444, 0
        %v2510 = vsel %vm910, %v2445, 0
        %v2513 = vsel %vm910, %v2446, 0
        %v2516 = vsel %vm910, %v2447, 0
        %v2519 = vsel %vm910, %v2448, 0
        %v2522 = vsel %vm910, %v2449, 0
        %v2525 = vsel %vm910, %v2450, 0
        %v2528 = vsel %vm910, %v2451, 0
        %v2531 = vsel %vm910, %v2452, 0
        %v2534 = vsel %vm910, %v2453, 0
        %v2537 = vsel %vm910, %v2454, 0
        %v2540 = vsel %vm910, %v2455, 0
        %v2543 = vsel %vm910, %v2456, 0
        %v2546 = vsel %vm910, %v2457, 0
        %v2549 = vsel %vm910, %v2458, 0
        %v2552 = vsel %vm910, %v2459, 0
        %v2555 = vsel %vm910, %v2460, 0
        %v2558 = vsel %vm910, %v2461, 0
        %v2561 = vsel %vm910, %v2462, 0
        %v2564 = vsel %vm910, %v2463, 0
        %2566 = vmatpush.bf16.msra.mxu0 0
        %2567 = vmatpush.bf16.msra.mxu0 0
        %2568 = vmatpush.bf16.msra.mxu0 0
        %2569 = vmatpush.bf16.msra.mxu0 0
        %2570 = vmatpush.bf16.msra.mxu0 0
        %2571 = vmatpush.bf16.msra.mxu0 0
        %2572 = vmatpush.bf16.msra.mxu0 0
        %2573 = vmatpush.bf16.msra.mxu0 %v2468
        %2574 = vmatmul.bf16.gmra.mxu0 %v2471
        %v2575 = vpop.f32.mrf.mxu0
        %v2576 = vadd.f32 %v2302, %v2575
        %v2577 = vpop.f32.mrf.mxu0
        %v2578 = vadd.f32 %v2302, %v2577
        %2579 = vmatmul.bf16.gmra.mxu0 %v2474
        %v2580 = vpop.f32.mrf.mxu0
        %v2581 = vadd.f32 %v2302, %v2580
        %v2582 = vpop.f32.mrf.mxu0
        %v2583 = vadd.f32 %v2302, %v2582
        %2584 = vmatmul.bf16.gmra.mxu0 %v2477
        %v2585 = vpop.f32.mrf.mxu0
        %v2586 = vadd.f32 %v2302, %v2585
        %v2587 = vpop.f32.mrf.mxu0
        %v2588 = vadd.f32 %v2302, %v2587
        %2589 = vmatmul.bf16.gmra.mxu0 %v2480
        %v2590 = vpop.f32.mrf.mxu0
        %v2591 = vadd.f32 %v2302, %v2590
        %v2592 = vpop.f32.mrf.mxu0
        %v2593 = vadd.f32 %v2302, %v2592
        %2594 = vmatmul.bf16.gmra.mxu0 %v2483
        %v2595 = vpop.f32.mrf.mxu0
        %v2596 = vadd.f32 %v2302, %v2595
        %v2597 = vpop.f32.mrf.mxu0
        %v2598 = vadd.f32 %v2302, %v2597
        %2599 = vmatmul.bf16.gmra.mxu0 %v2486
        %v2600 = vpop.f32.mrf.mxu0
        %v2601 = vadd.f32 %v2302, %v2600
        %v2602 = vpop.f32.mrf.mxu0
        %v2603 = vadd.f32 %v2302, %v2602
        %2604 = vmatmul.bf16.gmra.mxu0 %v2489
        %v2605 = vpop.f32.mrf.mxu0
        %v2606 = vadd.f32 %v2302, %v2605
        %v2607 = vpop.f32.mrf.mxu0
        %v2608 = vadd.f32 %v2302, %v2607
        %2609 = vmatmul.bf16.gmra.mxu0 %v2492
        %v2610 = vpop.f32.mrf.mxu0
        %v2611 = vadd.f32 %v2302, %v2610
        %v2612 = vpop.f32.mrf.mxu0
        %v2613 = vadd.f32 %v2302, %v2612
        %2614 = vmatmul.bf16.gmra.mxu0 %v2495
        %v2615 = vpop.f32.mrf.mxu0
        %v2616 = vadd.f32 %v2302, %v2615
        %v2617 = vpop.f32.mrf.mxu0
        %v2618 = vadd.f32 %v2302, %v2617
        %2619 = vmatmul.bf16.gmra.mxu0 %v2498
        %v2620 = vpop.f32.mrf.mxu0
        %v2621 = vadd.f32 %v2302, %v2620
        %v2622 = vpop.f32.mrf.mxu0
        %v2623 = vadd.f32 %v2302, %v2622
        %2624 = vmatmul.bf16.gmra.mxu0 %v2501
        %v2625 = vpop.f32.mrf.mxu0
        %v2626 = vadd.f32 %v2302, %v2625
        %v2627 = vpop.f32.mrf.mxu0
        %v2628 = vadd.f32 %v2302, %v2627
        %2629 = vmatmul.bf16.gmra.mxu0 %v2504
        %v2630 = vpop.f32.mrf.mxu0
        %v2631 = vadd.f32 %v2302, %v2630
        %v2632 = vpop.f32.mrf.mxu0
        %v2633 = vadd.f32 %v2302, %v2632
        %2634 = vmatmul.bf16.gmra.mxu0 %v2507
        %v2635 = vpop.f32.mrf.mxu0
        %v2636 = vadd.f32 %v2302, %v2635
        %v2637 = vpop.f32.mrf.mxu0
        %v2638 = vadd.f32 %v2302, %v2637
        %2639 = vmatmul.bf16.gmra.mxu0 %v2510
        %v2640 = vpop.f32.mrf.mxu0
        %v2641 = vadd.f32 %v2302, %v2640
        %v2642 = vpop.f32.mrf.mxu0
        %v2643 = vadd.f32 %v2302, %v2642
        %2644 = vmatmul.bf16.gmra.mxu0 %v2513
        %v2645 = vpop.f32.mrf.mxu0
        %v2646 = vadd.f32 %v2302, %v2645
        %v2647 = vpop.f32.mrf.mxu0
        %v2648 = vadd.f32 %v2302, %v2647
        %2649 = vmatmul.bf16.gmra.mxu0 %v2516
        %v2650 = vpop.f32.mrf.mxu0
        %v2651 = vadd.f32 %v2302, %v2650
        %v2652 = vpop.f32.mrf.mxu0
        %v2653 = vadd.f32 %v2302, %v2652
        %2654 = vmatmul.bf16.gmra.mxu0 %v2519
        %v2655 = vpop.f32.mrf.mxu0
        %v2656 = vadd.f32 %v2302, %v2655
        %v2657 = vpop.f32.mrf.mxu0
        %v2658 = vadd.f32 %v2302, %v2657
        %2659 = vmatmul.bf16.gmra.mxu0 %v2522
        %v2660 = vpop.f32.mrf.mxu0
        %v2661 = vadd.f32 %v2302, %v2660
        %v2662 = vpop.f32.mrf.mxu0
        %v2663 = vadd.f32 %v2302, %v2662
        %2664 = vmatmul.bf16.gmra.mxu0 %v2525
        %v2665 = vpop.f32.mrf.mxu0
        %v2666 = vadd.f32 %v2302, %v2665
        %v2667 = vpop.f32.mrf.mxu0
        %v2668 = vadd.f32 %v2302, %v2667
        %2669 = vmatmul.bf16.gmra.mxu0 %v2528
        %v2670 = vpop.f32.mrf.mxu0
        %v2671 = vadd.f32 %v2302, %v2670
        %v2672 = vpop.f32.mrf.mxu0
        %v2673 = vadd.f32 %v2302, %v2672
        %2674 = vmatmul.bf16.gmra.mxu0 %v2531
        %v2675 = vpop.f32.mrf.mxu0
        %v2676 = vadd.f32 %v2302, %v2675
        %v2677 = vpop.f32.mrf.mxu0
        %v2678 = vadd.f32 %v2302, %v2677
        %2679 = vmatmul.bf16.gmra.mxu0 %v2534
        %v2680 = vpop.f32.mrf.mxu0
        %v2681 = vadd.f32 %v2302, %v2680
        %v2682 = vpop.f32.mrf.mxu0
        %v2683 = vadd.f32 %v2302, %v2682
        %2684 = vmatmul.bf16.gmra.mxu0 %v2537
        %v2685 = vpop.f32.mrf.mxu0
        %v2686 = vadd.f32 %v2302, %v2685
        %v2687 = vpop.f32.mrf.mxu0
        %v2688 = vadd.f32 %v2302, %v2687
        %2689 = vmatmul.bf16.gmra.mxu0 %v2540
        %v2690 = vpop.f32.mrf.mxu0
        %v2691 = vadd.f32 %v2302, %v2690
        %v2692 = vpop.f32.mrf.mxu0
        %v2693 = vadd.f32 %v2302, %v2692
        %2694 = vmatmul.bf16.gmra.mxu0 %v2543
        %v2695 = vpop.f32.mrf.mxu0
        %v2696 = vadd.f32 %v2302, %v2695
        %v2697 = vpop.f32.mrf.mxu0
        %v2698 = vadd.f32 %v2302, %v2697
        %2699 = vmatmul.bf16.gmra.mxu0 %v2546
        %v2700 = vpop.f32.mrf.mxu0
        %v2701 = vadd.f32 %v2302, %v2700
        %v2702 = vpop.f32.mrf.mxu0
        %v2703 = vadd.f32 %v2302, %v2702
        %2704 = vmatmul.bf16.gmra.mxu0 %v2549
        %v2705 = vpop.f32.mrf.mxu0
        %v2706 = vadd.f32 %v2302, %v2705
        %v2707 = vpop.f32.mrf.mxu0
        %v2708 = vadd.f32 %v2302, %v2707
        %2709 = vmatmul.bf16.gmra.mxu0 %v2552
        %v2710 = vpop.f32.mrf.mxu0
        %v2711 = vadd.f32 %v2302, %v2710
        %v2712 = vpop.f32.mrf.mxu0
        %v2713 = vadd.f32 %v2302, %v2712
        %2714 = vmatmul.bf16.gmra.mxu0 %v2555
        %v2715 = vpop.f32.mrf.mxu0
        %v2716 = vadd.f32 %v2302, %v2715
        %v2717 = vpop.f32.mrf.mxu0
        %v2718 = vadd.f32 %v2302, %v2717
        %2719 = vmatmul.bf16.gmra.mxu0 %v2558
        %v2720 = vpop.f32.mrf.mxu0
        %v2721 = vadd.f32 %v2302, %v2720
        %v2722 = vpop.f32.mrf.mxu0
        %v2723 = vadd.f32 %v2302, %v2722
        %2724 = vmatmul.bf16.gmra.mxu0 %v2561
        %v2725 = vpop.f32.mrf.mxu0
        %v2726 = vadd.f32 %v2302, %v2725
        %v2727 = vpop.f32.mrf.mxu0
        %v2728 = vadd.f32 %v2302, %v2727
        %2729 = vmatmul.bf16.gmra.mxu0 %v2564
        %v2730 = vpop.f32.mrf.mxu0
        %v2731 = vadd.f32 %v2302, %v2730
        %v2732 = vpop.f32.mrf.mxu0
        %v2733 = vadd.f32 %v2302, %v2732
        %2734 = vdwg.mxu0
        %v2735 = vmax.f32 %v2576, 0.0
        %v2736 = vmax.f32 %v2578, 0.0
        %v2737 = vmax.f32 %v2581, 0.0
        %v2738 = vmax.f32 %v2583, 0.0
        %v2739 = vmax.f32 %v2586, 0.0
        %v2740 = vmax.f32 %v2588, 0.0
        %v2741 = vmax.f32 %v2591, 0.0
        %v2742 = vmax.f32 %v2593, 0.0
        %v2743 = vmax.f32 %v2596, 0.0
        %v2744 = vmax.f32 %v2598, 0.0
        %v2745 = vmax.f32 %v2601, 0.0
        %v2746 = vmax.f32 %v2603, 0.0
        %v2747 = vmax.f32 %v2606, 0.0
        %v2748 = vmax.f32 %v2608, 0.0
        %v2749 = vmax.f32 %v2611, 0.0
        %v2750 = vmax.f32 %v2613, 0.0
        %v2751 = vmax.f32 %v2616, 0.0
        %v2752 = vmax.f32 %v2618, 0.0
        %v2753 = vmax.f32 %v2621, 0.0
        %v2754 = vmax.f32 %v2623, 0.0
        %v2755 = vmax.f32 %v2626, 0.0
        %v2756 = vmax.f32 %v2628, 0.0
        %v2757 = vmax.f32 %v2631, 0.0
        %v2758 = vmax.f32 %v2633, 0.0
        %v2759 = vmax.f32 %v2636, 0.0
        %v2760 = vmax.f32 %v2638, 0.0
        %v2761 = vmax.f32 %v2641, 0.0
        %v2762 = vmax.f32 %v2643, 0.0
        %v2763 = vmax.f32 %v2646, 0.0
        %v2764 = vmax.f32 %v2648, 0.0
        %v2765 = vmax.f32 %v2651, 0.0
        %v2766 = vmax.f32 %v2653, 0.0
        %v2767 = vmax.f32 %v2656, 0.0
        %v2768 = vmax.f32 %v2658, 0.0
        %v2769 = vmax.f32 %v2661, 0.0
        %v2770 = vmax.f32 %v2663, 0.0
        %v2771 = vmax.f32 %v2666, 0.0
        %v2772 = vmax.f32 %v2668, 0.0
        %v2773 = vmax.f32 %v2671, 0.0
        %v2774 = vmax.f32 %v2673, 0.0
        %v2775 = vmax.f32 %v2676, 0.0
        %v2776 = vmax.f32 %v2678, 0.0
        %v2777 = vmax.f32 %v2681, 0.0
        %v2778 = vmax.f32 %v2683, 0.0
        %v2779 = vmax.f32 %v2686, 0.0
        %v2780 = vmax.f32 %v2688, 0.0
        %v2781 = vmax.f32 %v2691, 0.0
        %v2782 = vmax.f32 %v2693, 0.0
        %v2783 = vmax.f32 %v2696, 0.0
        %v2784 = vmax.f32 %v2698, 0.0
        %v2785 = vmax.f32 %v2701, 0.0
        %v2786 = vmax.f32 %v2703, 0.0
        %v2787 = vmax.f32 %v2706, 0.0
        %v2788 = vmax.f32 %v2708, 0.0
        %v2789 = vmax.f32 %v2711, 0.0
        %v2790 = vmax.f32 %v2713, 0.0
        %v2791 = vmax.f32 %v2716, 0.0
        %v2792 = vmax.f32 %v2718, 0.0
        %v2793 = vmax.f32 %v2721, 0.0
        %v2794 = vmax.f32 %v2723, 0.0
        %v2795 = vmax.f32 %v2726, 0.0
        %v2796 = vmax.f32 %v2728, 0.0
        %v2797 = vmax.f32 %v2731, 0.0
        %v2798 = vmax.f32 %v2733, 0.0
        %v2799 = vpack.c.bf16 %v2735, %v2735
        %v2800 = vpack.c.bf16 %v2736, %v2736
        %v2801 = vpack.c.bf16 %v2737, %v2737
        %v2802 = vpack.c.bf16 %v2738, %v2738
        %v2803 = vpack.c.bf16 %v2739, %v2739
        %v2804 = vpack.c.bf16 %v2740, %v2740
        %v2805 = vpack.c.bf16 %v2741, %v2741
        %v2806 = vpack.c.bf16 %v2742, %v2742
        %v2807 = vpack.c.bf16 %v2743, %v2743
        %v2808 = vpack.c.bf16 %v2744, %v2744
        %v2809 = vpack.c.bf16 %v2745, %v2745
        %v2810 = vpack.c.bf16 %v2746, %v2746
        %v2811 = vpack.c.bf16 %v2747, %v2747
        %v2812 = vpack.c.bf16 %v2748, %v2748
        %v2813 = vpack.c.bf16 %v2749, %v2749
        %v2814 = vpack.c.bf16 %v2750, %v2750
        %v2815 = vpack.c.bf16 %v2751, %v2751
        %v2816 = vpack.c.bf16 %v2752, %v2752
        %v2817 = vpack.c.bf16 %v2753, %v2753
        %v2818 = vpack.c.bf16 %v2754, %v2754
        %v2819 = vpack.c.bf16 %v2755, %v2755
        %v2820 = vpack.c.bf16 %v2756, %v2756
        %v2821 = vpack.c.bf16 %v2757, %v2757
        %v2822 = vpack.c.bf16 %v2758, %v2758
        %v2823 = vpack.c.bf16 %v2759, %v2759
        %v2824 = vpack.c.bf16 %v2760, %v2760
        %v2825 = vpack.c.bf16 %v2761, %v2761
        %v2826 = vpack.c.bf16 %v2762, %v2762
        %v2827 = vpack.c.bf16 %v2763, %v2763
        %v2828 = vpack.c.bf16 %v2764, %v2764
        %v2829 = vpack.c.bf16 %v2765, %v2765
        %v2830 = vpack.c.bf16 %v2766, %v2766
        %v2831 = vpack.c.bf16 %v2767, %v2767
        %v2832 = vpack.c.bf16 %v2768, %v2768
        %v2833 = vpack.c.bf16 %v2769, %v2769
        %v2834 = vpack.c.bf16 %v2770, %v2770
        %v2835 = vpack.c.bf16 %v2771, %v2771
        %v2836 = vpack.c.bf16 %v2772, %v2772
        %v2837 = vpack.c.bf16 %v2773, %v2773
        %v2838 = vpack.c.bf16 %v2774, %v2774
        %v2839 = vpack.c.bf16 %v2775, %v2775
        %v2840 = vpack.c.bf16 %v2776, %v2776
        %v2841 = vpack.c.bf16 %v2777, %v2777
        %v2842 = vpack.c.bf16 %v2778, %v2778
        %v2843 = vpack.c.bf16 %v2779, %v2779
        %v2844 = vpack.c.bf16 %v2780, %v2780
        %v2845 = vpack.c.bf16 %v2781, %v2781
        %v2846 = vpack.c.bf16 %v2782, %v2782
        %v2847 = vpack.c.bf16 %v2783, %v2783
        %v2848 = vpack.c.bf16 %v2784, %v2784
        %v2849 = vpack.c.bf16 %v2785, %v2785
        %v2850 = vpack.c.bf16 %v2786, %v2786
        %v2851 = vpack.c.bf16 %v2787, %v2787
        %v2852 = vpack.c.bf16 %v2788, %v2788
        %v2853 = vpack.c.bf16 %v2789, %v2789
        %v2854 = vpack.c.bf16 %v2790, %v2790
        %v2855 = vpack.c.bf16 %v2791, %v2791
        %v2856 = vpack.c.bf16 %v2792, %v2792
        %v2857 = vpack.c.bf16 %v2793, %v2793
        %v2858 = vpack.c.bf16 %v2794, %v2794
        %v2859 = vpack.c.bf16 %v2795, %v2795
        %v2860 = vpack.c.bf16 %v2796, %v2796
        %v2861 = vpack.c.bf16 %v2797, %v2797
        %v2862 = vpack.c.bf16 %v2798, %v2798
        %v2863 = vld [vmem:[%s12] sm:$0xf]
        %v2864 = vld [vmem:[%s12 + $0x4] sm:$0xf]
        %v2865 = vld [vmem:[%s13] sm:$0x1]
        %v2867 = vperm.slane %v2865, 0
        %v2933 = vunpack.c.l.b16 %v2799
        %v2934 = vunpack.c.l.b16 %v2800
        %v2935 = vunpack.c.l.b16 %v2801
        %v2936 = vunpack.c.l.b16 %v2802
        %v2937 = vunpack.c.l.b16 %v2803
        %v2938 = vunpack.c.l.b16 %v2804
        %v2939 = vunpack.c.l.b16 %v2805
        %v2940 = vunpack.c.l.b16 %v2806
        %v2941 = vunpack.c.l.b16 %v2807
        %v2942 = vunpack.c.l.b16 %v2808
        %v2943 = vunpack.c.l.b16 %v2809
        %v2944 = vunpack.c.l.b16 %v2810
        %v2945 = vunpack.c.l.b16 %v2811
        %v2946 = vunpack.c.l.b16 %v2812
        %v2947 = vunpack.c.l.b16 %v2813
        %v2948 = vunpack.c.l.b16 %v2814
        %v2949 = vunpack.c.l.b16 %v2815
        %v2950 = vunpack.c.l.b16 %v2816
        %v2951 = vunpack.c.l.b16 %v2817
        %v2952 = vunpack.c.l.b16 %v2818
        %v2953 = vunpack.c.l.b16 %v2819
        %v2954 = vunpack.c.l.b16 %v2820
        %v2955 = vunpack.c.l.b16 %v2821
        %v2956 = vunpack.c.l.b16 %v2822
        %v2957 = vunpack.c.l.b16 %v2823
        %v2958 = vunpack.c.l.b16 %v2824
        %v2959 = vunpack.c.l.b16 %v2825
        %v2960 = vunpack.c.l.b16 %v2826
        %v2961 = vunpack.c.l.b16 %v2827
        %v2962 = vunpack.c.l.b16 %v2828
        %v2963 = vunpack.c.l.b16 %v2829
        %v2964 = vunpack.c.l.b16 %v2830
        %v2965 = vunpack.c.l.b16 %v2831
        %v2966 = vunpack.c.l.b16 %v2832
        %v2967 = vunpack.c.l.b16 %v2833
        %v2968 = vunpack.c.l.b16 %v2834
        %v2969 = vunpack.c.l.b16 %v2835
        %v2970 = vunpack.c.l.b16 %v2836
        %v2971 = vunpack.c.l.b16 %v2837
        %v2972 = vunpack.c.l.b16 %v2838
        %v2973 = vunpack.c.l.b16 %v2839
        %v2974 = vunpack.c.l.b16 %v2840
        %v2975 = vunpack.c.l.b16 %v2841
        %v2976 = vunpack.c.l.b16 %v2842
        %v2977 = vunpack.c.l.b16 %v2843
        %v2978 = vunpack.c.l.b16 %v2844
        %v2979 = vunpack.c.l.b16 %v2845
        %v2980 = vunpack.c.l.b16 %v2846
        %v2981 = vunpack.c.l.b16 %v2847
        %v2982 = vunpack.c.l.b16 %v2848
        %v2983 = vunpack.c.l.b16 %v2849
        %v2984 = vunpack.c.l.b16 %v2850
        %v2985 = vunpack.c.l.b16 %v2851
        %v2986 = vunpack.c.l.b16 %v2852
        %v2987 = vunpack.c.l.b16 %v2853
        %v2988 = vunpack.c.l.b16 %v2854
        %v2989 = vunpack.c.l.b16 %v2855
        %v2990 = vunpack.c.l.b16 %v2856
        %v2991 = vunpack.c.l.b16 %v2857
        %v2992 = vunpack.c.l.b16 %v2858
        %v2993 = vunpack.c.l.b16 %v2859
        %v2994 = vunpack.c.l.b16 %v2860
        %v2995 = vunpack.c.l.b16 %v2861
        %v2996 = vunpack.c.l.b16 %v2862
        %v2997 = vpack.c.b16 %v2934, %v2933
        %v2998 = vpack.c.b16 %v2936, %v2935
        %v2999 = vpack.c.b16 %v2938, %v2937
        %v3000 = vpack.c.b16 %v2940, %v2939
        %v3001 = vpack.c.b16 %v2942, %v2941
        %v3002 = vpack.c.b16 %v2944, %v2943
        %v3003 = vpack.c.b16 %v2946, %v2945
        %v3004 = vpack.c.b16 %v2948, %v2947
        %v3005 = vpack.c.b16 %v2950, %v2949
        %v3006 = vpack.c.b16 %v2952, %v2951
        %v3007 = vpack.c.b16 %v2954, %v2953
        %v3008 = vpack.c.b16 %v2956, %v2955
        %v3009 = vpack.c.b16 %v2958, %v2957
        %v3010 = vpack.c.b16 %v2960, %v2959
        %v3011 = vpack.c.b16 %v2962, %v2961
        %v3012 = vpack.c.b16 %v2964, %v2963
        %v3013 = vpack.c.b16 %v2966, %v2965
        %v3014 = vpack.c.b16 %v2968, %v2967
        %v3015 = vpack.c.b16 %v2970, %v2969
        %v3016 = vpack.c.b16 %v2972, %v2971
        %v3017 = vpack.c.b16 %v2974, %v2973
        %v3018 = vpack.c.b16 %v2976, %v2975
        %v3019 = vpack.c.b16 %v2978, %v2977
        %v3020 = vpack.c.b16 %v2980, %v2979
        %v3021 = vpack.c.b16 %v2982, %v2981
        %v3022 = vpack.c.b16 %v2984, %v2983
        %v3023 = vpack.c.b16 %v2986, %v2985
        %v3024 = vpack.c.b16 %v2988, %v2987
        %v3025 = vpack.c.b16 %v2990, %v2989
        %v3026 = vpack.c.b16 %v2992, %v2991
        %v3027 = vpack.c.b16 %v2994, %v2993
        %v3028 = vpack.c.b16 %v2996, %v2995
        %v3031 = vunpack.c.l.b16 %v2863
        %v3032 = vunpack.c.l.b16 %v2864
        %v3033 = vpack.c.b16 %v3032, %v3031
        %v3036 = vsel %vm910, %v2997, 0
        %v3039 = vsel %vm910, %v2998, 0
        %v3042 = vsel %vm910, %v2999, 0
        %v3045 = vsel %vm910, %v3000, 0
        %v3048 = vsel %vm910, %v3001, 0
        %v3051 = vsel %vm910, %v3002, 0
        %v3054 = vsel %vm910, %v3003, 0
        %v3057 = vsel %vm910, %v3004, 0
        %v3060 = vsel %vm910, %v3005, 0
        %v3063 = vsel %vm910, %v3006, 0
        %v3066 = vsel %vm910, %v3007, 0
        %v3069 = vsel %vm910, %v3008, 0
        %v3072 = vsel %vm910, %v3009, 0
        %v3075 = vsel %vm910, %v3010, 0
        %v3078 = vsel %vm910, %v3011, 0
        %v3081 = vsel %vm910, %v3012, 0
        %v3084 = vsel %vm910, %v3013, 0
        %v3087 = vsel %vm910, %v3014, 0
        %v3090 = vsel %vm910, %v3015, 0
        %v3093 = vsel %vm910, %v3016, 0
        %v3096 = vsel %vm910, %v3017, 0
        %v3099 = vsel %vm910, %v3018, 0
        %v3102 = vsel %vm910, %v3019, 0
        %v3105 = vsel %vm910, %v3020, 0
        %v3108 = vsel %vm910, %v3021, 0
        %v3111 = vsel %vm910, %v3022, 0
        %v3114 = vsel %vm910, %v3023, 0
        %v3117 = vsel %vm910, %v3024, 0
        %v3120 = vsel %vm910, %v3025, 0
        %v3123 = vsel %vm910, %v3026, 0
        %v3126 = vsel %vm910, %v3027, 0
        %v3129 = vsel %vm910, %v3028, 0
        %3131 = vmatpush.bf16.msra.mxu0 0
        %3132 = vmatpush.bf16.msra.mxu0 0
        %3133 = vmatpush.bf16.msra.mxu0 0
        %3134 = vmatpush.bf16.msra.mxu0 0
        %3135 = vmatpush.bf16.msra.mxu0 0
        %3136 = vmatpush.bf16.msra.mxu0 0
        %3137 = vmatpush.bf16.msra.mxu0 0
        %3138 = vmatpush.bf16.msra.mxu0 %v3033
        %3139 = vmatmul.bf16.gmra.mxu0 %v3036
        %v3140 = vpop.f32.mrf.mxu0
        %v3141 = vadd.f32 %v2867, %v3140
        %v3142 = vpop.f32.mrf.mxu0
        %v3143 = vadd.f32 %v2867, %v3142
        %3144 = vmatmul.bf16.gmra.mxu0 %v3039
        %v3145 = vpop.f32.mrf.mxu0
        %v3146 = vadd.f32 %v2867, %v3145
        %v3147 = vpop.f32.mrf.mxu0
        %v3148 = vadd.f32 %v2867, %v3147
        %3149 = vmatmul.bf16.gmra.mxu0 %v3042
        %v3150 = vpop.f32.mrf.mxu0
        %v3151 = vadd.f32 %v2867, %v3150
        %v3152 = vpop.f32.mrf.mxu0
        %v3153 = vadd.f32 %v2867, %v3152
        %3154 = vmatmul.bf16.gmra.mxu0 %v3045
        %v3155 = vpop.f32.mrf.mxu0
        %v3156 = vadd.f32 %v2867, %v3155
        %v3157 = vpop.f32.mrf.mxu0
        %v3158 = vadd.f32 %v2867, %v3157
        %3159 = vmatmul.bf16.gmra.mxu0 %v3048
        %v3160 = vpop.f32.mrf.mxu0
        %v3161 = vadd.f32 %v2867, %v3160
        %v3162 = vpop.f32.mrf.mxu0
        %v3163 = vadd.f32 %v2867, %v3162
        %3164 = vmatmul.bf16.gmra.mxu0 %v3051
        %v3165 = vpop.f32.mrf.mxu0
        %v3166 = vadd.f32 %v2867, %v3165
        %v3167 = vpop.f32.mrf.mxu0
        %v3168 = vadd.f32 %v2867, %v3167
        %3169 = vmatmul.bf16.gmra.mxu0 %v3054
        %v3170 = vpop.f32.mrf.mxu0
        %v3171 = vadd.f32 %v2867, %v3170
        %v3172 = vpop.f32.mrf.mxu0
        %v3173 = vadd.f32 %v2867, %v3172
        %3174 = vmatmul.bf16.gmra.mxu0 %v3057
        %v3175 = vpop.f32.mrf.mxu0
        %v3176 = vadd.f32 %v2867, %v3175
        %v3177 = vpop.f32.mrf.mxu0
        %v3178 = vadd.f32 %v2867, %v3177
        %3179 = vmatmul.bf16.gmra.mxu0 %v3060
        %v3180 = vpop.f32.mrf.mxu0
        %v3181 = vadd.f32 %v2867, %v3180
        %v3182 = vpop.f32.mrf.mxu0
        %v3183 = vadd.f32 %v2867, %v3182
        %3184 = vmatmul.bf16.gmra.mxu0 %v3063
        %v3185 = vpop.f32.mrf.mxu0
        %v3186 = vadd.f32 %v2867, %v3185
        %v3187 = vpop.f32.mrf.mxu0
        %v3188 = vadd.f32 %v2867, %v3187
        %3189 = vmatmul.bf16.gmra.mxu0 %v3066
        %v3190 = vpop.f32.mrf.mxu0
        %v3191 = vadd.f32 %v2867, %v3190
        %v3192 = vpop.f32.mrf.mxu0
        %v3193 = vadd.f32 %v2867, %v3192
        %3194 = vmatmul.bf16.gmra.mxu0 %v3069
        %v3195 = vpop.f32.mrf.mxu0
        %v3196 = vadd.f32 %v2867, %v3195
        %v3197 = vpop.f32.mrf.mxu0
        %v3198 = vadd.f32 %v2867, %v3197
        %3199 = vmatmul.bf16.gmra.mxu0 %v3072
        %v3200 = vpop.f32.mrf.mxu0
        %v3201 = vadd.f32 %v2867, %v3200
        %v3202 = vpop.f32.mrf.mxu0
        %v3203 = vadd.f32 %v2867, %v3202
        %3204 = vmatmul.bf16.gmra.mxu0 %v3075
        %v3205 = vpop.f32.mrf.mxu0
        %v3206 = vadd.f32 %v2867, %v3205
        %v3207 = vpop.f32.mrf.mxu0
        %v3208 = vadd.f32 %v2867, %v3207
        %3209 = vmatmul.bf16.gmra.mxu0 %v3078
        %v3210 = vpop.f32.mrf.mxu0
        %v3211 = vadd.f32 %v2867, %v3210
        %v3212 = vpop.f32.mrf.mxu0
        %v3213 = vadd.f32 %v2867, %v3212
        %3214 = vmatmul.bf16.gmra.mxu0 %v3081
        %v3215 = vpop.f32.mrf.mxu0
        %v3216 = vadd.f32 %v2867, %v3215
        %v3217 = vpop.f32.mrf.mxu0
        %v3218 = vadd.f32 %v2867, %v3217
        %3219 = vmatmul.bf16.gmra.mxu0 %v3084
        %v3220 = vpop.f32.mrf.mxu0
        %v3221 = vadd.f32 %v2867, %v3220
        %v3222 = vpop.f32.mrf.mxu0
        %v3223 = vadd.f32 %v2867, %v3222
        %3224 = vmatmul.bf16.gmra.mxu0 %v3087
        %v3225 = vpop.f32.mrf.mxu0
        %v3226 = vadd.f32 %v2867, %v3225
        %v3227 = vpop.f32.mrf.mxu0
        %v3228 = vadd.f32 %v2867, %v3227
        %3229 = vmatmul.bf16.gmra.mxu0 %v3090
        %v3230 = vpop.f32.mrf.mxu0
        %v3231 = vadd.f32 %v2867, %v3230
        %v3232 = vpop.f32.mrf.mxu0
        %v3233 = vadd.f32 %v2867, %v3232
        %3234 = vmatmul.bf16.gmra.mxu0 %v3093
        %v3235 = vpop.f32.mrf.mxu0
        %v3236 = vadd.f32 %v2867, %v3235
        %v3237 = vpop.f32.mrf.mxu0
        %v3238 = vadd.f32 %v2867, %v3237
        %3239 = vmatmul.bf16.gmra.mxu0 %v3096
        %v3240 = vpop.f32.mrf.mxu0
        %v3241 = vadd.f32 %v2867, %v3240
        %v3242 = vpop.f32.mrf.mxu0
        %v3243 = vadd.f32 %v2867, %v3242
        %3244 = vmatmul.bf16.gmra.mxu0 %v3099
        %v3245 = vpop.f32.mrf.mxu0
        %v3246 = vadd.f32 %v2867, %v3245
        %v3247 = vpop.f32.mrf.mxu0
        %v3248 = vadd.f32 %v2867, %v3247
        %3249 = vmatmul.bf16.gmra.mxu0 %v3102
        %v3250 = vpop.f32.mrf.mxu0
        %v3251 = vadd.f32 %v2867, %v3250
        %v3252 = vpop.f32.mrf.mxu0
        %v3253 = vadd.f32 %v2867, %v3252
        %3254 = vmatmul.bf16.gmra.mxu0 %v3105
        %v3255 = vpop.f32.mrf.mxu0
        %v3256 = vadd.f32 %v2867, %v3255
        %v3257 = vpop.f32.mrf.mxu0
        %v3258 = vadd.f32 %v2867, %v3257
        %3259 = vmatmul.bf16.gmra.mxu0 %v3108
        %v3260 = vpop.f32.mrf.mxu0
        %v3261 = vadd.f32 %v2867, %v3260
        %v3262 = vpop.f32.mrf.mxu0
        %v3263 = vadd.f32 %v2867, %v3262
        %3264 = vmatmul.bf16.gmra.mxu0 %v3111
        %v3265 = vpop.f32.mrf.mxu0
        %v3266 = vadd.f32 %v2867, %v3265
        %v3267 = vpop.f32.mrf.mxu0
        %v3268 = vadd.f32 %v2867, %v3267
        %3269 = vmatmul.bf16.gmra.mxu0 %v3114
        %v3270 = vpop.f32.mrf.mxu0
        %v3271 = vadd.f32 %v2867, %v3270
        %v3272 = vpop.f32.mrf.mxu0
        %v3273 = vadd.f32 %v2867, %v3272
        %3274 = vmatmul.bf16.gmra.mxu0 %v3117
        %v3275 = vpop.f32.mrf.mxu0
        %v3276 = vadd.f32 %v2867, %v3275
        %v3277 = vpop.f32.mrf.mxu0
        %v3278 = vadd.f32 %v2867, %v3277
        %3279 = vmatmul.bf16.gmra.mxu0 %v3120
        %v3280 = vpop.f32.mrf.mxu0
        %v3281 = vadd.f32 %v2867, %v3280
        %v3282 = vpop.f32.mrf.mxu0
        %v3283 = vadd.f32 %v2867, %v3282
        %3284 = vmatmul.bf16.gmra.mxu0 %v3123
        %v3285 = vpop.f32.mrf.mxu0
        %v3286 = vadd.f32 %v2867, %v3285
        %v3287 = vpop.f32.mrf.mxu0
        %v3288 = vadd.f32 %v2867, %v3287
        %3289 = vmatmul.bf16.gmra.mxu0 %v3126
        %v3290 = vpop.f32.mrf.mxu0
        %v3291 = vadd.f32 %v2867, %v3290
        %v3292 = vpop.f32.mrf.mxu0
        %v3293 = vadd.f32 %v2867, %v3292
        %3294 = vmatmul.bf16.gmra.mxu0 %v3129
        %v3295 = vpop.f32.mrf.mxu0
        %v3296 = vadd.f32 %v2867, %v3295
        %v3297 = vpop.f32.mrf.mxu0
        %v3298 = vadd.f32 %v2867, %v3297
        %3299 = vdwg.mxu0
        %v3300 = vmax.f32 %v3141, 0.0
        %v3301 = vmax.f32 %v3143, 0.0
        %v3302 = vmax.f32 %v3146, 0.0
        %v3303 = vmax.f32 %v3148, 0.0
        %v3304 = vmax.f32 %v3151, 0.0
        %v3305 = vmax.f32 %v3153, 0.0
        %v3306 = vmax.f32 %v3156, 0.0
        %v3307 = vmax.f32 %v3158, 0.0
        %v3308 = vmax.f32 %v3161, 0.0
        %v3309 = vmax.f32 %v3163, 0.0
        %v3310 = vmax.f32 %v3166, 0.0
        %v3311 = vmax.f32 %v3168, 0.0
        %v3312 = vmax.f32 %v3171, 0.0
        %v3313 = vmax.f32 %v3173, 0.0
        %v3314 = vmax.f32 %v3176, 0.0
        %v3315 = vmax.f32 %v3178, 0.0
        %v3316 = vmax.f32 %v3181, 0.0
        %v3317 = vmax.f32 %v3183, 0.0
        %v3318 = vmax.f32 %v3186, 0.0
        %v3319 = vmax.f32 %v3188, 0.0
        %v3320 = vmax.f32 %v3191, 0.0
        %v3321 = vmax.f32 %v3193, 0.0
        %v3322 = vmax.f32 %v3196, 0.0
        %v3323 = vmax.f32 %v3198, 0.0
        %v3324 = vmax.f32 %v3201, 0.0
        %v3325 = vmax.f32 %v3203, 0.0
        %v3326 = vmax.f32 %v3206, 0.0
        %v3327 = vmax.f32 %v3208, 0.0
        %v3328 = vmax.f32 %v3211, 0.0
        %v3329 = vmax.f32 %v3213, 0.0
        %v3330 = vmax.f32 %v3216, 0.0
        %v3331 = vmax.f32 %v3218, 0.0
        %v3332 = vmax.f32 %v3221, 0.0
        %v3333 = vmax.f32 %v3223, 0.0
        %v3334 = vmax.f32 %v3226, 0.0
        %v3335 = vmax.f32 %v3228, 0.0
        %v3336 = vmax.f32 %v3231, 0.0
        %v3337 = vmax.f32 %v3233, 0.0
        %v3338 = vmax.f32 %v3236, 0.0
        %v3339 = vmax.f32 %v3238, 0.0
        %v3340 = vmax.f32 %v3241, 0.0
        %v3341 = vmax.f32 %v3243, 0.0
        %v3342 = vmax.f32 %v3246, 0.0
        %v3343 = vmax.f32 %v3248, 0.0
        %v3344 = vmax.f32 %v3251, 0.0
        %v3345 = vmax.f32 %v3253, 0.0
        %v3346 = vmax.f32 %v3256, 0.0
        %v3347 = vmax.f32 %v3258, 0.0
        %v3348 = vmax.f32 %v3261, 0.0
        %v3349 = vmax.f32 %v3263, 0.0
        %v3350 = vmax.f32 %v3266, 0.0
        %v3351 = vmax.f32 %v3268, 0.0
        %v3352 = vmax.f32 %v3271, 0.0
        %v3353 = vmax.f32 %v3273, 0.0
        %v3354 = vmax.f32 %v3276, 0.0
        %v3355 = vmax.f32 %v3278, 0.0
        %v3356 = vmax.f32 %v3281, 0.0
        %v3357 = vmax.f32 %v3283, 0.0
        %v3358 = vmax.f32 %v3286, 0.0
        %v3359 = vmax.f32 %v3288, 0.0
        %v3360 = vmax.f32 %v3291, 0.0
        %v3361 = vmax.f32 %v3293, 0.0
        %v3362 = vmax.f32 %v3296, 0.0
        %v3363 = vmax.f32 %v3298, 0.0
        %v3364 = vsel %vm1373, %v3300, -inf
        %v3365 = vsel %vm1373, %v3301, -inf
        %v3366 = vmax.f32 %v3364, %v3365
        %v3367 = vrot.slane %v3366, 4
        %v3368 = vmax.f32 %v3366, %v3367
        %v3369 = vrot.slane %v3368, 2
        %v3370 = vmax.f32 %v3368, %v3369
        %v3371 = vrot.slane %v3370, 1
        %v3372 = vmax.f32 %v3370, %v3371
        %v3373 = vsel %vm1373, %v3302, -inf
        %v3374 = vsel %vm1373, %v3303, -inf
        %v3375 = vmax.f32 %v3373, %v3374
        %v3376 = vrot.slane %v3375, 4
        %v3377 = vmax.f32 %v3375, %v3376
        %v3378 = vrot.slane %v3377, 2
        %v3379 = vmax.f32 %v3377, %v3378
        %v3380 = vrot.slane %v3379, 1
        %v3381 = vmax.f32 %v3379, %v3380
        %v3382 = vsel %vm1373, %v3304, -inf
        %v3383 = vsel %vm1373, %v3305, -inf
        %v3384 = vmax.f32 %v3382, %v3383
        %v3385 = vrot.slane %v3384, 4
        %v3386 = vmax.f32 %v3384, %v3385
        %v3387 = vrot.slane %v3386, 2
        %v3388 = vmax.f32 %v3386, %v3387
        %v3389 = vrot.slane %v3388, 1
        %v3390 = vmax.f32 %v3388, %v3389
        %v3391 = vsel %vm1373, %v3306, -inf
        %v3392 = vsel %vm1373, %v3307, -inf
        %v3393 = vmax.f32 %v3391, %v3392
        %v3394 = vrot.slane %v3393, 4
        %v3395 = vmax.f32 %v3393, %v3394
        %v3396 = vrot.slane %v3395, 2
        %v3397 = vmax.f32 %v3395, %v3396
        %v3398 = vrot.slane %v3397, 1
        %v3399 = vmax.f32 %v3397, %v3398
        %v3400 = vsel %vm1373, %v3308, -inf
        %v3401 = vsel %vm1373, %v3309, -inf
        %v3402 = vmax.f32 %v3400, %v3401
        %v3403 = vrot.slane %v3402, 4
        %v3404 = vmax.f32 %v3402, %v3403
        %v3405 = vrot.slane %v3404, 2
        %v3406 = vmax.f32 %v3404, %v3405
        %v3407 = vrot.slane %v3406, 1
        %v3408 = vmax.f32 %v3406, %v3407
        %v3409 = vsel %vm1373, %v3310, -inf
        %v3410 = vsel %vm1373, %v3311, -inf
        %v3411 = vmax.f32 %v3409, %v3410
        %v3412 = vrot.slane %v3411, 4
        %v3413 = vmax.f32 %v3411, %v3412
        %v3414 = vrot.slane %v3413, 2
        %v3415 = vmax.f32 %v3413, %v3414
        %v3416 = vrot.slane %v3415, 1
        %v3417 = vmax.f32 %v3415, %v3416
        %v3418 = vsel %vm1373, %v3312, -inf
        %v3419 = vsel %vm1373, %v3313, -inf
        %v3420 = vmax.f32 %v3418, %v3419
        %v3421 = vrot.slane %v3420, 4
        %v3422 = vmax.f32 %v3420, %v3421
        %v3423 = vrot.slane %v3422, 2
        %v3424 = vmax.f32 %v3422, %v3423
        %v3425 = vrot.slane %v3424, 1
        %v3426 = vmax.f32 %v3424, %v3425
        %v3427 = vsel %vm1373, %v3314, -inf
        %v3428 = vsel %vm1373, %v3315, -inf
        %v3429 = vmax.f32 %v3427, %v3428
        %v3430 = vrot.slane %v3429, 4
        %v3431 = vmax.f32 %v3429, %v3430
        %v3432 = vrot.slane %v3431, 2
        %v3433 = vmax.f32 %v3431, %v3432
        %v3434 = vrot.slane %v3433, 1
        %v3435 = vmax.f32 %v3433, %v3434
        %v3436 = vsel %vm1373, %v3316, -inf
        %v3437 = vsel %vm1373, %v3317, -inf
        %v3438 = vmax.f32 %v3436, %v3437
        %v3439 = vrot.slane %v3438, 4
        %v3440 = vmax.f32 %v3438, %v3439
        %v3441 = vrot.slane %v3440, 2
        %v3442 = vmax.f32 %v3440, %v3441
        %v3443 = vrot.slane %v3442, 1
        %v3444 = vmax.f32 %v3442, %v3443
        %v3445 = vsel %vm1373, %v3318, -inf
        %v3446 = vsel %vm1373, %v3319, -inf
        %v3447 = vmax.f32 %v3445, %v3446
        %v3448 = vrot.slane %v3447, 4
        %v3449 = vmax.f32 %v3447, %v3448
        %v3450 = vrot.slane %v3449, 2
        %v3451 = vmax.f32 %v3449, %v3450
        %v3452 = vrot.slane %v3451, 1
        %v3453 = vmax.f32 %v3451, %v3452
        %v3454 = vsel %vm1373, %v3320, -inf
        %v3455 = vsel %vm1373, %v3321, -inf
        %v3456 = vmax.f32 %v3454, %v3455
        %v3457 = vrot.slane %v3456, 4
        %v3458 = vmax.f32 %v3456, %v3457
        %v3459 = vrot.slane %v3458, 2
        %v3460 = vmax.f32 %v3458, %v3459
        %v3461 = vrot.slane %v3460, 1
        %v3462 = vmax.f32 %v3460, %v3461
        %v3463 = vsel %vm1373, %v3322, -inf
        %v3464 = vsel %vm1373, %v3323, -inf
        %v3465 = vmax.f32 %v3463, %v3464
        %v3466 = vrot.slane %v3465, 4
        %v3467 = vmax.f32 %v3465, %v3466
        %v3468 = vrot.slane %v3467, 2
        %v3469 = vmax.f32 %v3467, %v3468
        %v3470 = vrot.slane %v3469, 1
        %v3471 = vmax.f32 %v3469, %v3470
        %v3472 = vsel %vm1373, %v3324, -inf
        %v3473 = vsel %vm1373, %v3325, -inf
        %v3474 = vmax.f32 %v3472, %v3473
        %v3475 = vrot.slane %v3474, 4
        %v3476 = vmax.f32 %v3474, %v3475
        %v3477 = vrot.slane %v3476, 2
        %v3478 = vmax.f32 %v3476, %v3477
        %v3479 = vrot.slane %v3478, 1
        %v3480 = vmax.f32 %v3478, %v3479
        %v3481 = vsel %vm1373, %v3326, -inf
        %v3482 = vsel %vm1373, %v3327, -inf
        %v3483 = vmax.f32 %v3481, %v3482
        %v3484 = vrot.slane %v3483, 4
        %v3485 = vmax.f32 %v3483, %v3484
        %v3486 = vrot.slane %v3485, 2
        %v3487 = vmax.f32 %v3485, %v3486
        %v3488 = vrot.slane %v3487, 1
        %v3489 = vmax.f32 %v3487, %v3488
        %v3490 = vsel %vm1373, %v3328, -inf
        %v3491 = vsel %vm1373, %v3329, -inf
        %v3492 = vmax.f32 %v3490, %v3491
        %v3493 = vrot.slane %v3492, 4
        %v3494 = vmax.f32 %v3492, %v3493
        %v3495 = vrot.slane %v3494, 2
        %v3496 = vmax.f32 %v3494, %v3495
        %v3497 = vrot.slane %v3496, 1
        %v3498 = vmax.f32 %v3496, %v3497
        %v3499 = vsel %vm1373, %v3330, -inf
        %v3500 = vsel %vm1373, %v3331, -inf
        %v3501 = vmax.f32 %v3499, %v3500
        %v3502 = vrot.slane %v3501, 4
        %v3503 = vmax.f32 %v3501, %v3502
        %v3504 = vrot.slane %v3503, 2
        %v3505 = vmax.f32 %v3503, %v3504
        %v3506 = vrot.slane %v3505, 1
        %v3507 = vmax.f32 %v3505, %v3506
        %v3508 = vsel %vm1373, %v3332, -inf
        %v3509 = vsel %vm1373, %v3333, -inf
        %v3510 = vmax.f32 %v3508, %v3509
        %v3511 = vrot.slane %v3510, 4
        %v3512 = vmax.f32 %v3510, %v3511
        %v3513 = vrot.slane %v3512, 2
        %v3514 = vmax.f32 %v3512, %v3513
        %v3515 = vrot.slane %v3514, 1
        %v3516 = vmax.f32 %v3514, %v3515
        %v3517 = vsel %vm1373, %v3334, -inf
        %v3518 = vsel %vm1373, %v3335, -inf
        %v3519 = vmax.f32 %v3517, %v3518
        %v3520 = vrot.slane %v3519, 4
        %v3521 = vmax.f32 %v3519, %v3520
        %v3522 = vrot.slane %v3521, 2
        %v3523 = vmax.f32 %v3521, %v3522
        %v3524 = vrot.slane %v3523, 1
        %v3525 = vmax.f32 %v3523, %v3524
        %v3526 = vsel %vm1373, %v3336, -inf
        %v3527 = vsel %vm1373, %v3337, -inf
        %v3528 = vmax.f32 %v3526, %v3527
        %v3529 = vrot.slane %v3528, 4
        %v3530 = vmax.f32 %v3528, %v3529
        %v3531 = vrot.slane %v3530, 2
        %v3532 = vmax.f32 %v3530, %v3531
        %v3533 = vrot.slane %v3532, 1
        %v3534 = vmax.f32 %v3532, %v3533
        %v3535 = vsel %vm1373, %v3338, -inf
        %v3536 = vsel %vm1373, %v3339, -inf
        %v3537 = vmax.f32 %v3535, %v3536
        %v3538 = vrot.slane %v3537, 4
        %v3539 = vmax.f32 %v3537, %v3538
        %v3540 = vrot.slane %v3539, 2
        %v3541 = vmax.f32 %v3539, %v3540
        %v3542 = vrot.slane %v3541, 1
        %v3543 = vmax.f32 %v3541, %v3542
        %v3544 = vsel %vm1373, %v3340, -inf
        %v3545 = vsel %vm1373, %v3341, -inf
        %v3546 = vmax.f32 %v3544, %v3545
        %v3547 = vrot.slane %v3546, 4
        %v3548 = vmax.f32 %v3546, %v3547
        %v3549 = vrot.slane %v3548, 2
        %v3550 = vmax.f32 %v3548, %v3549
        %v3551 = vrot.slane %v3550, 1
        %v3552 = vmax.f32 %v3550, %v3551
        %v3553 = vsel %vm1373, %v3342, -inf
        %v3554 = vsel %vm1373, %v3343, -inf
        %v3555 = vmax.f32 %v3553, %v3554
        %v3556 = vrot.slane %v3555, 4
        %v3557 = vmax.f32 %v3555, %v3556
        %v3558 = vrot.slane %v3557, 2
        %v3559 = vmax.f32 %v3557, %v3558
        %v3560 = vrot.slane %v3559, 1
        %v3561 = vmax.f32 %v3559, %v3560
        %v3562 = vsel %vm1373, %v3344, -inf
        %v3563 = vsel %vm1373, %v3345, -inf
        %v3564 = vmax.f32 %v3562, %v3563
        %v3565 = vrot.slane %v3564, 4
        %v3566 = vmax.f32 %v3564, %v3565
        %v3567 = vrot.slane %v3566, 2
        %v3568 = vmax.f32 %v3566, %v3567
        %v3569 = vrot.slane %v3568, 1
        %v3570 = vmax.f32 %v3568, %v3569
        %v3571 = vsel %vm1373, %v3346, -inf
        %v3572 = vsel %vm1373, %v3347, -inf
        %v3573 = vmax.f32 %v3571, %v3572
        %v3574 = vrot.slane %v3573, 4
        %v3575 = vmax.f32 %v3573, %v3574
        %v3576 = vrot.slane %v3575, 2
        %v3577 = vmax.f32 %v3575, %v3576
        %v3578 = vrot.slane %v3577, 1
        %v3579 = vmax.f32 %v3577, %v3578
        %v3580 = vsel %vm1373, %v3348, -inf
        %v3581 = vsel %vm1373, %v3349, -inf
        %v3582 = vmax.f32 %v3580, %v3581
        %v3583 = vrot.slane %v3582, 4
        %v3584 = vmax.f32 %v3582, %v3583
        %v3585 = vrot.slane %v3584, 2
        %v3586 = vmax.f32 %v3584, %v3585
        %v3587 = vrot.slane %v3586, 1
        %v3588 = vmax.f32 %v3586, %v3587
        %v3589 = vsel %vm1373, %v3350, -inf
        %v3590 = vsel %vm1373, %v3351, -inf
        %v3591 = vmax.f32 %v3589, %v3590
        %v3592 = vrot.slane %v3591, 4
        %v3593 = vmax.f32 %v3591, %v3592
        %v3594 = vrot.slane %v3593, 2
        %v3595 = vmax.f32 %v3593, %v3594
        %v3596 = vrot.slane %v3595, 1
        %v3597 = vmax.f32 %v3595, %v3596
        %v3598 = vsel %vm1373, %v3352, -inf
        %v3599 = vsel %vm1373, %v3353, -inf
        %v3600 = vmax.f32 %v3598, %v3599
        %v3601 = vrot.slane %v3600, 4
        %v3602 = vmax.f32 %v3600, %v3601
        %v3603 = vrot.slane %v3602, 2
        %v3604 = vmax.f32 %v3602, %v3603
        %v3605 = vrot.slane %v3604, 1
        %v3606 = vmax.f32 %v3604, %v3605
        %v3607 = vsel %vm1373, %v3354, -inf
        %v3608 = vsel %vm1373, %v3355, -inf
        %v3609 = vmax.f32 %v3607, %v3608
        %v3610 = vrot.slane %v3609, 4
        %v3611 = vmax.f32 %v3609, %v3610
        %v3612 = vrot.slane %v3611, 2
        %v3613 = vmax.f32 %v3611, %v3612
        %v3614 = vrot.slane %v3613, 1
        %v3615 = vmax.f32 %v3613, %v3614
        %v3616 = vsel %vm1373, %v3356, -inf
        %v3617 = vsel %vm1373, %v3357, -inf
        %v3618 = vmax.f32 %v3616, %v3617
        %v3619 = vrot.slane %v3618, 4
        %v3620 = vmax.f32 %v3618, %v3619
        %v3621 = vrot.slane %v3620, 2
        %v3622 = vmax.f32 %v3620, %v3621
        %v3623 = vrot.slane %v3622, 1
        %v3624 = vmax.f32 %v3622, %v3623
        %v3625 = vsel %vm1373, %v3358, -inf
        %v3626 = vsel %vm1373, %v3359, -inf
        %v3627 = vmax.f32 %v3625, %v3626
        %v3628 = vrot.slane %v3627, 4
        %v3629 = vmax.f32 %v3627, %v3628
        %v3630 = vrot.slane %v3629, 2
        %v3631 = vmax.f32 %v3629, %v3630
        %v3632 = vrot.slane %v3631, 1
        %v3633 = vmax.f32 %v3631, %v3632
        %v3634 = vsel %vm1373, %v3360, -inf
        %v3635 = vsel %vm1373, %v3361, -inf
        %v3636 = vmax.f32 %v3634, %v3635
        %v3637 = vrot.slane %v3636, 4
        %v3638 = vmax.f32 %v3636, %v3637
        %v3639 = vrot.slane %v3638, 2
        %v3640 = vmax.f32 %v3638, %v3639
        %v3641 = vrot.slane %v3640, 1
        %v3642 = vmax.f32 %v3640, %v3641
        %v3643 = vsel %vm1373, %v3362, -inf
        %v3644 = vsel %vm1373, %v3363, -inf
        %v3645 = vmax.f32 %v3643, %v3644
        %v3646 = vrot.slane %v3645, 4
        %v3647 = vmax.f32 %v3645, %v3646
        %v3648 = vrot.slane %v3647, 2
        %v3649 = vmax.f32 %v3647, %v3648
        %v3650 = vrot.slane %v3649, 1
        %v3651 = vmax.f32 %v3649, %v3650
        %v3684 = vsel %vm1630, %v3381, %v3372
        %v3685 = vsel %vm1632, %v3390, %v3684
        %v3686 = vsel %vm1634, %v3399, %v3685
        %v3687 = vsel %vm1636, %v3408, %v3686
        %v3688 = vsel %vm1638, %v3417, %v3687
        %v3689 = vsel %vm1640, %v3426, %v3688
        %v3690 = vsel %vm1642, %v3435, %v3689
        %v3691 = vsel %vm1630, %v3453, %v3444
        %v3692 = vsel %vm1632, %v3462, %v3691
        %v3693 = vsel %vm1634, %v3471, %v3692
        %v3694 = vsel %vm1636, %v3480, %v3693
        %v3695 = vsel %vm1638, %v3489, %v3694
        %v3696 = vsel %vm1640, %v3498, %v3695
        %v3697 = vsel %vm1642, %v3507, %v3696
        %v3698 = vsel %vm1630, %v3525, %v3516
        %v3699 = vsel %vm1632, %v3534, %v3698
        %v3700 = vsel %vm1634, %v3543, %v3699
        %v3701 = vsel %vm1636, %v3552, %v3700
        %v3702 = vsel %vm1638, %v3561, %v3701
        %v3703 = vsel %vm1640, %v3570, %v3702
        %v3704 = vsel %vm1642, %v3579, %v3703
        %v3705 = vsel %vm1630, %v3597, %v3588
        %v3706 = vsel %vm1632, %v3606, %v3705
        %v3707 = vsel %vm1634, %v3615, %v3706
        %v3708 = vsel %vm1636, %v3624, %v3707
        %v3709 = vsel %vm1638, %v3633, %v3708
        %v3710 = vsel %vm1640, %v3642, %v3709
        %v3711 = vsel %vm1642, %v3651, %v3710
        %3712 = vrot.lane.b32.xlu0 %v3690, 32
        %v3713 = vpop.permute.xlu0 %3712
        %3714 = vrot.lane.b32.xlu0 %v3697, 32
        %v3715 = vpop.permute.xlu0 %3714
        %3716 = vrot.lane.b32.xlu0 %v3704, 32
        %v3717 = vpop.permute.xlu0 %3716
        %3718 = vrot.lane.b32.xlu0 %v3711, 32
        %v3719 = vpop.permute.xlu0 %3718
        %vm3724 = vcmask 523520
        %3725 = vst.msk [vmem:[%s479] sm:$0xff] %vm3724, %v3713
        %3726 = vst.msk [vmem:[%s479 + $0x8] sm:$0xff] %vm3724, %v3715
        %3727 = vst.msk [vmem:[%s479 + $0x10] sm:$0xff] %vm3724, %v3717
        %3728 = vst.msk [vmem:[%s479 + $0x18] sm:$0xff] %vm3724, %v3719
        %s3729 = sand.u32 %s340, 1
        %s3730 = scalar_lea.sflag [#allocation3], %s3729
        %s3731 = sand.u32 %s340, 1
        %s3732 = smul.addr %s3731, 32
        %s3733 = scalar_lea.vmem [#allocation2], %s3732
        // Predicated region
        $region77: #{tpu_custom_call.1} parent=75 // pred_check
          %p3734 = pneg %p350
        $region78: #{tpu_custom_call.1} parent=75 // pred_check_branch
          %3736 = sbr.rel (%p3734) target = $region80
        $region79: #{tpu_custom_call.1} parent=75 // pred_region
          %s3737 = smul.u32 4, %s28
          %3739 = vsyncadd %s3730, 0
          %s3740 = smul.addr %s3737, 8
          %s3741 = scalar_lea.hbm %s14, %s3740
          %s3742 = sshll.u32 %s3733, 4
          %s3743 = int_to_ptr.vmem [resolvable:$true] %s3742
          %s3744 = sshll.u32 %s3741, 4
          %s3745 = int_to_ptr.hbm [resolvable:$true] %s3744
          %3750 = dma.vmem_to_hbm [thread:$0]  %s3743, 512, %s3745, %s3730, 128, 128, 8
        $region80: #{tpu_custom_call.1} parent=75 // pred_fallthru
          _
      $region76: #{tpu_custom_call.1} parent=5 // pred_fallthru
        _
      %p3751 = scmp.le.s32.totalorder 2, %s23
      // Predicated region
      $region81: #{tpu_custom_call.1} parent=5 // pred_check
        %p3752 = pneg %p3751
      $region82: #{tpu_custom_call.1} parent=5 // pred_check_branch
        %3754 = sbr.rel (%p3752) target = $region84
      $region83: #{tpu_custom_call.1} parent=5 // pred_region
        %s3755 = ssub.s32 %s23, 2
        // Predicated region
        $region85: #{tpu_custom_call.1} parent=83 // pred_check
          %p3756 = pneg %p356
        $region86: #{tpu_custom_call.1} parent=83 // pred_check_branch
          %3758 = sbr.rel (%p3756) target = $region88
        $region87: #{tpu_custom_call.1} parent=83 // pred_region
          %s3759 = sand.u32 %s341, 1
          %s3760 = scalar_lea.sflag [#allocation3], %s3759
          %s3761 = sand.u32 %s341, 1
          %s3762 = smul.addr %s3761, 32
          %s3763 = scalar_lea.vmem [#allocation2], %s3762
          %3765 = dma.done %s3760, 512
        $region88: #{tpu_custom_call.1} parent=83 // pred_fallthru
          _
      $region84: #{tpu_custom_call.1} parent=5 // pred_fallthru
        _
    $region6: #{tpu_custom_call.1} parent=1 // loop_footer
      %s27 = sadd.s32 1, %s23
    $region7: #{tpu_custom_call.1} parent=1 // loop_footer_branch
      %22 = sbr.rel target = $region3
    $region8: #{tpu_custom_call.1} parent=1 // loop_exit
      _
    %3766 = vsyncpa [#allocation3], 1
    %s3767 = scalar_lea.sflag [#allocation3], 1
    %3768 = vsyncpa %s3767, 1

</llo_original>
